<compile_context>
chip_gen: v7x
topology: tpu7x:2x2x1
jax: 0.10.0
libtpu: 0.0.40
codegen_flags: <defaults>
</compile_context>

<pallas_src>
import functools

import jax
import jax.numpy as jnp
from jax.experimental import pallas as pl
from jax.experimental.pallas import tpu as pltpu

MASK_TOKEN_ID = 103   # CLASSES['bert-base-uncased'][3]
NUM_HEADS = 2
NEG_INF = -1e9
VMEM_LIMIT_BYTES = 48 * 1024 * 1024   # > default scoped limit, < v7x 64 MiB


# ----------------------------------------------------------------------------
# helpers shared by the kernel and the pure-JAX reference
# ----------------------------------------------------------------------------
def _layer_norm(x, g, b, eps=1e-12):
    mu = jnp.mean(x, axis=-1, keepdims=True)
    var = jnp.mean(jnp.square(x - mu), axis=-1, keepdims=True)
    return (x - mu) * jax.lax.rsqrt(var + eps) * g + b


def _gelu(x):
    # tanh-approximate GELU (HF BERT default is erf-GELU; tiny divergence)
    c = 0.7978845608028654  # sqrt(2/pi)
    return 0.5 * x * (1.0 + jnp.tanh(c * (x + 0.044715 * x * x * x)))


# ----------------------------------------------------------------------------
# fused BERT layer kernel (one grid step == one sequence)
# ----------------------------------------------------------------------------
def bert_layer_kernel(*refs, apply_input_ln, gather_mask):
    """MHA + residual/LN + FFN(GELU) + residual/LN for one sequence.

    Optional fusions (static flags):
      apply_input_ln : apply the embedding LayerNorm to the incoming hidden
                       states (first layer only; extra refs emb_g, emb_b).
      gather_mask    : also emit the hidden vector at the [MASK] position
                       (last layer only; extra input mask one-hot, extra output).
    """
    h_ref, bias_ref = refs[0], refs[1]
    (wq, bq, wk, bk, wv, bv, wo, bo,
     g1, be1, w1, b1, w2, b2, g2, be2) = refs[2:18]
    i = 18
    if apply_input_ln:
        emb_g, emb_b = refs[i], refs[i + 1]
        i += 2
    if gather_mask:
        mask_ref = refs[i]
        i += 1
    o_ref = refs[i]
    if gather_mask:
        mv_ref = refs[i + 1]

    h = h_ref[0]                                    # (S, H) f32
    if apply_input_ln:
        h = _layer_norm(h, emb_g[...], emb_b[...])
    bias = bias_ref[0]                              # (1, S) additive attn bias
    S, H = h.shape
    dh = wq.shape[-1]
    scale = 1.0 / jnp.sqrt(jnp.float32(dh))

    # ---- multi-head attention (heads on the leading dim of stacked weights) --
    h_b = h.astype(jnp.bfloat16)
    attn = jnp.zeros((S, H), jnp.float32)
    for hd in range(NUM_HEADS):                     # static unroll
        # scale folded into the q projection
        qh = (jnp.dot(h_b, wq[hd], preferred_element_type=jnp.float32)
              + bq[hd]) * scale                     # (S, dh) f32
        kh = jnp.dot(h_b, wk[hd], preferred_element_type=jnp.float32) + bk[hd]
        vh = jnp.dot(h_b, wv[hd], preferred_element_type=jnp.float32) + bv[hd]

        sc = jnp.einsum('sd,td->st', qh.astype(jnp.bfloat16),
                        kh.astype(jnp.bfloat16),
                        preferred_element_type=jnp.float32) + bias   # (S, S)
        sc = sc - jnp.max(sc, axis=-1, keepdims=True)
        p = jnp.exp(sc)
        p = p * pl.reciprocal(jnp.sum(p, axis=-1, keepdims=True), approx=True)

        ctx = jnp.dot(p.astype(jnp.bfloat16), vh.astype(jnp.bfloat16),
                      preferred_element_type=jnp.float32)            # (S, dh)
        # accumulate the output projection per head -> no concat on lane axis
        attn = attn + jnp.dot(ctx.astype(jnp.bfloat16), wo[hd],
                              preferred_element_type=jnp.float32)    # (S, H)
    attn = attn + bo[...]
    x = _layer_norm(h + attn, g1[...], be1[...])

    # ---- feed-forward ------------------------------------------------------
    ffn = _gelu(jnp.dot(x.astype(jnp.bfloat16), w1[...],
                        preferred_element_type=jnp.float32) + b1[...])
    ffn = jnp.dot(ffn.astype(jnp.bfloat16), w2[...],
                  preferred_element_type=jnp.float32) + b2[...]
    y = _layer_norm(x + ffn, g2[...], be2[...])

    o_ref[0] = y
    if gather_mask:
        # one-hot reduction over S == index_select at the [MASK] position
        mv_ref[0] = jnp.sum(y * mask_ref[0], axis=0, keepdims=True)  # (1, H)


def run_bert_layer(h, bias, layer, *, emb_ln=None, mask_onehot=None):
    """pallas_call wrapper: grid over batch, weights pinned resident in VMEM."""
    B, S, H = h.shape
    apply_input_ln = emb_ln is not None
    gather_mask = mask_onehot is not None

    def pinned(arr):                       # resident across all grid steps
        zeros = (0,) * arr.ndim
        return pl.BlockSpec(arr.shape, lambda b: zeros)

    wnames = ('wq', 'bq', 'wk', 'bk', 'wv', 'bv', 'wo', 'bo',
              'ln1_g', 'ln1_b', 'w1', 'b1', 'w2', 'b2', 'ln2_g', 'ln2_b')
    weights = [layer[n] for n in wnames]

    inputs = [h, bias] + weights
    in_specs = [pl.BlockSpec((1, S, H), lambda b: (b, 0, 0)),
                pl.BlockSpec((1, 1, S), lambda b: (b, 0, 0))]
    in_specs += [pinned(w) for w in weights]
    if apply_input_ln:
        inputs += list(emb_ln)
        in_specs += [pinned(a) for a in emb_ln]
    if gather_mask:
        inputs.append(mask_onehot)
        in_specs.append(pl.BlockSpec((1, S, 1), lambda b: (b, 0, 0)))

    out_shape = [jax.ShapeDtypeStruct((B, S, H), jnp.float32)]
    out_specs = [pl.BlockSpec((1, S, H), lambda b: (b, 0, 0))]
    if gather_mask:
        out_shape.append(jax.ShapeDtypeStruct((B, 1, H), jnp.float32))
        out_specs.append(pl.BlockSpec((1, 1, H), lambda b: (b, 0, 0)))

    kernel = functools.partial(bert_layer_kernel,
                               apply_input_ln=apply_input_ln,
                               gather_mask=gather_mask)
    outs = pl.pallas_call(
        kernel,
        grid=(B,),
        in_specs=in_specs,
        out_specs=out_specs,
        out_shape=out_shape,
        compiler_params=pltpu.CompilerParams(
            dimension_semantics=("parallel",),          # megacore over batch
            vmem_limit_bytes=VMEM_LIMIT_BYTES),
    )(*inputs)

    if gather_mask:
        return outs[0], outs[1][:, 0, :]
    return outs[0], None


# ----------------------------------------------------------------------------
# parameters (deterministic synthetic init — no checkpoint loading)
# ----------------------------------------------------------------------------
def init_params(key, vocab, max_pos, hidden, inter, num_layers):
    dh = hidden // NUM_HEADS

    def norm(k, shape, dtype=jnp.float32):
        return (0.02 * jax.random.normal(k, shape, jnp.float32)).astype(dtype)

    keys = jax.random.split(key, 3 + num_layers)
    params = {
        'word_emb': norm(keys[0], (vocab, hidden)),
        'pos_emb': norm(keys[1], (max_pos, hidden)),
        'type_emb': norm(keys[2], (2, hidden)),
        'emb_ln_g': jnp.ones((1, hidden), jnp.float32),
        'emb_ln_b': jnp.zeros((1, hidden), jnp.float32),
        'layers': [],
    }
    for li in range(num_layers):
        lk = jax.random.split(keys[3 + li], 12)
        params['layers'].append({
            # per-head stacked projection weights, bf16 (MXU inputs, half DMA)
            'wq': norm(lk[0], (NUM_HEADS, hidden, dh), jnp.bfloat16),
            'bq': norm(lk[6], (NUM_HEADS, 1, dh)),
            'wk': norm(lk[1], (NUM_HEADS, hidden, dh), jnp.bfloat16),
            'bk': norm(lk[7], (NUM_HEADS, 1, dh)),
            'wv': norm(lk[2], (NUM_HEADS, hidden, dh), jnp.bfloat16),
            'bv': norm(lk[8], (NUM_HEADS, 1, dh)),
            'wo': norm(lk[3], (NUM_HEADS, dh, hidden), jnp.bfloat16),
            'bo': norm(lk[9], (1, hidden)),
            'ln1_g': jnp.ones((1, hidden), jnp.float32),
            'ln1_b': jnp.zeros((1, hidden), jnp.float32),
            'w1': norm(lk[4], (hidden, inter), jnp.bfloat16),
            'b1': norm(lk[10], (1, inter)),
            'w2': norm(lk[5], (inter, hidden), jnp.bfloat16),
            'b2': norm(lk[11], (1, hidden)),
            'ln2_g': jnp.ones((1, hidden), jnp.float32),
            'ln2_b': jnp.zeros((1, hidden), jnp.float32),
        })
    return params


# ----------------------------------------------------------------------------
# forward (mirrors ModelDefinitionEncoder.forward in inference mode)
# ----------------------------------------------------------------------------
def model_definition_encoder_forward(params, input_ids, attention_mask,
                                     token_type_ids=None, run_mode='inference'):
    B, S = input_ids.shape
    if token_type_ids is None:
        token_type_ids = jnp.zeros_like(input_ids)

    # glue: embedding-table gathers (data-dependent gather stays in plain JAX)
    emb = (params['word_emb'][input_ids]
           + params['pos_emb'][None, :S, :]
           + params['type_emb'][token_type_ids]).astype(jnp.float32)

    # additive attention bias and [MASK] one-hot (glue)
    bias = ((1.0 - attention_mask.astype(jnp.float32)) * NEG_INF)[:, None, :]
    mask_onehot = (input_ids == MASK_TOKEN_ID).astype(jnp.float32)[:, :, None]

    n_layers = len(params['layers'])
    assert n_layers >= 1
    h = emb
    mask_vectors = None
    for li, L in enumerate(params['layers']):
        h, mv = run_bert_layer(
            h, bias, L,
            emb_ln=(params['emb_ln_g'], params['emb_ln_b']) if li == 0 else None,
            mask_onehot=mask_onehot if li == n_layers - 1 else None)
        if mv is not None:
            mask_vectors = mv

    loss = None
    # TODO(synk): train-mode losses (pytorch-metric-learning NTXentLoss /
    # MultiSimilarityMiner, BCEWithLogitsLoss in-batch CE) have no clean
    # Pallas equivalent here; inference/test mode returns loss=None.
    return loss, mask_vectors


# ----------------------------------------------------------------------------
# pure-JAX reference (same math & same bf16 matmul casting) for correctness
# ----------------------------------------------------------------------------
def reference_forward(params, input_ids, attention_mask, token_type_ids):
    B, S = input_ids.shape
    H = params['word_emb'].shape[1]
    dh = H // NUM_HEADS
    scale = 1.0 / jnp.sqrt(jnp.float32(dh))

    emb = (params['word_emb'][input_ids]
           + params['pos_emb'][None, :S, :]
           + params['type_emb'][token_type_ids]).astype(jnp.float32)
    h = _layer_norm(emb, params['emb_ln_g'], params['emb_ln_b'])
    bias = ((1.0 - attention_mask.astype(jnp.float32)) * NEG_INF)[:, None, None, :]

    for L in params['layers']:
        hb = h.astype(jnp.bfloat16)
        q = (jnp.einsum('bsh,nhd->bnsd', hb, L['wq'],
                        preferred_element_type=jnp.float32) + L['bq'][None]) * scale
        k = jnp.einsum('bsh,nhd->bnsd', hb, L['wk'],
                       preferred_element_type=jnp.float32) + L['bk'][None]
        v = jnp.einsum('bsh,nhd->bnsd', hb, L['wv'],
                       preferred_element_type=jnp.float32) + L['bv'][None]
        sc = jnp.einsum('bnsd,bntd->bnst', q.astype(jnp.bfloat16),
                        k.astype(jnp.bfloat16),
                        preferred_element_type=jnp.float32) + bias
        sc = sc - jnp.max(sc, axis=-1, keepdims=True)
        p = jnp.exp(sc)
        p = p / jnp.sum(p, axis=-1, keepdims=True)
        ctx = jnp.einsum('bnst,bntd->bnsd', p.astype(jnp.bfloat16),
                         v.astype(jnp.bfloat16),
                         preferred_element_type=jnp.float32)
        attn = jnp.einsum('bnsd,ndh->bsh', ctx.astype(jnp.bfloat16), L['wo'],
                          preferred_element_type=jnp.float32) + L['bo']
        x = _layer_norm(h + attn, L['ln1_g'], L['ln1_b'])
        ffn = _gelu(jnp.einsum('bsk,kf->bsf', x.astype(jnp.bfloat16), L['w1'],
                               preferred_element_type=jnp.float32) + L['b1'])
        ffn = jnp.einsum('bsf,fk->bsk', ffn.astype(jnp.bfloat16), L['w2'],
                         preferred_element_type=jnp.float32) + L['b2']
        h = _layer_norm(x + ffn, L['ln2_g'], L['ln2_b'])

    onehot = (input_ids == MASK_TOKEN_ID).astype(jnp.float32)
    return jnp.einsum('bs,bsh->bh', onehot, h)


# ----------------------------------------------------------------------------
if __name__ == "__main__":
    # lane-dense toy config: H multiple of 128, head dim 64
    B, S, H, INTER, VOCAB, LAYERS = 2, 16, 128, 512, 1000, 2

    key = jax.random.PRNGKey(0)
    pkey, ikey = jax.random.split(key)
    params = init_params(pkey, VOCAB, S, H, INTER, LAYERS)

    input_ids = jax.random.randint(ikey, (B, S), 0, VOCAB, dtype=jnp.int32)
    # ensure exactly one [MASK] token per sequence
    input_ids = jnp.where(input_ids == MASK_TOKEN_ID, 7, input_ids)
    input_ids = input_ids.at[0, 3].set(MASK_TOKEN_ID)
    input_ids = input_ids.at[1, 2].set(MASK_TOKEN_ID)
    attention_mask = jnp.ones((B, S), jnp.int32).at[1, 12:].set(0)
    token_type_ids = jnp.zeros((B, S), dtype=jnp.int32)

    loss, mask_vectors = model_definition_encoder_forward(
        params, input_ids, attention_mask, token_type_ids, run_mode='inference')
    mask_vectors = jax.block_until_ready(mask_vectors)

    ref = reference_forward(params, input_ids, attention_mask, token_type_ids)

    assert loss is None
    assert mask_vectors.shape == (B, H)
    err = float(jnp.max(jnp.abs(mask_vectors - ref)))
    assert jnp.allclose(mask_vectors, ref, rtol=1e-2, atol=1e-2), err
    print("KERNEL_OK")
</pallas_src>

<mosaic_0001>
module attributes {stable_mosaic.version = 11 : i64} {
  func.func @bert_layer_kernel(%arg0: i32, %arg1: memref<1x16x128xf32, #tpu.memory_space<vmem>>, %arg2: memref<1x1x16xf32, #tpu.memory_space<vmem>>, %arg3: memref<2x128x64xbf16, #tpu.memory_space<vmem>>, %arg4: memref<2x1x64xf32, #tpu.memory_space<vmem>>, %arg5: memref<2x128x64xbf16, #tpu.memory_space<vmem>>, %arg6: memref<2x1x64xf32, #tpu.memory_space<vmem>>, %arg7: memref<2x128x64xbf16, #tpu.memory_space<vmem>>, %arg8: memref<2x1x64xf32, #tpu.memory_space<vmem>>, %arg9: memref<2x64x128xbf16, #tpu.memory_space<vmem>>, %arg10: memref<1x128xf32, #tpu.memory_space<vmem>>, %arg11: memref<1x128xf32, #tpu.memory_space<vmem>>, %arg12: memref<1x128xf32, #tpu.memory_space<vmem>>, %arg13: memref<128x512xbf16, #tpu.memory_space<vmem>>, %arg14: memref<1x512xf32, #tpu.memory_space<vmem>>, %arg15: memref<512x128xbf16, #tpu.memory_space<vmem>>, %arg16: memref<1x128xf32, #tpu.memory_space<vmem>>, %arg17: memref<1x128xf32, #tpu.memory_space<vmem>>, %arg18: memref<1x128xf32, #tpu.memory_space<vmem>>, %arg19: memref<1x128xf32, #tpu.memory_space<vmem>>, %arg20: memref<1x128xf32, #tpu.memory_space<vmem>>, %arg21: memref<1x16x128xf32, #tpu.memory_space<vmem>>) attributes {dimension_semantics = [#tpu.dimension_semantics<parallel>], iteration_bounds = array<i64: 2>, scalar_prefetch = 0 : i64, scratch_operands = 0 : i64, tpu.core_type = #tpu.core_type<tc>, window_params = [{transform_indices = @transform_0, window_bounds = array<i64: 1, 16, 128>}, {transform_indices = @transform_1, window_bounds = array<i64: 1, 1, 16>}, {pipeline_mode = #tpu.pipeline_mode<synchronous>, transform_indices = @transform_2, window_bounds = array<i64: 2, 128, 64>}, {pipeline_mode = #tpu.pipeline_mode<synchronous>, transform_indices = @transform_3, window_bounds = array<i64: 2, 1, 64>}, {pipeline_mode = #tpu.pipeline_mode<synchronous>, transform_indices = @transform_4, window_bounds = array<i64: 2, 128, 64>}, {pipeline_mode = #tpu.pipeline_mode<synchronous>, transform_indices = @transform_5, window_bounds = array<i64: 2, 1, 64>}, {pipeline_mode = #tpu.pipeline_mode<synchronous>, transform_indices = @transform_6, window_bounds = array<i64: 2, 128, 64>}, {pipeline_mode = #tpu.pipeline_mode<synchronous>, transform_indices = @transform_7, window_bounds = array<i64: 2, 1, 64>}, {pipeline_mode = #tpu.pipeline_mode<synchronous>, transform_indices = @transform_8, window_bounds = array<i64: 2, 64, 128>}, {pipeline_mode = #tpu.pipeline_mode<synchronous>, transform_indices = @transform_9, window_bounds = array<i64: 1, 128>}, {pipeline_mode = #tpu.pipeline_mode<synchronous>, transform_indices = @transform_10, window_bounds = array<i64: 1, 128>}, {pipeline_mode = #tpu.pipeline_mode<synchronous>, transform_indices = @transform_11, window_bounds = array<i64: 1, 128>}, {pipeline_mode = #tpu.pipeline_mode<synchronous>, transform_indices = @transform_12, window_bounds = array<i64: 128, 512>}, {pipeline_mode = #tpu.pipeline_mode<synchronous>, transform_indices = @transform_13, window_bounds = array<i64: 1, 512>}, {pipeline_mode = #tpu.pipeline_mode<synchronous>, transform_indices = @transform_14, window_bounds = array<i64: 512, 128>}, {pipeline_mode = #tpu.pipeline_mode<synchronous>, transform_indices = @transform_15, window_bounds = array<i64: 1, 128>}, {pipeline_mode = #tpu.pipeline_mode<synchronous>, transform_indices = @transform_16, window_bounds = array<i64: 1, 128>}, {pipeline_mode = #tpu.pipeline_mode<synchronous>, transform_indices = @transform_17, window_bounds = array<i64: 1, 128>}, {pipeline_mode = #tpu.pipeline_mode<synchronous>, transform_indices = @transform_18, window_bounds = array<i64: 1, 128>}, {pipeline_mode = #tpu.pipeline_mode<synchronous>, transform_indices = @transform_19, window_bounds = array<i64: 1, 128>}, {transform_indices = @transform_20, window_bounds = array<i64: 1, 16, 128>}]} {
    %c0 = arith.constant 0 : index
    %c0_0 = arith.constant 0 : index
    %c0_1 = arith.constant 0 : index
    %0 = vector.load %arg1[%c0, %c0_0, %c0_1] : memref<1x16x128xf32, #tpu.memory_space<vmem>>, vector<1x16x128xf32>
    %1 = vector.shape_cast %0 : vector<1x16x128xf32> to vector<16x128xf32>
    %c0_2 = arith.constant 0 : index
    %c0_3 = arith.constant 0 : index
    %2 = vector.load %arg19[%c0_2, %c0_3] : memref<1x128xf32, #tpu.memory_space<vmem>>, vector<1x128xf32>
    %c0_4 = arith.constant 0 : index
    %c0_5 = arith.constant 0 : index
    %3 = vector.load %arg20[%c0_4, %c0_5] : memref<1x128xf32, #tpu.memory_space<vmem>>, vector<1x128xf32>
    %cst = arith.constant dense<0.000000e+00> : vector<16xf32>
    %4 = vector.multi_reduction <add>, %1, %cst [1] : vector<16x128xf32> to vector<16xf32>
    %5 = vector.shape_cast %4 : vector<16xf32> to vector<16x1xf32>
    %cst_6 = arith.constant 1.280000e+02 : f32
    %6 = vector.broadcast %cst_6 : f32 to vector<16x1xf32>
    %7 = arith.divf %5, %6 : vector<16x1xf32>
    %8 = vector.broadcast %7 : vector<16x1xf32> to vector<16x128xf32>
    %9 = arith.subf %1, %8 : vector<16x128xf32>
    %10 = arith.mulf %9, %9 : vector<16x128xf32>
    %cst_7 = arith.constant dense<0.000000e+00> : vector<16xf32>
    %11 = vector.multi_reduction <add>, %10, %cst_7 [1] : vector<16x128xf32> to vector<16xf32>
    %12 = vector.shape_cast %11 : vector<16xf32> to vector<16x1xf32>
    %cst_8 = arith.constant 1.280000e+02 : f32
    %13 = vector.broadcast %cst_8 : f32 to vector<16x1xf32>
    %14 = arith.divf %12, %13 : vector<16x1xf32>
    %15 = vector.broadcast %7 : vector<16x1xf32> to vector<16x128xf32>
    %16 = arith.subf %1, %15 : vector<16x128xf32>
    %cst_9 = arith.constant 9.99999996E-13 : f32
    %17 = vector.broadcast %cst_9 : f32 to vector<16x1xf32>
    %18 = arith.addf %14, %17 : vector<16x1xf32>
    %19 = math.rsqrt %18 : vector<16x1xf32>
    %20 = vector.broadcast %19 : vector<16x1xf32> to vector<16x128xf32>
    %21 = arith.mulf %16, %20 : vector<16x128xf32>
    %22 = vector.broadcast %2 : vector<1x128xf32> to vector<16x128xf32>
    %23 = arith.mulf %21, %22 : vector<16x128xf32>
    %24 = vector.broadcast %3 : vector<1x128xf32> to vector<16x128xf32>
    %25 = arith.addf %23, %24 : vector<16x128xf32>
    %c0_10 = arith.constant 0 : index
    %c0_11 = arith.constant 0 : index
    %c0_12 = arith.constant 0 : index
    %26 = vector.load %arg2[%c0_10, %c0_11, %c0_12] : memref<1x1x16xf32, #tpu.memory_space<vmem>>, vector<1x1x16xf32>
    %27 = vector.shape_cast %26 : vector<1x1x16xf32> to vector<1x16xf32>
    %cst_13 = arith.constant 6.400000e+01 : f32
    %28 = math.sqrt %cst_13 : f32
    %cst_14 = arith.constant 1.000000e+00 : f32
    %29 = arith.divf %cst_14, %28 : f32
    %30 = arith.truncf %25 : vector<16x128xf32> to vector<16x128xbf16>
    %cst_15 = arith.constant 0.000000e+00 : f32
    %31 = vector.broadcast %cst_15 : f32 to vector<16x128xf32>
    %c0_16 = arith.constant 0 : index
    %c0_17 = arith.constant 0 : index
    %c0_18 = arith.constant 0 : index
    %32 = vector.load %arg3[%c0_16, %c0_17, %c0_18] : memref<2x128x64xbf16, #tpu.memory_space<vmem>>, vector<1x128x64xbf16>
    %33 = vector.shape_cast %32 : vector<1x128x64xbf16> to vector<128x64xbf16>
    %cst_19 = arith.constant dense<0.000000e+00> : vector<16x64xf32>
    %34 = tpu.matmul %30, %33, %cst_19 {dimension_numbers = #tpu.dot_dimension_numbers<[1], [0], [0], [1], [0, 0, 1, 1], [], []>} : vector<16x128xbf16>, vector<128x64xbf16>, vector<16x64xf32> -> vector<16x64xf32>
    %c0_20 = arith.constant 0 : index
    %c0_21 = arith.constant 0 : index
    %c0_22 = arith.constant 0 : index
    %35 = vector.load %arg4[%c0_20, %c0_21, %c0_22] : memref<2x1x64xf32, #tpu.memory_space<vmem>>, vector<1x1x64xf32>
    %36 = vector.shape_cast %35 : vector<1x1x64xf32> to vector<1x64xf32>
    %37 = vector.broadcast %36 : vector<1x64xf32> to vector<16x64xf32>
    %38 = arith.addf %34, %37 : vector<16x64xf32>
    %39 = vector.broadcast %29 : f32 to vector<16x64xf32>
    %40 = arith.mulf %38, %39 : vector<16x64xf32>
    %c0_23 = arith.constant 0 : index
    %c0_24 = arith.constant 0 : index
    %c0_25 = arith.constant 0 : index
    %41 = vector.load %arg5[%c0_23, %c0_24, %c0_25] : memref<2x128x64xbf16, #tpu.memory_space<vmem>>, vector<1x128x64xbf16>
    %42 = vector.shape_cast %41 : vector<1x128x64xbf16> to vector<128x64xbf16>
    %cst_26 = arith.constant dense<0.000000e+00> : vector<16x64xf32>
    %43 = tpu.matmul %30, %42, %cst_26 {dimension_numbers = #tpu.dot_dimension_numbers<[1], [0], [0], [1], [0, 0, 1, 1], [], []>} : vector<16x128xbf16>, vector<128x64xbf16>, vector<16x64xf32> -> vector<16x64xf32>
    %c0_27 = arith.constant 0 : index
    %c0_28 = arith.constant 0 : index
    %c0_29 = arith.constant 0 : index
    %44 = vector.load %arg6[%c0_27, %c0_28, %c0_29] : memref<2x1x64xf32, #tpu.memory_space<vmem>>, vector<1x1x64xf32>
    %45 = vector.shape_cast %44 : vector<1x1x64xf32> to vector<1x64xf32>
    %46 = vector.broadcast %45 : vector<1x64xf32> to vector<16x64xf32>
    %47 = arith.addf %43, %46 : vector<16x64xf32>
    %c0_30 = arith.constant 0 : index
    %c0_31 = arith.constant 0 : index
    %c0_32 = arith.constant 0 : index
    %48 = vector.load %arg7[%c0_30, %c0_31, %c0_32] : memref<2x128x64xbf16, #tpu.memory_space<vmem>>, vector<1x128x64xbf16>
    %49 = vector.shape_cast %48 : vector<1x128x64xbf16> to vector<128x64xbf16>
    %cst_33 = arith.constant dense<0.000000e+00> : vector<16x64xf32>
    %50 = tpu.matmul %30, %49, %cst_33 {dimension_numbers = #tpu.dot_dimension_numbers<[1], [0], [0], [1], [0, 0, 1, 1], [], []>} : vector<16x128xbf16>, vector<128x64xbf16>, vector<16x64xf32> -> vector<16x64xf32>
    %c0_34 = arith.constant 0 : index
    %c0_35 = arith.constant 0 : index
    %c0_36 = arith.constant 0 : index
    %51 = vector.load %arg8[%c0_34, %c0_35, %c0_36] : memref<2x1x64xf32, #tpu.memory_space<vmem>>, vector<1x1x64xf32>
    %52 = vector.shape_cast %51 : vector<1x1x64xf32> to vector<1x64xf32>
    %53 = vector.broadcast %52 : vector<1x64xf32> to vector<16x64xf32>
    %54 = arith.addf %50, %53 : vector<16x64xf32>
    %55 = arith.truncf %40 : vector<16x64xf32> to vector<16x64xbf16>
    %56 = arith.truncf %47 : vector<16x64xf32> to vector<16x64xbf16>
    "tpu.trace_start"() <{level = 10 : i32, message = "sd,td->st"}> : () -> ()
    %cst_37 = arith.constant dense<0.000000e+00> : vector<16x16xf32>
    %57 = tpu.matmul %55, %56, %cst_37 {dimension_numbers = #tpu.dot_dimension_numbers<[1], [1], [0], [0], [0, 0, 1, 0], [], []>} : vector<16x64xbf16>, vector<16x64xbf16>, vector<16x16xf32> -> vector<16x16xf32>
    "tpu.trace_stop"() : () -> ()
    %58 = vector.broadcast %27 : vector<1x16xf32> to vector<16x16xf32>
    %59 = arith.addf %57, %58 : vector<16x16xf32>
    %cst_38 = arith.constant dense<0xFF800000> : vector<16xf32>
    %60 = vector.multi_reduction <maximumf>, %59, %cst_38 [1] : vector<16x16xf32> to vector<16xf32>
    %61 = vector.shape_cast %60 : vector<16xf32> to vector<16x1xf32>
    %62 = vector.broadcast %61 : vector<16x1xf32> to vector<16x16xf32>
    %63 = arith.subf %59, %62 : vector<16x16xf32>
    %64 = math.exp %63 : vector<16x16xf32>
    %cst_39 = arith.constant dense<0.000000e+00> : vector<16xf32>
    %65 = vector.multi_reduction <add>, %64, %cst_39 [1] : vector<16x16xf32> to vector<16xf32>
    %66 = vector.shape_cast %65 : vector<16xf32> to vector<16x1xf32>
    %67 = tpu.reciprocal %66 {approx = true} : vector<16x1xf32> -> vector<16x1xf32>
    %68 = vector.broadcast %67 : vector<16x1xf32> to vector<16x16xf32>
    %69 = arith.mulf %64, %68 : vector<16x16xf32>
    %70 = arith.truncf %69 : vector<16x16xf32> to vector<16x16xbf16>
    %71 = arith.truncf %54 : vector<16x64xf32> to vector<16x64xbf16>
    %cst_40 = arith.constant dense<0.000000e+00> : vector<16x64xf32>
    %72 = tpu.matmul %70, %71, %cst_40 {dimension_numbers = #tpu.dot_dimension_numbers<[1], [0], [0], [1], [0, 0, 1, 1], [], []>} : vector<16x16xbf16>, vector<16x64xbf16>, vector<16x64xf32> -> vector<16x64xf32>
    %73 = arith.truncf %72 : vector<16x64xf32> to vector<16x64xbf16>
    %c0_41 = arith.constant 0 : index
    %c0_42 = arith.constant 0 : index
    %c0_43 = arith.constant 0 : index
    %74 = vector.load %arg9[%c0_41, %c0_42, %c0_43] : memref<2x64x128xbf16, #tpu.memory_space<vmem>>, vector<1x64x128xbf16>
    %75 = vector.shape_cast %74 : vector<1x64x128xbf16> to vector<64x128xbf16>
    %cst_44 = arith.constant dense<0.000000e+00> : vector<16x128xf32>
    %76 = tpu.matmul %73, %75, %cst_44 {dimension_numbers = #tpu.dot_dimension_numbers<[1], [0], [0], [1], [0, 0, 1, 1], [], []>} : vector<16x64xbf16>, vector<64x128xbf16>, vector<16x128xf32> -> vector<16x128xf32>
    %77 = arith.addf %31, %76 : vector<16x128xf32>
    %c1 = arith.constant 1 : index
    %c0_45 = arith.constant 0 : index
    %c0_46 = arith.constant 0 : index
    %78 = vector.load %arg3[%c1, %c0_45, %c0_46] : memref<2x128x64xbf16, #tpu.memory_space<vmem>>, vector<1x128x64xbf16>
    %79 = vector.shape_cast %78 : vector<1x128x64xbf16> to vector<128x64xbf16>
    %cst_47 = arith.constant dense<0.000000e+00> : vector<16x64xf32>
    %80 = tpu.matmul %30, %79, %cst_47 {dimension_numbers = #tpu.dot_dimension_numbers<[1], [0], [0], [1], [0, 0, 1, 1], [], []>} : vector<16x128xbf16>, vector<128x64xbf16>, vector<16x64xf32> -> vector<16x64xf32>
    %c1_48 = arith.constant 1 : index
    %c0_49 = arith.constant 0 : index
    %c0_50 = arith.constant 0 : index
    %81 = vector.load %arg4[%c1_48, %c0_49, %c0_50] : memref<2x1x64xf32, #tpu.memory_space<vmem>>, vector<1x1x64xf32>
    %82 = vector.shape_cast %81 : vector<1x1x64xf32> to vector<1x64xf32>
    %83 = vector.broadcast %82 : vector<1x64xf32> to vector<16x64xf32>
    %84 = arith.addf %80, %83 : vector<16x64xf32>
    %85 = vector.broadcast %29 : f32 to vector<16x64xf32>
    %86 = arith.mulf %84, %85 : vector<16x64xf32>
    %c1_51 = arith.constant 1 : index
    %c0_52 = arith.constant 0 : index
    %c0_53 = arith.constant 0 : index
    %87 = vector.load %arg5[%c1_51, %c0_52, %c0_53] : memref<2x128x64xbf16, #tpu.memory_space<vmem>>, vector<1x128x64xbf16>
    %88 = vector.shape_cast %87 : vector<1x128x64xbf16> to vector<128x64xbf16>
    %cst_54 = arith.constant dense<0.000000e+00> : vector<16x64xf32>
    %89 = tpu.matmul %30, %88, %cst_54 {dimension_numbers = #tpu.dot_dimension_numbers<[1], [0], [0], [1], [0, 0, 1, 1], [], []>} : vector<16x128xbf16>, vector<128x64xbf16>, vector<16x64xf32> -> vector<16x64xf32>
    %c1_55 = arith.constant 1 : index
    %c0_56 = arith.constant 0 : index
    %c0_57 = arith.constant 0 : index
    %90 = vector.load %arg6[%c1_55, %c0_56, %c0_57] : memref<2x1x64xf32, #tpu.memory_space<vmem>>, vector<1x1x64xf32>
    %91 = vector.shape_cast %90 : vector<1x1x64xf32> to vector<1x64xf32>
    %92 = vector.broadcast %91 : vector<1x64xf32> to vector<16x64xf32>
    %93 = arith.addf %89, %92 : vector<16x64xf32>
    %c1_58 = arith.constant 1 : index
    %c0_59 = arith.constant 0 : index
    %c0_60 = arith.constant 0 : index
    %94 = vector.load %arg7[%c1_58, %c0_59, %c0_60] : memref<2x128x64xbf16, #tpu.memory_space<vmem>>, vector<1x128x64xbf16>
    %95 = vector.shape_cast %94 : vector<1x128x64xbf16> to vector<128x64xbf16>
    %cst_61 = arith.constant dense<0.000000e+00> : vector<16x64xf32>
    %96 = tpu.matmul %30, %95, %cst_61 {dimension_numbers = #tpu.dot_dimension_numbers<[1], [0], [0], [1], [0, 0, 1, 1], [], []>} : vector<16x128xbf16>, vector<128x64xbf16>, vector<16x64xf32> -> vector<16x64xf32>
    %c1_62 = arith.constant 1 : index
    %c0_63 = arith.constant 0 : index
    %c0_64 = arith.constant 0 : index
    %97 = vector.load %arg8[%c1_62, %c0_63, %c0_64] : memref<2x1x64xf32, #tpu.memory_space<vmem>>, vector<1x1x64xf32>
    %98 = vector.shape_cast %97 : vector<1x1x64xf32> to vector<1x64xf32>
    %99 = vector.broadcast %98 : vector<1x64xf32> to vector<16x64xf32>
    %100 = arith.addf %96, %99 : vector<16x64xf32>
    %101 = arith.truncf %86 : vector<16x64xf32> to vector<16x64xbf16>
    %102 = arith.truncf %93 : vector<16x64xf32> to vector<16x64xbf16>
    "tpu.trace_start"() <{level = 10 : i32, message = "sd,td->st"}> : () -> ()
    %cst_65 = arith.constant dense<0.000000e+00> : vector<16x16xf32>
    %103 = tpu.matmul %101, %102, %cst_65 {dimension_numbers = #tpu.dot_dimension_numbers<[1], [1], [0], [0], [0, 0, 1, 0], [], []>} : vector<16x64xbf16>, vector<16x64xbf16>, vector<16x16xf32> -> vector<16x16xf32>
    "tpu.trace_stop"() : () -> ()
    %104 = vector.broadcast %27 : vector<1x16xf32> to vector<16x16xf32>
    %105 = arith.addf %103, %104 : vector<16x16xf32>
    %cst_66 = arith.constant dense<0xFF800000> : vector<16xf32>
    %106 = vector.multi_reduction <maximumf>, %105, %cst_66 [1] : vector<16x16xf32> to vector<16xf32>
    %107 = vector.shape_cast %106 : vector<16xf32> to vector<16x1xf32>
    %108 = vector.broadcast %107 : vector<16x1xf32> to vector<16x16xf32>
    %109 = arith.subf %105, %108 : vector<16x16xf32>
    %110 = math.exp %109 : vector<16x16xf32>
    %cst_67 = arith.constant dense<0.000000e+00> : vector<16xf32>
    %111 = vector.multi_reduction <add>, %110, %cst_67 [1] : vector<16x16xf32> to vector<16xf32>
    %112 = vector.shape_cast %111 : vector<16xf32> to vector<16x1xf32>
    %113 = tpu.reciprocal %112 {approx = true} : vector<16x1xf32> -> vector<16x1xf32>
    %114 = vector.broadcast %113 : vector<16x1xf32> to vector<16x16xf32>
    %115 = arith.mulf %110, %114 : vector<16x16xf32>
    %116 = arith.truncf %115 : vector<16x16xf32> to vector<16x16xbf16>
    %117 = arith.truncf %100 : vector<16x64xf32> to vector<16x64xbf16>
    %cst_68 = arith.constant dense<0.000000e+00> : vector<16x64xf32>
    %118 = tpu.matmul %116, %117, %cst_68 {dimension_numbers = #tpu.dot_dimension_numbers<[1], [0], [0], [1], [0, 0, 1, 1], [], []>} : vector<16x16xbf16>, vector<16x64xbf16>, vector<16x64xf32> -> vector<16x64xf32>
    %119 = arith.truncf %118 : vector<16x64xf32> to vector<16x64xbf16>
    %c1_69 = arith.constant 1 : index
    %c0_70 = arith.constant 0 : index
    %c0_71 = arith.constant 0 : index
    %120 = vector.load %arg9[%c1_69, %c0_70, %c0_71] : memref<2x64x128xbf16, #tpu.memory_space<vmem>>, vector<1x64x128xbf16>
    %121 = vector.shape_cast %120 : vector<1x64x128xbf16> to vector<64x128xbf16>
    %cst_72 = arith.constant dense<0.000000e+00> : vector<16x128xf32>
    %122 = tpu.matmul %119, %121, %cst_72 {dimension_numbers = #tpu.dot_dimension_numbers<[1], [0], [0], [1], [0, 0, 1, 1], [], []>} : vector<16x64xbf16>, vector<64x128xbf16>, vector<16x128xf32> -> vector<16x128xf32>
    %123 = arith.addf %77, %122 : vector<16x128xf32>
    %c0_73 = arith.constant 0 : index
    %c0_74 = arith.constant 0 : index
    %124 = vector.load %arg10[%c0_73, %c0_74] : memref<1x128xf32, #tpu.memory_space<vmem>>, vector<1x128xf32>
    %125 = vector.broadcast %124 : vector<1x128xf32> to vector<16x128xf32>
    %126 = arith.addf %123, %125 : vector<16x128xf32>
    %127 = arith.addf %25, %126 : vector<16x128xf32>
    %c0_75 = arith.constant 0 : index
    %c0_76 = arith.constant 0 : index
    %128 = vector.load %arg11[%c0_75, %c0_76] : memref<1x128xf32, #tpu.memory_space<vmem>>, vector<1x128xf32>
    %c0_77 = arith.constant 0 : index
    %c0_78 = arith.constant 0 : index
    %129 = vector.load %arg12[%c0_77, %c0_78] : memref<1x128xf32, #tpu.memory_space<vmem>>, vector<1x128xf32>
    %cst_79 = arith.constant dense<0.000000e+00> : vector<16xf32>
    %130 = vector.multi_reduction <add>, %127, %cst_79 [1] : vector<16x128xf32> to vector<16xf32>
    %131 = vector.shape_cast %130 : vector<16xf32> to vector<16x1xf32>
    %cst_80 = arith.constant 1.280000e+02 : f32
    %132 = vector.broadcast %cst_80 : f32 to vector<16x1xf32>
    %133 = arith.divf %131, %132 : vector<16x1xf32>
    %134 = vector.broadcast %133 : vector<16x1xf32> to vector<16x128xf32>
    %135 = arith.subf %127, %134 : vector<16x128xf32>
    %136 = arith.mulf %135, %135 : vector<16x128xf32>
    %cst_81 = arith.constant dense<0.000000e+00> : vector<16xf32>
    %137 = vector.multi_reduction <add>, %136, %cst_81 [1] : vector<16x128xf32> to vector<16xf32>
    %138 = vector.shape_cast %137 : vector<16xf32> to vector<16x1xf32>
    %cst_82 = arith.constant 1.280000e+02 : f32
    %139 = vector.broadcast %cst_82 : f32 to vector<16x1xf32>
    %140 = arith.divf %138, %139 : vector<16x1xf32>
    %141 = vector.broadcast %133 : vector<16x1xf32> to vector<16x128xf32>
    %142 = arith.subf %127, %141 : vector<16x128xf32>
    %cst_83 = arith.constant 9.99999996E-13 : f32
    %143 = vector.broadcast %cst_83 : f32 to vector<16x1xf32>
    %144 = arith.addf %140, %143 : vector<16x1xf32>
    %145 = math.rsqrt %144 : vector<16x1xf32>
    %146 = vector.broadcast %145 : vector<16x1xf32> to vector<16x128xf32>
    %147 = arith.mulf %142, %146 : vector<16x128xf32>
    %148 = vector.broadcast %128 : vector<1x128xf32> to vector<16x128xf32>
    %149 = arith.mulf %147, %148 : vector<16x128xf32>
    %150 = vector.broadcast %129 : vector<1x128xf32> to vector<16x128xf32>
    %151 = arith.addf %149, %150 : vector<16x128xf32>
    %152 = arith.truncf %151 : vector<16x128xf32> to vector<16x128xbf16>
    %c0_84 = arith.constant 0 : index
    %c0_85 = arith.constant 0 : index
    %153 = vector.load %arg13[%c0_84, %c0_85] : memref<128x512xbf16, #tpu.memory_space<vmem>>, vector<128x512xbf16>
    %cst_86 = arith.constant dense<0.000000e+00> : vector<16x512xf32>
    %154 = tpu.matmul %152, %153, %cst_86 {dimension_numbers = #tpu.dot_dimension_numbers<[1], [0], [0], [1], [0, 0, 1, 1], [], []>} : vector<16x128xbf16>, vector<128x512xbf16>, vector<16x512xf32> -> vector<16x512xf32>
    %c0_87 = arith.constant 0 : index
    %c0_88 = arith.constant 0 : index
    %155 = vector.load %arg14[%c0_87, %c0_88] : memref<1x512xf32, #tpu.memory_space<vmem>>, vector<1x512xf32>
    %156 = vector.broadcast %155 : vector<1x512xf32> to vector<16x512xf32>
    %157 = arith.addf %154, %156 : vector<16x512xf32>
    %cst_89 = arith.constant 5.000000e-01 : f32
    %158 = vector.broadcast %cst_89 : f32 to vector<16x512xf32>
    %159 = arith.mulf %158, %157 : vector<16x512xf32>
    %cst_90 = arith.constant 4.471500e-02 : f32
    %160 = vector.broadcast %cst_90 : f32 to vector<16x512xf32>
    %161 = arith.mulf %160, %157 : vector<16x512xf32>
    %162 = arith.mulf %161, %157 : vector<16x512xf32>
    %163 = arith.mulf %162, %157 : vector<16x512xf32>
    %164 = arith.addf %157, %163 : vector<16x512xf32>
    %cst_91 = arith.constant 0.797884583 : f32
    %165 = vector.broadcast %cst_91 : f32 to vector<16x512xf32>
    %166 = arith.mulf %165, %164 : vector<16x512xf32>
    %167 = math.tanh %166 : vector<16x512xf32>
    %cst_92 = arith.constant 1.000000e+00 : f32
    %168 = vector.broadcast %cst_92 : f32 to vector<16x512xf32>
    %169 = arith.addf %168, %167 : vector<16x512xf32>
    %170 = arith.mulf %159, %169 : vector<16x512xf32>
    %171 = arith.truncf %170 : vector<16x512xf32> to vector<16x512xbf16>
    %c0_93 = arith.constant 0 : index
    %c0_94 = arith.constant 0 : index
    %172 = vector.load %arg15[%c0_93, %c0_94] : memref<512x128xbf16, #tpu.memory_space<vmem>>, vector<512x128xbf16>
    %cst_95 = arith.constant dense<0.000000e+00> : vector<16x128xf32>
    %173 = tpu.matmul %171, %172, %cst_95 {dimension_numbers = #tpu.dot_dimension_numbers<[1], [0], [0], [1], [0, 0, 1, 1], [], []>} : vector<16x512xbf16>, vector<512x128xbf16>, vector<16x128xf32> -> vector<16x128xf32>
    %c0_96 = arith.constant 0 : index
    %c0_97 = arith.constant 0 : index
    %174 = vector.load %arg16[%c0_96, %c0_97] : memref<1x128xf32, #tpu.memory_space<vmem>>, vector<1x128xf32>
    %175 = vector.broadcast %174 : vector<1x128xf32> to vector<16x128xf32>
    %176 = arith.addf %173, %175 : vector<16x128xf32>
    %177 = arith.addf %151, %176 : vector<16x128xf32>
    %c0_98 = arith.constant 0 : index
    %c0_99 = arith.constant 0 : index
    %178 = vector.load %arg17[%c0_98, %c0_99] : memref<1x128xf32, #tpu.memory_space<vmem>>, vector<1x128xf32>
    %c0_100 = arith.constant 0 : index
    %c0_101 = arith.constant 0 : index
    %179 = vector.load %arg18[%c0_100, %c0_101] : memref<1x128xf32, #tpu.memory_space<vmem>>, vector<1x128xf32>
    %cst_102 = arith.constant dense<0.000000e+00> : vector<16xf32>
    %180 = vector.multi_reduction <add>, %177, %cst_102 [1] : vector<16x128xf32> to vector<16xf32>
    %181 = vector.shape_cast %180 : vector<16xf32> to vector<16x1xf32>
    %cst_103 = arith.constant 1.280000e+02 : f32
    %182 = vector.broadcast %cst_103 : f32 to vector<16x1xf32>
    %183 = arith.divf %181, %182 : vector<16x1xf32>
    %184 = vector.broadcast %183 : vector<16x1xf32> to vector<16x128xf32>
    %185 = arith.subf %177, %184 : vector<16x128xf32>
    %186 = arith.mulf %185, %185 : vector<16x128xf32>
    %cst_104 = arith.constant dense<0.000000e+00> : vector<16xf32>
    %187 = vector.multi_reduction <add>, %186, %cst_104 [1] : vector<16x128xf32> to vector<16xf32>
    %188 = vector.shape_cast %187 : vector<16xf32> to vector<16x1xf32>
    %cst_105 = arith.constant 1.280000e+02 : f32
    %189 = vector.broadcast %cst_105 : f32 to vector<16x1xf32>
    %190 = arith.divf %188, %189 : vector<16x1xf32>
    %191 = vector.broadcast %183 : vector<16x1xf32> to vector<16x128xf32>
    %192 = arith.subf %177, %191 : vector<16x128xf32>
    %cst_106 = arith.constant 9.99999996E-13 : f32
    %193 = vector.broadcast %cst_106 : f32 to vector<16x1xf32>
    %194 = arith.addf %190, %193 : vector<16x1xf32>
    %195 = math.rsqrt %194 : vector<16x1xf32>
    %196 = vector.broadcast %195 : vector<16x1xf32> to vector<16x128xf32>
    %197 = arith.mulf %192, %196 : vector<16x128xf32>
    %198 = vector.broadcast %178 : vector<1x128xf32> to vector<16x128xf32>
    %199 = arith.mulf %197, %198 : vector<16x128xf32>
    %200 = vector.broadcast %179 : vector<1x128xf32> to vector<16x128xf32>
    %201 = arith.addf %199, %200 : vector<16x128xf32>
    %c0_107 = arith.constant 0 : index
    %c0_108 = arith.constant 0 : index
    %c0_109 = arith.constant 0 : index
    %202 = vector.load %arg21[%c0_107, %c0_108, %c0_109] : memref<1x16x128xf32, #tpu.memory_space<vmem>>, vector<1x16x128xf32>
    %203 = vector.shape_cast %202 : vector<1x16x128xf32> to vector<16x128xf32>
    %204 = vector.shape_cast %201 : vector<16x128xf32> to vector<1x16x128xf32>
    tpu.vector_store %arg21[%c0_107, %c0_108, %c0_109], %204 {strides = array<i32>} : memref<1x16x128xf32, #tpu.memory_space<vmem>>, vector<1x16x128xf32>,
    return
  }
  func.func @transform_0(%arg0: i32) -> (i32, i32, i32) {
    %c0_i32 = arith.constant 0 : i32
    %c0_i32_0 = arith.constant 0 : i32
    %c0_i32_1 = arith.constant 0 : i32
    return %arg0, %c0_i32, %c0_i32_0 : i32, i32, i32
  }
  func.func @transform_1(%arg0: i32) -> (i32, i32, i32) {
    %c0_i32 = arith.constant 0 : i32
    %c0_i32_0 = arith.constant 0 : i32
    %c0_i32_1 = arith.constant 0 : i32
    return %arg0, %c0_i32, %c0_i32_0 : i32, i32, i32
  }
  func.func @transform_2(%arg0: i32) -> (i32, i32, i32) {
    %c0_i32 = arith.constant 0 : i32
    %c0_i32_0 = arith.constant 0 : i32
    %c0_i32_1 = arith.constant 0 : i32
    %c0_i32_2 = arith.constant 0 : i32
    return %c0_i32, %c0_i32_0, %c0_i32_1 : i32, i32, i32
  }
  func.func @transform_3(%arg0: i32) -> (i32, i32, i32) {
    %c0_i32 = arith.constant 0 : i32
    %c0_i32_0 = arith.constant 0 : i32
    %c0_i32_1 = arith.constant 0 : i32
    %c0_i32_2 = arith.constant 0 : i32
    return %c0_i32, %c0_i32_0, %c0_i32_1 : i32, i32, i32
  }
  func.func @transform_4(%arg0: i32) -> (i32, i32, i32) {
    %c0_i32 = arith.constant 0 : i32
    %c0_i32_0 = arith.constant 0 : i32
    %c0_i32_1 = arith.constant 0 : i32
    %c0_i32_2 = arith.constant 0 : i32
    return %c0_i32, %c0_i32_0, %c0_i32_1 : i32, i32, i32
  }
  func.func @transform_5(%arg0: i32) -> (i32, i32, i32) {
    %c0_i32 = arith.constant 0 : i32
    %c0_i32_0 = arith.constant 0 : i32
    %c0_i32_1 = arith.constant 0 : i32
    %c0_i32_2 = arith.constant 0 : i32
    return %c0_i32, %c0_i32_0, %c0_i32_1 : i32, i32, i32
  }
  func.func @transform_6(%arg0: i32) -> (i32, i32, i32) {
    %c0_i32 = arith.constant 0 : i32
    %c0_i32_0 = arith.constant 0 : i32
    %c0_i32_1 = arith.constant 0 : i32
    %c0_i32_2 = arith.constant 0 : i32
    return %c0_i32, %c0_i32_0, %c0_i32_1 : i32, i32, i32
  }
  func.func @transform_7(%arg0: i32) -> (i32, i32, i32) {
    %c0_i32 = arith.constant 0 : i32
    %c0_i32_0 = arith.constant 0 : i32
    %c0_i32_1 = arith.constant 0 : i32
    %c0_i32_2 = arith.constant 0 : i32
    return %c0_i32, %c0_i32_0, %c0_i32_1 : i32, i32, i32
  }
  func.func @transform_8(%arg0: i32) -> (i32, i32, i32) {
    %c0_i32 = arith.constant 0 : i32
    %c0_i32_0 = arith.constant 0 : i32
    %c0_i32_1 = arith.constant 0 : i32
    %c0_i32_2 = arith.constant 0 : i32
    return %c0_i32, %c0_i32_0, %c0_i32_1 : i32, i32, i32
  }
  func.func @transform_9(%arg0: i32) -> (i32, i32) {
    %c0_i32 = arith.constant 0 : i32
    %c0_i32_0 = arith.constant 0 : i32
    %c0_i32_1 = arith.constant 0 : i32
    return %c0_i32, %c0_i32_0 : i32, i32
  }
  func.func @transform_10(%arg0: i32) -> (i32, i32) {
    %c0_i32 = arith.constant 0 : i32
    %c0_i32_0 = arith.constant 0 : i32
    %c0_i32_1 = arith.constant 0 : i32
    return %c0_i32, %c0_i32_0 : i32, i32
  }
  func.func @transform_11(%arg0: i32) -> (i32, i32) {
    %c0_i32 = arith.constant 0 : i32
    %c0_i32_0 = arith.constant 0 : i32
    %c0_i32_1 = arith.constant 0 : i32
    return %c0_i32, %c0_i32_0 : i32, i32
  }
  func.func @transform_12(%arg0: i32) -> (i32, i32) {
    %c0_i32 = arith.constant 0 : i32
    %c0_i32_0 = arith.constant 0 : i32
    %c0_i32_1 = arith.constant 0 : i32
    return %c0_i32, %c0_i32_0 : i32, i32
  }
  func.func @transform_13(%arg0: i32) -> (i32, i32) {
    %c0_i32 = arith.constant 0 : i32
    %c0_i32_0 = arith.constant 0 : i32
    %c0_i32_1 = arith.constant 0 : i32
    return %c0_i32, %c0_i32_0 : i32, i32
  }
  func.func @transform_14(%arg0: i32) -> (i32, i32) {
    %c0_i32 = arith.constant 0 : i32
    %c0_i32_0 = arith.constant 0 : i32
    %c0_i32_1 = arith.constant 0 : i32
    return %c0_i32, %c0_i32_0 : i32, i32
  }
  func.func @transform_15(%arg0: i32) -> (i32, i32) {
    %c0_i32 = arith.constant 0 : i32
    %c0_i32_0 = arith.constant 0 : i32
    %c0_i32_1 = arith.constant 0 : i32
    return %c0_i32, %c0_i32_0 : i32, i32
  }
  func.func @transform_16(%arg0: i32) -> (i32, i32) {
    %c0_i32 = arith.constant 0 : i32
    %c0_i32_0 = arith.constant 0 : i32
    %c0_i32_1 = arith.constant 0 : i32
    return %c0_i32, %c0_i32_0 : i32, i32
  }
  func.func @transform_17(%arg0: i32) -> (i32, i32) {
    %c0_i32 = arith.constant 0 : i32
    %c0_i32_0 = arith.constant 0 : i32
    %c0_i32_1 = arith.constant 0 : i32
    return %c0_i32, %c0_i32_0 : i32, i32
  }
  func.func @transform_18(%arg0: i32) -> (i32, i32) {
    %c0_i32 = arith.constant 0 : i32
    %c0_i32_0 = arith.constant 0 : i32
    %c0_i32_1 = arith.constant 0 : i32
    return %c0_i32, %c0_i32_0 : i32, i32
  }
  func.func @transform_19(%arg0: i32) -> (i32, i32) {
    %c0_i32 = arith.constant 0 : i32
    %c0_i32_0 = arith.constant 0 : i32
    %c0_i32_1 = arith.constant 0 : i32
    return %c0_i32, %c0_i32_0 : i32, i32
  }
  func.func @transform_20(%arg0: i32) -> (i32, i32, i32) {
    %c0_i32 = arith.constant 0 : i32
    %c0_i32_0 = arith.constant 0 : i32
    %c0_i32_1 = arith.constant 0 : i32
    return %arg0, %c0_i32, %c0_i32_0 : i32, i32, i32
  }
}

</mosaic_0001>

<llo_original>
// kernel: tpu_custom_call.1
$region0: #{tpu_custom_call.1}
  #allocation0 [shape = 'u32[]', space=smem, size = 0x4, offset = 0x4, fixed_abs, tag = 'smem constant byte address 0x4 - core index']
  #allocation1 [shape = 'u32[144,128]{1,0:T(1,128)}', space=vmem, size = 0x12000, scoped, tag = 'internal scratch']
  %s0 = inlined_call_operand.hbm [shape: f32[2,16,128], index: 0, kind: input, shape index: {}]
  %s1 = inlined_call_operand.vmem [shape: f32[2,1,16], index: 1, kind: input, shape index: {}]
  %s2 = inlined_call_operand.vmem [shape: bf16[2,128,64], index: 2, kind: input, shape index: {}]
  %s3 = inlined_call_operand.hbm [shape: f32[2,1,64], index: 3, kind: input, shape index: {}]
  %s4 = inlined_call_operand.vmem [shape: bf16[2,128,64], index: 4, kind: input, shape index: {}]
  %s5 = inlined_call_operand.vmem [shape: f32[2,1,64], index: 5, kind: input, shape index: {}]
  %s6 = inlined_call_operand.vmem [shape: bf16[2,128,64], index: 6, kind: input, shape index: {}]
  %s7 = inlined_call_operand.vmem [shape: f32[2,1,64], index: 7, kind: input, shape index: {}]
  %s8 = inlined_call_operand.hbm [shape: bf16[2,64,128], index: 8, kind: input, shape index: {}]
  %s9 = inlined_call_operand.vmem [shape: f32[1,128], index: 9, kind: input, shape index: {}]
  %s10 = inlined_call_operand.vmem [shape: f32[1,128], index: 10, kind: input, shape index: {}]
  %s11 = inlined_call_operand.vmem [shape: f32[1,128], index: 11, kind: input, shape index: {}]
  %s12 = inlined_call_operand.vmem [shape: bf16[128,512], index: 12, kind: input, shape index: {}]
  %s13 = inlined_call_operand.vmem [shape: f32[1,512], index: 13, kind: input, shape index: {}]
  %s14 = inlined_call_operand.vmem [shape: bf16[512,128], index: 14, kind: input, shape index: {}]
  %s15 = inlined_call_operand.vmem [shape: f32[1,128], index: 15, kind: input, shape index: {}]
  %s16 = inlined_call_operand.vmem [shape: f32[1,128], index: 16, kind: input, shape index: {}]
  %s17 = inlined_call_operand.vmem [shape: f32[1,128], index: 17, kind: input, shape index: {}]
  %s18 = inlined_call_operand.vmem [shape: f32[1,128], index: 18, kind: input, shape index: {}]
  %s19 = inlined_call_operand.vmem [shape: f32[1,128], index: 19, kind: input, shape index: {}]
  %s20 = inlined_call_operand.hbm [shape: f32[2,16,128], index: 20, kind: output, shape index: {}]
  %s21 = sld [smem:[#allocation0]]
  $region125: #{tpu_custom_call.1} parent=0
    _
  %s23 = ssub.s32 1, %s21
  %s24 = scalar_select 0, %s23, %s21
  $region1: #{tpu_custom_call.1} parent=0
    #allocation2 [shape = 'u8[16384]{0}', space=vmem, size = 0x4000, scoped, tag = 'input window, operand 0']
    #allocation3 [shape = 's32[2]{0}', space=sflag, size = 0x8, scoped, tag = 'scoped memory for tpu_custom_call.1']
    #allocation4 [shape = 's32[2]{0}', space=sflag, size = 0x8, scoped, tag = 'scoped memory for tpu_custom_call.1']
    #allocation5 [shape = 'u8[1024]{0}', space=vmem, size = 0x400, scoped, tag = 'input window, operand 3, single buffered']
    #allocation6 [shape = 's32[1]{0}', space=sflag, size = 0x4, scoped, tag = 'scoped memory for tpu_custom_call.1']
    #allocation7 [shape = 'u8[32768]{0}', space=vmem, size = 0x8000, scoped, tag = 'input window, operand 8, single buffered']
    #allocation8 [shape = 'u8[16384]{0}', space=vmem, size = 0x4000, scoped, tag = 'output window, operand 0']
    %25 = vsyncpa [#allocation3], 0
    %s26 = scalar_lea.sflag [#allocation3], 1
    %27 = vsyncpa %s26, 0
    %28 = vsyncpa [#allocation6], 0
    %29 = vsyncpa [#allocation4], 0
    %s30 = scalar_lea.sflag [#allocation4], 1
    %31 = vsyncpa %s30, 0
    loop: start=0, step=1, limit=4
    $region2: #{tpu_custom_call.1} parent=1 // loop_pre_header
      _
    $region3: #{tpu_custom_call.1} parent=1 // loop_header
      %s33 = sphi 0, %s37
      %p34 = scmp.ge.s32.totalorder %s33, 4
      %s43 = sphi 0, %s45
      %s46 = sphi 0, %s43
      %s47 = sphi 0, %s46
      %s63 = sphi 0, %s47
      %s69 = sphi 0, %s71
      %s72 = sphi 0, %s69
      %s73 = sphi 0, %s72
      %s89 = sphi 0, %s73
      %s93 = sphi 0, %s93
      %s95 = sphi 0, %s93
      %s96 = sphi 0, %s95
      %s110 = sphi 0, %s96
      %s114 = sphi 0, %s114
      %s116 = sphi 0, %s114
      %s117 = sphi 0, %s116
      %s131 = sphi 0, %s117
      %s135 = sphi 0, %s135
      %s137 = sphi 0, %s135
      %s138 = sphi 0, %s137
      %s152 = sphi 0, %s138
      %s156 = sphi 0, %s156
      %s158 = sphi 0, %s156
      %s159 = sphi 0, %s158
      %s173 = sphi 0, %s159
      %s177 = sphi 0, %s177
      %s179 = sphi 0, %s177
      %s180 = sphi 0, %s179
      %s194 = sphi 0, %s180
      %s198 = sphi 0, %s198
      %s200 = sphi 0, %s198
      %s201 = sphi 0, %s200
      %s215 = sphi 0, %s201
      %s219 = sphi 0, %s219
      %s221 = sphi 0, %s219
      %s222 = sphi 0, %s221
      %s236 = sphi 0, %s222
      %s240 = sphi 0, %s240
      %s242 = sphi 0, %s240
      %s243 = sphi 0, %s242
      %s257 = sphi 0, %s243
      %s261 = sphi 0, %s261
      %s263 = sphi 0, %s261
      %s264 = sphi 0, %s263
      %s278 = sphi 0, %s264
      %s282 = sphi 0, %s282
      %s284 = sphi 0, %s282
      %s285 = sphi 0, %s284
      %s299 = sphi 0, %s285
      %s303 = sphi 0, %s303
      %s305 = sphi 0, %s303
      %s306 = sphi 0, %s305
      %s320 = sphi 0, %s306
      %s324 = sphi 0, %s324
      %s326 = sphi 0, %s324
      %s327 = sphi 0, %s326
      %s341 = sphi 0, %s327
      %s345 = sphi 0, %s345
      %s347 = sphi 0, %s345
      %s348 = sphi 0, %s347
      %s362 = sphi 0, %s348
      %s366 = sphi 0, %s366
      %s368 = sphi 0, %s366
      %s369 = sphi 0, %s368
      %s383 = sphi 0, %s369
      %s387 = sphi 0, %s387
      %s389 = sphi 0, %s387
      %s390 = sphi 0, %s389
      %s404 = sphi 0, %s390
      %s408 = sphi 0, %s408
      %s410 = sphi 0, %s408
      %s411 = sphi 0, %s410
      %s425 = sphi 0, %s411
      %s429 = sphi 0, %s429
      %s431 = sphi 0, %s429
      %s432 = sphi 0, %s431
      %s446 = sphi 0, %s432
      %s450 = sphi 0, %s450
      %s452 = sphi 0, %s450
      %s453 = sphi 0, %s452
      %s467 = sphi 0, %s453
      %s473 = sphi 0, %s475
      %s476 = sphi 0, %s473
      %s477 = sphi 0, %s476
      %s493 = sphi 0, %s477
    $region4: #{tpu_custom_call.1} parent=1 // loop_header_branch
      %36 = sbr.rel (%p34) target = $region8
    $region5: #{tpu_custom_call.1} parent=1 // loop_body
      %s38 = ssub.s32 %s33, 1
      %s39 = ssub.s32 %s33, 2
      %s40 = sadd.s32 %s33, 1
      %s41 = ssub.s32 %s33, %s40
      %p42 = scmp.eq.s32.totalorder %s41, 0
      %s44 = sadd.s32 %s43, 1
      %s45 = scalar_select %p42, %s43, %s44
      %p48 = pneg %p42
      %p49 = scmp.eq.s32.totalorder %s33, 1
      %p50 = por %p48, %p49
      %p51 = scmp.ne.s32.totalorder %s43, %s46
      %p52 = scmp.eq.s32.totalorder %s33, 0
      %p53 = por %p51, %p52
      %p54 = scmp.ne.s32.totalorder %s43, %s46
      %p55 = scmp.eq.s32.totalorder %s38, 1
      %p56 = por %p54, %p55
      %p57 = scmp.ne.s32.totalorder %s46, %s47
      %p58 = scmp.eq.s32.totalorder %s38, 0
      %p59 = por %p57, %p58
      %p60 = scmp.ne.s32.totalorder %s46, %s47
      %p61 = scmp.eq.s32.totalorder %s39, 1
      %p62 = por %p60, %p61
      %p64 = scmp.ne.s32.totalorder %s47, %s63
      %p65 = scmp.eq.s32.totalorder %s39, 0
      %p66 = por %p64, %p65
      %s67 = ssub.s32 %s33, %s40
      %p68 = scmp.eq.s32.totalorder %s67, 0
      %s70 = sadd.s32 %s69, 1
      %s71 = scalar_select %p68, %s69, %s70
      %p74 = pneg %p68
      %p75 = scmp.eq.s32.totalorder %s33, 1
      %p76 = por %p74, %p75
      %p77 = scmp.ne.s32.totalorder %s69, %s72
      %p78 = scmp.eq.s32.totalorder %s33, 0
      %p79 = por %p77, %p78
      %p80 = scmp.ne.s32.totalorder %s69, %s72
      %p81 = scmp.eq.s32.totalorder %s38, 1
      %p82 = por %p80, %p81
      %p83 = scmp.ne.s32.totalorder %s72, %s73
      %p84 = scmp.eq.s32.totalorder %s38, 0
      %p85 = por %p83, %p84
      %p86 = scmp.ne.s32.totalorder %s72, %s73
      %p87 = scmp.eq.s32.totalorder %s39, 1
      %p88 = por %p86, %p87
      %p90 = scmp.ne.s32.totalorder %s73, %s89
      %p91 = scmp.eq.s32.totalorder %s39, 0
      %p92 = por %p90, %p91
      %s94 = sadd.s32 %s93, 1
      %p97 = scmp.eq.s32.totalorder %s33, 1
      %p98 = scmp.ne.s32.totalorder %s93, %s95
      %p99 = scmp.eq.s32.totalorder %s33, 0
      %p100 = por %p98, %p99
      %p101 = scmp.ne.s32.totalorder %s93, %s95
      %p102 = scmp.eq.s32.totalorder %s38, 1
      %p103 = por %p101, %p102
      %p104 = scmp.ne.s32.totalorder %s95, %s96
      %p105 = scmp.eq.s32.totalorder %s38, 0
      %p106 = por %p104, %p105
      %p107 = scmp.ne.s32.totalorder %s95, %s96
      %p108 = scmp.eq.s32.totalorder %s39, 1
      %p109 = por %p107, %p108
      %p111 = scmp.ne.s32.totalorder %s96, %s110
      %p112 = scmp.eq.s32.totalorder %s39, 0
      %p113 = por %p111, %p112
      %s115 = sadd.s32 %s114, 1
      %p118 = scmp.eq.s32.totalorder %s33, 1
      %p119 = scmp.ne.s32.totalorder %s114, %s116
      %p120 = scmp.eq.s32.totalorder %s33, 0
      %p121 = por %p119, %p120
      %p122 = scmp.ne.s32.totalorder %s114, %s116
      %p123 = scmp.eq.s32.totalorder %s38, 1
      %p124 = por %p122, %p123
      %p125 = scmp.ne.s32.totalorder %s116, %s117
      %p126 = scmp.eq.s32.totalorder %s38, 0
      %p127 = por %p125, %p126
      %p128 = scmp.ne.s32.totalorder %s116, %s117
      %p129 = scmp.eq.s32.totalorder %s39, 1
      %p130 = por %p128, %p129
      %p132 = scmp.ne.s32.totalorder %s117, %s131
      %p133 = scmp.eq.s32.totalorder %s39, 0
      %p134 = por %p132, %p133
      %s136 = sadd.s32 %s135, 1
      %p139 = scmp.eq.s32.totalorder %s33, 1
      %p140 = scmp.ne.s32.totalorder %s135, %s137
      %p141 = scmp.eq.s32.totalorder %s33, 0
      %p142 = por %p140, %p141
      %p143 = scmp.ne.s32.totalorder %s135, %s137
      %p144 = scmp.eq.s32.totalorder %s38, 1
      %p145 = por %p143, %p144
      %p146 = scmp.ne.s32.totalorder %s137, %s138
      %p147 = scmp.eq.s32.totalorder %s38, 0
      %p148 = por %p146, %p147
      %p149 = scmp.ne.s32.totalorder %s137, %s138
      %p150 = scmp.eq.s32.totalorder %s39, 1
      %p151 = por %p149, %p150
      %p153 = scmp.ne.s32.totalorder %s138, %s152
      %p154 = scmp.eq.s32.totalorder %s39, 0
      %p155 = por %p153, %p154
      %s157 = sadd.s32 %s156, 1
      %p160 = scmp.eq.s32.totalorder %s33, 1
      %p161 = scmp.ne.s32.totalorder %s156, %s158
      %p162 = scmp.eq.s32.totalorder %s33, 0
      %p163 = por %p161, %p162
      %p164 = scmp.ne.s32.totalorder %s156, %s158
      %p165 = scmp.eq.s32.totalorder %s38, 1
      %p166 = por %p164, %p165
      %p167 = scmp.ne.s32.totalorder %s158, %s159
      %p168 = scmp.eq.s32.totalorder %s38, 0
      %p169 = por %p167, %p168
      %p170 = scmp.ne.s32.totalorder %s158, %s159
      %p171 = scmp.eq.s32.totalorder %s39, 1
      %p172 = por %p170, %p171
      %p174 = scmp.ne.s32.totalorder %s159, %s173
      %p175 = scmp.eq.s32.totalorder %s39, 0
      %p176 = por %p174, %p175
      %s178 = sadd.s32 %s177, 1
      %p181 = scmp.eq.s32.totalorder %s33, 1
      %p182 = scmp.ne.s32.totalorder %s177, %s179
      %p183 = scmp.eq.s32.totalorder %s33, 0
      %p184 = por %p182, %p183
      %p185 = scmp.ne.s32.totalorder %s177, %s179
      %p186 = scmp.eq.s32.totalorder %s38, 1
      %p187 = por %p185, %p186
      %p188 = scmp.ne.s32.totalorder %s179, %s180
      %p189 = scmp.eq.s32.totalorder %s38, 0
      %p190 = por %p188, %p189
      %p191 = scmp.ne.s32.totalorder %s179, %s180
      %p192 = scmp.eq.s32.totalorder %s39, 1
      %p193 = por %p191, %p192
      %p195 = scmp.ne.s32.totalorder %s180, %s194
      %p196 = scmp.eq.s32.totalorder %s39, 0
      %p197 = por %p195, %p196
      %s199 = sadd.s32 %s198, 1
      %p202 = scmp.eq.s32.totalorder %s33, 1
      %p203 = scmp.ne.s32.totalorder %s198, %s200
      %p204 = scmp.eq.s32.totalorder %s33, 0
      %p205 = por %p203, %p204
      %p206 = scmp.ne.s32.totalorder %s198, %s200
      %p207 = scmp.eq.s32.totalorder %s38, 1
      %p208 = por %p206, %p207
      %p209 = scmp.ne.s32.totalorder %s200, %s201
      %p210 = scmp.eq.s32.totalorder %s38, 0
      %p211 = por %p209, %p210
      %p212 = scmp.ne.s32.totalorder %s200, %s201
      %p213 = scmp.eq.s32.totalorder %s39, 1
      %p214 = por %p212, %p213
      %p216 = scmp.ne.s32.totalorder %s201, %s215
      %p217 = scmp.eq.s32.totalorder %s39, 0
      %p218 = por %p216, %p217
      %s220 = sadd.s32 %s219, 1
      %p223 = scmp.eq.s32.totalorder %s33, 1
      %p224 = scmp.ne.s32.totalorder %s219, %s221
      %p225 = scmp.eq.s32.totalorder %s33, 0
      %p226 = por %p224, %p225
      %p227 = scmp.ne.s32.totalorder %s219, %s221
      %p228 = scmp.eq.s32.totalorder %s38, 1
      %p229 = por %p227, %p228
      %p230 = scmp.ne.s32.totalorder %s221, %s222
      %p231 = scmp.eq.s32.totalorder %s38, 0
      %p232 = por %p230, %p231
      %p233 = scmp.ne.s32.totalorder %s221, %s222
      %p234 = scmp.eq.s32.totalorder %s39, 1
      %p235 = por %p233, %p234
      %p237 = scmp.ne.s32.totalorder %s222, %s236
      %p238 = scmp.eq.s32.totalorder %s39, 0
      %p239 = por %p237, %p238
      %s241 = sadd.s32 %s240, 1
      %p244 = scmp.eq.s32.totalorder %s33, 1
      %p245 = scmp.ne.s32.totalorder %s240, %s242
      %p246 = scmp.eq.s32.totalorder %s33, 0
      %p247 = por %p245, %p246
      %p248 = scmp.ne.s32.totalorder %s240, %s242
      %p249 = scmp.eq.s32.totalorder %s38, 1
      %p250 = por %p248, %p249
      %p251 = scmp.ne.s32.totalorder %s242, %s243
      %p252 = scmp.eq.s32.totalorder %s38, 0
      %p253 = por %p251, %p252
      %p254 = scmp.ne.s32.totalorder %s242, %s243
      %p255 = scmp.eq.s32.totalorder %s39, 1
      %p256 = por %p254, %p255
      %p258 = scmp.ne.s32.totalorder %s243, %s257
      %p259 = scmp.eq.s32.totalorder %s39, 0
      %p260 = por %p258, %p259
      %s262 = sadd.s32 %s261, 1
      %p265 = scmp.eq.s32.totalorder %s33, 1
      %p266 = scmp.ne.s32.totalorder %s261, %s263
      %p267 = scmp.eq.s32.totalorder %s33, 0
      %p268 = por %p266, %p267
      %p269 = scmp.ne.s32.totalorder %s261, %s263
      %p270 = scmp.eq.s32.totalorder %s38, 1
      %p271 = por %p269, %p270
      %p272 = scmp.ne.s32.totalorder %s263, %s264
      %p273 = scmp.eq.s32.totalorder %s38, 0
      %p274 = por %p272, %p273
      %p275 = scmp.ne.s32.totalorder %s263, %s264
      %p276 = scmp.eq.s32.totalorder %s39, 1
      %p277 = por %p275, %p276
      %p279 = scmp.ne.s32.totalorder %s264, %s278
      %p280 = scmp.eq.s32.totalorder %s39, 0
      %p281 = por %p279, %p280
      %s283 = sadd.s32 %s282, 1
      %p286 = scmp.eq.s32.totalorder %s33, 1
      %p287 = scmp.ne.s32.totalorder %s282, %s284
      %p288 = scmp.eq.s32.totalorder %s33, 0
      %p289 = por %p287, %p288
      %p290 = scmp.ne.s32.totalorder %s282, %s284
      %p291 = scmp.eq.s32.totalorder %s38, 1
      %p292 = por %p290, %p291
      %p293 = scmp.ne.s32.totalorder %s284, %s285
      %p294 = scmp.eq.s32.totalorder %s38, 0
      %p295 = por %p293, %p294
      %p296 = scmp.ne.s32.totalorder %s284, %s285
      %p297 = scmp.eq.s32.totalorder %s39, 1
      %p298 = por %p296, %p297
      %p300 = scmp.ne.s32.totalorder %s285, %s299
      %p301 = scmp.eq.s32.totalorder %s39, 0
      %p302 = por %p300, %p301
      %s304 = sadd.s32 %s303, 1
      %p307 = scmp.eq.s32.totalorder %s33, 1
      %p308 = scmp.ne.s32.totalorder %s303, %s305
      %p309 = scmp.eq.s32.totalorder %s33, 0
      %p310 = por %p308, %p309
      %p311 = scmp.ne.s32.totalorder %s303, %s305
      %p312 = scmp.eq.s32.totalorder %s38, 1
      %p313 = por %p311, %p312
      %p314 = scmp.ne.s32.totalorder %s305, %s306
      %p315 = scmp.eq.s32.totalorder %s38, 0
      %p316 = por %p314, %p315
      %p317 = scmp.ne.s32.totalorder %s305, %s306
      %p318 = scmp.eq.s32.totalorder %s39, 1
      %p319 = por %p317, %p318
      %p321 = scmp.ne.s32.totalorder %s306, %s320
      %p322 = scmp.eq.s32.totalorder %s39, 0
      %p323 = por %p321, %p322
      %s325 = sadd.s32 %s324, 1
      %p328 = scmp.eq.s32.totalorder %s33, 1
      %p329 = scmp.ne.s32.totalorder %s324, %s326
      %p330 = scmp.eq.s32.totalorder %s33, 0
      %p331 = por %p329, %p330
      %p332 = scmp.ne.s32.totalorder %s324, %s326
      %p333 = scmp.eq.s32.totalorder %s38, 1
      %p334 = por %p332, %p333
      %p335 = scmp.ne.s32.totalorder %s326, %s327
      %p336 = scmp.eq.s32.totalorder %s38, 0
      %p337 = por %p335, %p336
      %p338 = scmp.ne.s32.totalorder %s326, %s327
      %p339 = scmp.eq.s32.totalorder %s39, 1
      %p340 = por %p338, %p339
      %p342 = scmp.ne.s32.totalorder %s327, %s341
      %p343 = scmp.eq.s32.totalorder %s39, 0
      %p344 = por %p342, %p343
      %s346 = sadd.s32 %s345, 1
      %p349 = scmp.eq.s32.totalorder %s33, 1
      %p350 = scmp.ne.s32.totalorder %s345, %s347
      %p351 = scmp.eq.s32.totalorder %s33, 0
      %p352 = por %p350, %p351
      %p353 = scmp.ne.s32.totalorder %s345, %s347
      %p354 = scmp.eq.s32.totalorder %s38, 1
      %p355 = por %p353, %p354
      %p356 = scmp.ne.s32.totalorder %s347, %s348
      %p357 = scmp.eq.s32.totalorder %s38, 0
      %p358 = por %p356, %p357
      %p359 = scmp.ne.s32.totalorder %s347, %s348
      %p360 = scmp.eq.s32.totalorder %s39, 1
      %p361 = por %p359, %p360
      %p363 = scmp.ne.s32.totalorder %s348, %s362
      %p364 = scmp.eq.s32.totalorder %s39, 0
      %p365 = por %p363, %p364
      %s367 = sadd.s32 %s366, 1
      %p370 = scmp.eq.s32.totalorder %s33, 1
      %p371 = scmp.ne.s32.totalorder %s366, %s368
      %p372 = scmp.eq.s32.totalorder %s33, 0
      %p373 = por %p371, %p372
      %p374 = scmp.ne.s32.totalorder %s366, %s368
      %p375 = scmp.eq.s32.totalorder %s38, 1
      %p376 = por %p374, %p375
      %p377 = scmp.ne.s32.totalorder %s368, %s369
      %p378 = scmp.eq.s32.totalorder %s38, 0
      %p379 = por %p377, %p378
      %p380 = scmp.ne.s32.totalorder %s368, %s369
      %p381 = scmp.eq.s32.totalorder %s39, 1
      %p382 = por %p380, %p381
      %p384 = scmp.ne.s32.totalorder %s369, %s383
      %p385 = scmp.eq.s32.totalorder %s39, 0
      %p386 = por %p384, %p385
      %s388 = sadd.s32 %s387, 1
      %p391 = scmp.eq.s32.totalorder %s33, 1
      %p392 = scmp.ne.s32.totalorder %s387, %s389
      %p393 = scmp.eq.s32.totalorder %s33, 0
      %p394 = por %p392, %p393
      %p395 = scmp.ne.s32.totalorder %s387, %s389
      %p396 = scmp.eq.s32.totalorder %s38, 1
      %p397 = por %p395, %p396
      %p398 = scmp.ne.s32.totalorder %s389, %s390
      %p399 = scmp.eq.s32.totalorder %s38, 0
      %p400 = por %p398, %p399
      %p401 = scmp.ne.s32.totalorder %s389, %s390
      %p402 = scmp.eq.s32.totalorder %s39, 1
      %p403 = por %p401, %p402
      %p405 = scmp.ne.s32.totalorder %s390, %s404
      %p406 = scmp.eq.s32.totalorder %s39, 0
      %p407 = por %p405, %p406
      %s409 = sadd.s32 %s408, 1
      %p412 = scmp.eq.s32.totalorder %s33, 1
      %p413 = scmp.ne.s32.totalorder %s408, %s410
      %p414 = scmp.eq.s32.totalorder %s33, 0
      %p415 = por %p413, %p414
      %p416 = scmp.ne.s32.totalorder %s408, %s410
      %p417 = scmp.eq.s32.totalorder %s38, 1
      %p418 = por %p416, %p417
      %p419 = scmp.ne.s32.totalorder %s410, %s411
      %p420 = scmp.eq.s32.totalorder %s38, 0
      %p421 = por %p419, %p420
      %p422 = scmp.ne.s32.totalorder %s410, %s411
      %p423 = scmp.eq.s32.totalorder %s39, 1
      %p424 = por %p422, %p423
      %p426 = scmp.ne.s32.totalorder %s411, %s425
      %p427 = scmp.eq.s32.totalorder %s39, 0
      %p428 = por %p426, %p427
      %s430 = sadd.s32 %s429, 1
      %p433 = scmp.eq.s32.totalorder %s33, 1
      %p434 = scmp.ne.s32.totalorder %s429, %s431
      %p435 = scmp.eq.s32.totalorder %s33, 0
      %p436 = por %p434, %p435
      %p437 = scmp.ne.s32.totalorder %s429, %s431
      %p438 = scmp.eq.s32.totalorder %s38, 1
      %p439 = por %p437, %p438
      %p440 = scmp.ne.s32.totalorder %s431, %s432
      %p441 = scmp.eq.s32.totalorder %s38, 0
      %p442 = por %p440, %p441
      %p443 = scmp.ne.s32.totalorder %s431, %s432
      %p444 = scmp.eq.s32.totalorder %s39, 1
      %p445 = por %p443, %p444
      %p447 = scmp.ne.s32.totalorder %s432, %s446
      %p448 = scmp.eq.s32.totalorder %s39, 0
      %p449 = por %p447, %p448
      %s451 = sadd.s32 %s450, 1
      %p454 = scmp.eq.s32.totalorder %s33, 1
      %p455 = scmp.ne.s32.totalorder %s450, %s452
      %p456 = scmp.eq.s32.totalorder %s33, 0
      %p457 = por %p455, %p456
      %p458 = scmp.ne.s32.totalorder %s450, %s452
      %p459 = scmp.eq.s32.totalorder %s38, 1
      %p460 = por %p458, %p459
      %p461 = scmp.ne.s32.totalorder %s452, %s453
      %p462 = scmp.eq.s32.totalorder %s38, 0
      %p463 = por %p461, %p462
      %p464 = scmp.ne.s32.totalorder %s452, %s453
      %p465 = scmp.eq.s32.totalorder %s39, 1
      %p466 = por %p464, %p465
      %p468 = scmp.ne.s32.totalorder %s453, %s467
      %p469 = scmp.eq.s32.totalorder %s39, 0
      %p470 = por %p468, %p469
      %s471 = ssub.s32 %s33, %s40
      %p472 = scmp.eq.s32.totalorder %s471, 0
      %s474 = sadd.s32 %s473, 1
      %s475 = scalar_select %p472, %s473, %s474
      %p478 = pneg %p472
      %p479 = scmp.eq.s32.totalorder %s33, 1
      %p480 = por %p478, %p479
      %p481 = scmp.ne.s32.totalorder %s473, %s476
      %p482 = scmp.eq.s32.totalorder %s33, 0
      %p483 = por %p481, %p482
      %p484 = scmp.ne.s32.totalorder %s473, %s476
      %p485 = scmp.eq.s32.totalorder %s38, 1
      %p486 = por %p484, %p485
      %p487 = scmp.ne.s32.totalorder %s476, %s477
      %p488 = scmp.eq.s32.totalorder %s38, 0
      %p489 = por %p487, %p488
      %p490 = scmp.ne.s32.totalorder %s476, %s477
      %p491 = scmp.eq.s32.totalorder %s39, 1
      %p492 = por %p490, %p491
      %p494 = scmp.ne.s32.totalorder %s477, %s493
      %p495 = scmp.eq.s32.totalorder %s39, 0
      %p496 = por %p494, %p495
      %p497 = scmp.le.s32.totalorder 1, %s33
      %p498 = scmp.lt.s32.totalorder %s33, 3
      %p499 = pnand %p497, %p498
      %p500 = pneg %p499
      // Predicated region
      $region9: #{tpu_custom_call.1} parent=5 // pred_check
        _
      $region10: #{tpu_custom_call.1} parent=5 // pred_check_branch
        %502 = sbr.rel (%p499) target = $region12
      $region11: #{tpu_custom_call.1} parent=5 // pred_region
        %s503 = ssub.s32 %s33, 1
        // Predicated region
        $region13: #{tpu_custom_call.1} parent=11 // pred_check
          %p504 = pneg %p106
        $region14: #{tpu_custom_call.1} parent=11 // pred_check_branch
          %506 = sbr.rel (%p504) target = $region16
        $region15: #{tpu_custom_call.1} parent=11 // pred_region
          _
        $region16: #{tpu_custom_call.1} parent=11 // pred_fallthru
          _
        // Predicated region
        $region17: #{tpu_custom_call.1} parent=11 // pred_check
          %p507 = pneg %p127
        $region18: #{tpu_custom_call.1} parent=11 // pred_check_branch
          %509 = sbr.rel (%p507) target = $region20
        $region19: #{tpu_custom_call.1} parent=11 // pred_region
          %s511 = ssub.s32 32, 32
          %512 = vsyncadd [#allocation6], %s511
          %s513 = sshll.u32 [#allocation5], 4
          %s514 = int_to_ptr.vmem [resolvable:$true] %s513
          %519 = dma.hbm_to_vmem [thread:$0]  %s3, 32, %s514, [#allocation6], 16, 16, 1
        $region20: #{tpu_custom_call.1} parent=11 // pred_fallthru
          _
        // Predicated region
        $region21: #{tpu_custom_call.1} parent=11 // pred_check
          %p520 = pneg %p148
        $region22: #{tpu_custom_call.1} parent=11 // pred_check_branch
          %522 = sbr.rel (%p520) target = $region24
        $region23: #{tpu_custom_call.1} parent=11 // pred_region
          _
        $region24: #{tpu_custom_call.1} parent=11 // pred_fallthru
          _
        // Predicated region
        $region25: #{tpu_custom_call.1} parent=11 // pred_check
          %p523 = pneg %p169
        $region26: #{tpu_custom_call.1} parent=11 // pred_check_branch
          %525 = sbr.rel (%p523) target = $region28
        $region27: #{tpu_custom_call.1} parent=11 // pred_region
          _
        $region28: #{tpu_custom_call.1} parent=11 // pred_fallthru
          _
        // Predicated region
        $region29: #{tpu_custom_call.1} parent=11 // pred_check
          %p526 = pneg %p190
        $region30: #{tpu_custom_call.1} parent=11 // pred_check_branch
          %528 = sbr.rel (%p526) target = $region32
        $region31: #{tpu_custom_call.1} parent=11 // pred_region
          _
        $region32: #{tpu_custom_call.1} parent=11 // pred_fallthru
          _
        // Predicated region
        $region33: #{tpu_custom_call.1} parent=11 // pred_check
          %p529 = pneg %p211
        $region34: #{tpu_custom_call.1} parent=11 // pred_check_branch
          %531 = sbr.rel (%p529) target = $region36
        $region35: #{tpu_custom_call.1} parent=11 // pred_region
          _
        $region36: #{tpu_custom_call.1} parent=11 // pred_fallthru
          _
        // Predicated region
        $region37: #{tpu_custom_call.1} parent=11 // pred_check
          %p532 = pneg %p232
        $region38: #{tpu_custom_call.1} parent=11 // pred_check_branch
          %534 = sbr.rel (%p532) target = $region40
        $region39: #{tpu_custom_call.1} parent=11 // pred_region
          %s536 = ssub.s32 1024, 1024
          %537 = vsyncadd [#allocation6], %s536
          %s538 = sshll.u32 [#allocation7], 4
          %s539 = int_to_ptr.vmem [resolvable:$true] %s538
          %544 = dma.hbm_to_vmem [thread:$0]  %s8, 1024, %s539, [#allocation6], 64, 64, 4
        $region40: #{tpu_custom_call.1} parent=11 // pred_fallthru
          _
        // Predicated region
        $region41: #{tpu_custom_call.1} parent=11 // pred_check
          %p545 = pneg %p253
        $region42: #{tpu_custom_call.1} parent=11 // pred_check_branch
          %547 = sbr.rel (%p545) target = $region44
        $region43: #{tpu_custom_call.1} parent=11 // pred_region
          _
        $region44: #{tpu_custom_call.1} parent=11 // pred_fallthru
          _
        // Predicated region
        $region45: #{tpu_custom_call.1} parent=11 // pred_check
          %p548 = pneg %p274
        $region46: #{tpu_custom_call.1} parent=11 // pred_check_branch
          %550 = sbr.rel (%p548) target = $region48
        $region47: #{tpu_custom_call.1} parent=11 // pred_region
          _
        $region48: #{tpu_custom_call.1} parent=11 // pred_fallthru
          _
        // Predicated region
        $region49: #{tpu_custom_call.1} parent=11 // pred_check
          %p551 = pneg %p295
        $region50: #{tpu_custom_call.1} parent=11 // pred_check_branch
          %553 = sbr.rel (%p551) target = $region52
        $region51: #{tpu_custom_call.1} parent=11 // pred_region
          _
        $region52: #{tpu_custom_call.1} parent=11 // pred_fallthru
          _
        // Predicated region
        $region53: #{tpu_custom_call.1} parent=11 // pred_check
          %p554 = pneg %p316
        $region54: #{tpu_custom_call.1} parent=11 // pred_check_branch
          %556 = sbr.rel (%p554) target = $region56
        $region55: #{tpu_custom_call.1} parent=11 // pred_region
          _
        $region56: #{tpu_custom_call.1} parent=11 // pred_fallthru
          _
        // Predicated region
        $region57: #{tpu_custom_call.1} parent=11 // pred_check
          %p557 = pneg %p337
        $region58: #{tpu_custom_call.1} parent=11 // pred_check_branch
          %559 = sbr.rel (%p557) target = $region60
        $region59: #{tpu_custom_call.1} parent=11 // pred_region
          _
        $region60: #{tpu_custom_call.1} parent=11 // pred_fallthru
          _
        // Predicated region
        $region61: #{tpu_custom_call.1} parent=11 // pred_check
          %p560 = pneg %p358
        $region62: #{tpu_custom_call.1} parent=11 // pred_check_branch
          %562 = sbr.rel (%p560) target = $region64
        $region63: #{tpu_custom_call.1} parent=11 // pred_region
          _
        $region64: #{tpu_custom_call.1} parent=11 // pred_fallthru
          _
        // Predicated region
        $region65: #{tpu_custom_call.1} parent=11 // pred_check
          %p563 = pneg %p379
        $region66: #{tpu_custom_call.1} parent=11 // pred_check_branch
          %565 = sbr.rel (%p563) target = $region68
        $region67: #{tpu_custom_call.1} parent=11 // pred_region
          _
        $region68: #{tpu_custom_call.1} parent=11 // pred_fallthru
          _
        // Predicated region
        $region69: #{tpu_custom_call.1} parent=11 // pred_check
          %p566 = pneg %p400
        $region70: #{tpu_custom_call.1} parent=11 // pred_check_branch
          %568 = sbr.rel (%p566) target = $region72
        $region71: #{tpu_custom_call.1} parent=11 // pred_region
          _
        $region72: #{tpu_custom_call.1} parent=11 // pred_fallthru
          _
        // Predicated region
        $region73: #{tpu_custom_call.1} parent=11 // pred_check
          %p569 = pneg %p421
        $region74: #{tpu_custom_call.1} parent=11 // pred_check_branch
          %571 = sbr.rel (%p569) target = $region76
        $region75: #{tpu_custom_call.1} parent=11 // pred_region
          _
        $region76: #{tpu_custom_call.1} parent=11 // pred_fallthru
          _
        // Predicated region
        $region77: #{tpu_custom_call.1} parent=11 // pred_check
          %p572 = pneg %p442
        $region78: #{tpu_custom_call.1} parent=11 // pred_check_branch
          %574 = sbr.rel (%p572) target = $region80
        $region79: #{tpu_custom_call.1} parent=11 // pred_region
          _
        $region80: #{tpu_custom_call.1} parent=11 // pred_fallthru
          _
        // Predicated region
        $region81: #{tpu_custom_call.1} parent=11 // pred_check
          %p575 = pneg %p463
        $region82: #{tpu_custom_call.1} parent=11 // pred_check_branch
          %577 = sbr.rel (%p575) target = $region84
        $region83: #{tpu_custom_call.1} parent=11 // pred_region
          _
        $region84: #{tpu_custom_call.1} parent=11 // pred_fallthru
          _
      $region12: #{tpu_custom_call.1} parent=5 // pred_fallthru
        _
      %p578 = scmp.lt.s32.totalorder %s33, 2
      // Predicated region
      $region85: #{tpu_custom_call.1} parent=5 // pred_check
        %p579 = pneg %p578
      $region86: #{tpu_custom_call.1} parent=5 // pred_check_branch
        %581 = sbr.rel (%p579) target = $region88
      $region87: #{tpu_custom_call.1} parent=5 // pred_region
        // Predicated region
        $region89: #{tpu_custom_call.1} parent=87 // pred_check
          %p582 = pneg %p53
        $region90: #{tpu_custom_call.1} parent=87 // pred_check_branch
          %584 = sbr.rel (%p582) target = $region92
        $region91: #{tpu_custom_call.1} parent=87 // pred_region
          %s585 = sand.u32 %s43, 1
          %s586 = scalar_lea.sflag [#allocation3], %s585
          %s587 = sand.u32 %s43, 1
          %s588 = smul.addr %s587, 16
          %s589 = scalar_lea.vmem [#allocation2], %s588
          %s591 = ssub.s32 256, 256
          %592 = vsyncadd %s586, %s591
          %s593 = smul.addr %s33, 2
          %s594 = smul.addr %s593, 128
          %s595 = scalar_lea.hbm %s0, %s594
          %s596 = sshll.u32 %s589, 4
          %s597 = int_to_ptr.vmem [resolvable:$true] %s596
          %602 = dma.hbm_to_vmem [thread:$0]  %s595, 256, %s597, %s586, 128, 128, 8
        $region92: #{tpu_custom_call.1} parent=87 // pred_fallthru
          _
        // Predicated region
        $region93: #{tpu_custom_call.1} parent=87 // pred_check
          %p603 = pneg %p79
        $region94: #{tpu_custom_call.1} parent=87 // pred_check_branch
          %605 = sbr.rel (%p603) target = $region96
        $region95: #{tpu_custom_call.1} parent=87 // pred_region
          %p606 = scmp.lt.s32.totalorder %s33, 1
          %s607 = scalar_select %p606, %s33, 1
          %s608 = scalar_lea.vmem %s1, %s607
        $region96: #{tpu_custom_call.1} parent=87 // pred_fallthru
          _
      $region88: #{tpu_custom_call.1} parent=5 // pred_fallthru
        _
      %p609 = scmp.le.s32.totalorder 1, %s33
      %p610 = scmp.lt.s32.totalorder %s33, 3
      %p611 = pnand %p609, %p610
      %p612 = pneg %p611
      // Predicated region
      $region97: #{tpu_custom_call.1} parent=5 // pred_check
        _
      $region98: #{tpu_custom_call.1} parent=5 // pred_check_branch
        %614 = sbr.rel (%p611) target = $region100
      $region99: #{tpu_custom_call.1} parent=5 // pred_region
        %s615 = ssub.s32 %s33, 1
        %s616 = sand.u32 %s46, 1
        %s617 = scalar_lea.sflag [#allocation3], %s616
        %s618 = sand.u32 %s46, 1
        %s619 = smul.addr %s618, 16
        %s620 = scalar_lea.vmem [#allocation2], %s619
        // Predicated region
        $region101: #{tpu_custom_call.1} parent=99 // pred_check
          %p621 = pneg %p59
        $region102: #{tpu_custom_call.1} parent=99 // pred_check_branch
          %623 = sbr.rel (%p621) target = $region104
        $region103: #{tpu_custom_call.1} parent=99 // pred_region
          %624 = dma.done %s617, 256
        $region104: #{tpu_custom_call.1} parent=99 // pred_fallthru
          _
        // Predicated region
        $region105: #{tpu_custom_call.1} parent=99 // pred_check
          %p625 = pneg %p127
        $region106: #{tpu_custom_call.1} parent=99 // pred_check_branch
          %627 = sbr.rel (%p625) target = $region108
        $region107: #{tpu_custom_call.1} parent=99 // pred_region
          %628 = dma.done [#allocation6], 32
        $region108: #{tpu_custom_call.1} parent=99 // pred_fallthru
          _
        // Predicated region
        $region109: #{tpu_custom_call.1} parent=99 // pred_check
          %p629 = pneg %p232
        $region110: #{tpu_custom_call.1} parent=99 // pred_check_branch
          %631 = sbr.rel (%p629) target = $region112
        $region111: #{tpu_custom_call.1} parent=99 // pred_region
          %632 = dma.done [#allocation6], 1024
        $region112: #{tpu_custom_call.1} parent=99 // pred_fallthru
          _
        %s633 = sand.u32 %s46, 1
        %s634 = scalar_lea.sflag [#allocation3], %s633
        %s635 = sand.u32 %s46, 1
        %s636 = smul.addr %s635, 16
        %s637 = scalar_lea.vmem [#allocation2], %s636
        %p638 = pneg %p59
        %p639 = pneg %p56
        %p640 = scmp.lt.s32.totalorder %s38, 1
        %s641 = scalar_select %p640, %s38, 1
        %s642 = scalar_lea.vmem %s1, %s641
        %p643 = pneg %p85
        %p644 = pneg %p82
        %p645 = pneg %p106
        %p646 = pneg %p103
        %p647 = pneg %p127
        %p648 = pneg %p124
        %p649 = pneg %p148
        %p650 = pneg %p145
        %p651 = pneg %p169
        %p652 = pneg %p166
        %p653 = pneg %p190
        %p654 = pneg %p187
        %p655 = pneg %p211
        %p656 = pneg %p208
        %p657 = pneg %p232
        %p658 = pneg %p229
        %p659 = pneg %p253
        %p660 = pneg %p250
        %p661 = pneg %p274
        %p662 = pneg %p271
        %p663 = pneg %p295
        %p664 = pneg %p292
        %p665 = pneg %p316
        %p666 = pneg %p313
        %p667 = pneg %p337
        %p668 = pneg %p334
        %p669 = pneg %p358
        %p670 = pneg %p355
        %p671 = pneg %p379
        %p672 = pneg %p376
        %p673 = pneg %p400
        %p674 = pneg %p397
        %p675 = pneg %p421
        %p676 = pneg %p418
        %p677 = pneg %p442
        %p678 = pneg %p439
        %p679 = pneg %p463
        %p680 = pneg %p460
        %p681 = pneg %p489
        %p682 = pneg %p486
        %s683 = sand.u32 %s476, 1
        %s684 = scalar_lea.sflag [#allocation4], %s683
        %s685 = sand.u32 %s476, 1
        %s686 = smul.addr %s685, 16
        %s687 = scalar_lea.vmem [#allocation8], %s686
        %p688 = scmp.lt.s32.totalorder %s38, 1
        %s689 = scalar_select %p688, %s38, 1
        %s690 = scalar_lea.vmem %s1, %s689
        %v692 = vld [vmem:[%s620] sm:$0xff]
        %v693 = vld [vmem:[%s620 + $0x8] sm:$0xff]
        %v694 = vld [vmem:[%s18] sm:$0x1]
        %v695 = vld [vmem:[%s19] sm:$0x1]
        %696 = vadd.xlane.f32.xlu0 %v692
        %v697 = vpop.xlane.xlu0 %696
        %698 = vadd.xlane.f32.xlu0 %v693
        %v699 = vpop.xlane.xlu0 %698
        %v700 = vrcp.pop 128.0
        %v701 = vmul.f32 %v697, %v700
        %v702 = vmul.f32 %v699, %v700
        %v703 = vsub.f32 %v692, %v701
        %v704 = vsub.f32 %v693, %v702
        %v705 = vmul.f32 %v703, %v703
        %v706 = vmul.f32 %v704, %v704
        %707 = vadd.xlane.f32.xlu0 %v705
        %v708 = vpop.xlane.xlu0 %707
        %709 = vadd.xlane.f32.xlu0 %v706
        %v710 = vpop.xlane.xlu0 %709
        %v711 = vmul.f32 %v708, %v700
        %v712 = vmul.f32 %v710, %v700
        %v713 = vadd.f32 %v711, 1e-12
        %v714 = vadd.f32 %v712, 1e-12
        %v715 = vrsqrt.pop %v713
        %v716 = vrsqrt.pop %v714
        %v717 = vmul.f32 %v703, %v715
        %v718 = vmul.f32 %v704, %v716
        %v720 = vlaneseq
        %v721 = vshrl.u32 %v720, 7
        %v722 = vsub.s32 0, %v721
        %v723 = vrot.slane %v694, %v722
        %v725 = vmul.f32 %v717, %v723
        %v726 = vmul.f32 %v718, %v723
        %v728 = vlaneseq
        %v729 = vshrl.u32 %v728, 7
        %v730 = vsub.s32 0, %v729
        %v731 = vrot.slane %v695, %v730
        %v733 = vadd.f32 %v725, %v731
        %v734 = vadd.f32 %v726, %v731
        %v735 = vld [vmem:[%s690] sm:$0x1]
        %v736 = vpack.c.bf16 %v734, %v733
        %v737 = vld [vmem:[%s2] sm:$0xf]
        %v738 = vld [vmem:[%s2 + $0x4] sm:$0xf]
        %v739 = vld [vmem:[%s2 + $0x8] sm:$0xf]
        %v740 = vld [vmem:[%s2 + $0xc] sm:$0xf]
        %v741 = vld [vmem:[%s2 + $0x10] sm:$0xf]
        %v742 = vld [vmem:[%s2 + $0x14] sm:$0xf]
        %v743 = vld [vmem:[%s2 + $0x18] sm:$0xf]
        %v744 = vld [vmem:[%s2 + $0x1c] sm:$0xf]
        %v745 = vld [vmem:[%s2 + $0x20] sm:$0xf]
        %v746 = vld [vmem:[%s2 + $0x24] sm:$0xf]
        %v747 = vld [vmem:[%s2 + $0x28] sm:$0xf]
        %v748 = vld [vmem:[%s2 + $0x2c] sm:$0xf]
        %v749 = vld [vmem:[%s2 + $0x30] sm:$0xf]
        %v750 = vld [vmem:[%s2 + $0x34] sm:$0xf]
        %v751 = vld [vmem:[%s2 + $0x38] sm:$0xf]
        %v752 = vld [vmem:[%s2 + $0x3c] sm:$0xf]
        %v753 = vld [vmem:[#allocation5] sm:$0x1]
        %v755 = vlaneseq
        %v756 = vshrl.u32 %v755, 7
        %v757 = vsub.s32 0, %v756
        %v758 = vrot.slane %v753, %v757
        %v776 = vunpack.c.l.b16 %v737
        %v777 = vunpack.c.l.b16 %v738
        %v778 = vunpack.c.l.b16 %v739
        %v779 = vunpack.c.l.b16 %v740
        %v780 = vunpack.c.l.b16 %v741
        %v781 = vunpack.c.l.b16 %v742
        %v782 = vunpack.c.l.b16 %v743
        %v783 = vunpack.c.l.b16 %v744
        %v784 = vunpack.c.l.b16 %v745
        %v785 = vunpack.c.l.b16 %v746
        %v786 = vunpack.c.l.b16 %v747
        %v787 = vunpack.c.l.b16 %v748
        %v788 = vunpack.c.l.b16 %v749
        %v789 = vunpack.c.l.b16 %v750
        %v790 = vunpack.c.l.b16 %v751
        %v791 = vunpack.c.l.b16 %v752
        %v792 = vpack.c.b16 %v777, %v776
        %v793 = vpack.c.b16 %v779, %v778
        %v794 = vpack.c.b16 %v781, %v780
        %v795 = vpack.c.b16 %v783, %v782
        %v796 = vpack.c.b16 %v785, %v784
        %v797 = vpack.c.b16 %v787, %v786
        %v798 = vpack.c.b16 %v789, %v788
        %v799 = vpack.c.b16 %v791, %v790
        %808 = vmatprep.subr.bf16.mxu0 0
        %809 = vmatpush1.bf16.msra.mxu0 %v792
        %810 = vmatprep.subr.bf16.mxu0 0
        %811 = vmatpush1.bf16.msra.mxu0 %v793
        %812 = vmatprep.subr.bf16.mxu0 0
        %813 = vmatpush1.bf16.msra.mxu0 %v794
        %814 = vmatprep.subr.bf16.mxu0 0
        %815 = vmatpush1.bf16.msra.mxu0 %v795
        %816 = vmatprep.subr.bf16.mxu0 0
        %817 = vmatpush1.bf16.msra.mxu0 %v796
        %818 = vmatprep.subr.bf16.mxu0 0
        %819 = vmatpush1.bf16.msra.mxu0 %v797
        %820 = vmatprep.subr.bf16.mxu0 0
        %821 = vmatpush1.bf16.msra.mxu0 %v798
        %822 = vmatprep.subr.bf16.mxu0 0
        %823 = vmatpush1.bf16.msra.mxu0 %v799
        %824 = vmatprep.subr.bf16.mxu0 0
        %825 = vmatpush1.bf16.msra.mxu0 0
        %826 = vmatprep.subr.bf16.mxu0 0
        %827 = vmatpush1.bf16.msra.mxu0 0
        %828 = vmatprep.subr.bf16.mxu0 0
        %829 = vmatpush1.bf16.msra.mxu0 0
        %830 = vmatprep.subr.bf16.mxu0 0
        %831 = vmatpush1.bf16.msra.mxu0 0
        %832 = vmatprep.subr.bf16.mxu0 0
        %833 = vmatpush1.bf16.msra.mxu0 0
        %834 = vmatprep.subr.bf16.mxu0 0
        %835 = vmatpush1.bf16.msra.mxu0 0
        %836 = vmatprep.subr.bf16.mxu0 0
        %837 = vmatpush1.bf16.msra.mxu0 0
        %838 = vmatprep.subr.bf16.mxu0 0
        %839 = vmatpush1.bf16.msra.mxu0 0
        %840 = vmatprep.mubr.bf16.mxu0 0
        %841 = vmatmul.mubr.bf16.gmra.mrb[0].mxu0 %v736
        %v842 = vpop.f32.mrb[0].mxu0
        %v843 = vadd.f32 %v758, %v842
        %v844 = vpop.f32.mrb[0].mxu0
        %v845 = vpop.f32.mrb[0].mxu0
        %v846 = vadd.f32 %v758, %v845
        %v847 = vpop.f32.mrb[0].mxu0
        %848 = vdwg.mxu0
        %v849 = vmul.f32 %v843, 0.125
        %v850 = vmul.f32 %v846, 0.125
        %v851 = vld [vmem:[%s4] sm:$0xf]
        %v852 = vld [vmem:[%s4 + $0x4] sm:$0xf]
        %v853 = vld [vmem:[%s4 + $0x8] sm:$0xf]
        %v854 = vld [vmem:[%s4 + $0xc] sm:$0xf]
        %v855 = vld [vmem:[%s4 + $0x10] sm:$0xf]
        %v856 = vld [vmem:[%s4 + $0x14] sm:$0xf]
        %v857 = vld [vmem:[%s4 + $0x18] sm:$0xf]
        %v858 = vld [vmem:[%s4 + $0x1c] sm:$0xf]
        %v859 = vld [vmem:[%s4 + $0x20] sm:$0xf]
        %v860 = vld [vmem:[%s4 + $0x24] sm:$0xf]
        %v861 = vld [vmem:[%s4 + $0x28] sm:$0xf]
        %v862 = vld [vmem:[%s4 + $0x2c] sm:$0xf]
        %v863 = vld [vmem:[%s4 + $0x30] sm:$0xf]
        %v864 = vld [vmem:[%s4 + $0x34] sm:$0xf]
        %v865 = vld [vmem:[%s4 + $0x38] sm:$0xf]
        %v866 = vld [vmem:[%s4 + $0x3c] sm:$0xf]
        %v867 = vld [vmem:[%s5] sm:$0x1]
        %v869 = vlaneseq
        %v870 = vshrl.u32 %v869, 7
        %v871 = vsub.s32 0, %v870
        %v872 = vrot.slane %v867, %v871
        %v890 = vunpack.c.l.b16 %v851
        %v891 = vunpack.c.l.b16 %v852
        %v892 = vunpack.c.l.b16 %v853
        %v893 = vunpack.c.l.b16 %v854
        %v894 = vunpack.c.l.b16 %v855
        %v895 = vunpack.c.l.b16 %v856
        %v896 = vunpack.c.l.b16 %v857
        %v897 = vunpack.c.l.b16 %v858
        %v898 = vunpack.c.l.b16 %v859
        %v899 = vunpack.c.l.b16 %v860
        %v900 = vunpack.c.l.b16 %v861
        %v901 = vunpack.c.l.b16 %v862
        %v902 = vunpack.c.l.b16 %v863
        %v903 = vunpack.c.l.b16 %v864
        %v904 = vunpack.c.l.b16 %v865
        %v905 = vunpack.c.l.b16 %v866
        %v906 = vpack.c.b16 %v891, %v890
        %v907 = vpack.c.b16 %v893, %v892
        %v908 = vpack.c.b16 %v895, %v894
        %v909 = vpack.c.b16 %v897, %v896
        %v910 = vpack.c.b16 %v899, %v898
        %v911 = vpack.c.b16 %v901, %v900
        %v912 = vpack.c.b16 %v903, %v902
        %v913 = vpack.c.b16 %v905, %v904
        %922 = vmatprep.subr.bf16.mxu0 0
        %923 = vmatpush1.bf16.msra.mxu0 %v906
        %924 = vmatprep.subr.bf16.mxu0 0
        %925 = vmatpush1.bf16.msra.mxu0 %v907
        %926 = vmatprep.subr.bf16.mxu0 0
        %927 = vmatpush1.bf16.msra.mxu0 %v908
        %928 = vmatprep.subr.bf16.mxu0 0
        %929 = vmatpush1.bf16.msra.mxu0 %v909
        %930 = vmatprep.subr.bf16.mxu0 0
        %931 = vmatpush1.bf16.msra.mxu0 %v910
        %932 = vmatprep.subr.bf16.mxu0 0
        %933 = vmatpush1.bf16.msra.mxu0 %v911
        %934 = vmatprep.subr.bf16.mxu0 0
        %935 = vmatpush1.bf16.msra.mxu0 %v912
        %936 = vmatprep.subr.bf16.mxu0 0
        %937 = vmatpush1.bf16.msra.mxu0 %v913
        %938 = vmatprep.subr.bf16.mxu0 0
        %939 = vmatpush1.bf16.msra.mxu0 0
        %940 = vmatprep.subr.bf16.mxu0 0
        %941 = vmatpush1.bf16.msra.mxu0 0
        %942 = vmatprep.subr.bf16.mxu0 0
        %943 = vmatpush1.bf16.msra.mxu0 0
        %944 = vmatprep.subr.bf16.mxu0 0
        %945 = vmatpush1.bf16.msra.mxu0 0
        %946 = vmatprep.subr.bf16.mxu0 0
        %947 = vmatpush1.bf16.msra.mxu0 0
        %948 = vmatprep.subr.bf16.mxu0 0
        %949 = vmatpush1.bf16.msra.mxu0 0
        %950 = vmatprep.subr.bf16.mxu0 0
        %951 = vmatpush1.bf16.msra.mxu0 0
        %952 = vmatprep.subr.bf16.mxu0 0
        %953 = vmatpush1.bf16.msra.mxu0 0
        %954 = vmatprep.mubr.bf16.mxu0 0
        %955 = vmatmul.mubr.bf16.gmra.mrb[0].mxu0 %v736
        %v956 = vpop.f32.mrb[0].mxu0
        %v957 = vadd.f32 %v872, %v956
        %v958 = vpop.f32.mrb[0].mxu0
        %v959 = vpop.f32.mrb[0].mxu0
        %v960 = vadd.f32 %v872, %v959
        %v961 = vpop.f32.mrb[0].mxu0
        %962 = vdwg.mxu0
        %v963 = vld [vmem:[%s6] sm:$0xf]
        %v964 = vld [vmem:[%s6 + $0x4] sm:$0xf]
        %v965 = vld [vmem:[%s6 + $0x8] sm:$0xf]
        %v966 = vld [vmem:[%s6 + $0xc] sm:$0xf]
        %v967 = vld [vmem:[%s6 + $0x10] sm:$0xf]
        %v968 = vld [vmem:[%s6 + $0x14] sm:$0xf]
        %v969 = vld [vmem:[%s6 + $0x18] sm:$0xf]
        %v970 = vld [vmem:[%s6 + $0x1c] sm:$0xf]
        %v971 = vld [vmem:[%s6 + $0x20] sm:$0xf]
        %v972 = vld [vmem:[%s6 + $0x24] sm:$0xf]
        %v973 = vld [vmem:[%s6 + $0x28] sm:$0xf]
        %v974 = vld [vmem:[%s6 + $0x2c] sm:$0xf]
        %v975 = vld [vmem:[%s6 + $0x30] sm:$0xf]
        %v976 = vld [vmem:[%s6 + $0x34] sm:$0xf]
        %v977 = vld [vmem:[%s6 + $0x38] sm:$0xf]
        %v978 = vld [vmem:[%s6 + $0x3c] sm:$0xf]
        %v979 = vld [vmem:[%s7] sm:$0x1]
        %v981 = vlaneseq
        %v982 = vshrl.u32 %v981, 7
        %v983 = vsub.s32 0, %v982
        %v984 = vrot.slane %v979, %v983
        %v1002 = vunpack.c.l.b16 %v963
        %v1003 = vunpack.c.l.b16 %v964
        %v1004 = vunpack.c.l.b16 %v965
        %v1005 = vunpack.c.l.b16 %v966
        %v1006 = vunpack.c.l.b16 %v967
        %v1007 = vunpack.c.l.b16 %v968
        %v1008 = vunpack.c.l.b16 %v969
        %v1009 = vunpack.c.l.b16 %v970
        %v1010 = vunpack.c.l.b16 %v971
        %v1011 = vunpack.c.l.b16 %v972
        %v1012 = vunpack.c.l.b16 %v973
        %v1013 = vunpack.c.l.b16 %v974
        %v1014 = vunpack.c.l.b16 %v975
        %v1015 = vunpack.c.l.b16 %v976
        %v1016 = vunpack.c.l.b16 %v977
        %v1017 = vunpack.c.l.b16 %v978
        %v1018 = vpack.c.b16 %v1003, %v1002
        %v1019 = vpack.c.b16 %v1005, %v1004
        %v1020 = vpack.c.b16 %v1007, %v1006
        %v1021 = vpack.c.b16 %v1009, %v1008
        %v1022 = vpack.c.b16 %v1011, %v1010
        %v1023 = vpack.c.b16 %v1013, %v1012
        %v1024 = vpack.c.b16 %v1015, %v1014
        %v1025 = vpack.c.b16 %v1017, %v1016
        %1034 = vmatprep.subr.bf16.mxu0 0
        %1035 = vmatpush1.bf16.msra.mxu0 %v1018
        %1036 = vmatprep.subr.bf16.mxu0 0
        %1037 = vmatpush1.bf16.msra.mxu0 %v1019
        %1038 = vmatprep.subr.bf16.mxu0 0
        %1039 = vmatpush1.bf16.msra.mxu0 %v1020
        %1040 = vmatprep.subr.bf16.mxu0 0
        %1041 = vmatpush1.bf16.msra.mxu0 %v1021
        %1042 = vmatprep.subr.bf16.mxu0 0
        %1043 = vmatpush1.bf16.msra.mxu0 %v1022
        %1044 = vmatprep.subr.bf16.mxu0 0
        %1045 = vmatpush1.bf16.msra.mxu0 %v1023
        %1046 = vmatprep.subr.bf16.mxu0 0
        %1047 = vmatpush1.bf16.msra.mxu0 %v1024
        %1048 = vmatprep.subr.bf16.mxu0 0
        %1049 = vmatpush1.bf16.msra.mxu0 %v1025
        %1050 = vmatprep.subr.bf16.mxu0 0
        %1051 = vmatpush1.bf16.msra.mxu0 0
        %1052 = vmatprep.subr.bf16.mxu0 0
        %1053 = vmatpush1.bf16.msra.mxu0 0
        %1054 = vmatprep.subr.bf16.mxu0 0
        %1055 = vmatpush1.bf16.msra.mxu0 0
        %1056 = vmatprep.subr.bf16.mxu0 0
        %1057 = vmatpush1.bf16.msra.mxu0 0
        %1058 = vmatprep.subr.bf16.mxu0 0
        %1059 = vmatpush1.bf16.msra.mxu0 0
        %1060 = vmatprep.subr.bf16.mxu0 0
        %1061 = vmatpush1.bf16.msra.mxu0 0
        %1062 = vmatprep.subr.bf16.mxu0 0
        %1063 = vmatpush1.bf16.msra.mxu0 0
        %1064 = vmatprep.subr.bf16.mxu0 0
        %1065 = vmatpush1.bf16.msra.mxu0 0
        %1066 = vmatprep.mubr.bf16.mxu0 0
        %1067 = vmatmul.mubr.bf16.gmra.mrb[0].mxu0 %v736
        %v1068 = vpop.f32.mrb[0].mxu0
        %v1069 = vadd.f32 %v984, %v1068
        %v1070 = vpop.f32.mrb[0].mxu0
        %v1071 = vpop.f32.mrb[0].mxu0
        %v1072 = vadd.f32 %v984, %v1071
        %v1073 = vpop.f32.mrb[0].mxu0
        %1074 = vdwg.mxu0
        %v1075 = vpack.c.bf16 %v850, %v849
        %v1076 = vpack.c.bf16 %v960, %v957
        %v1078 = vlaneseq
        %v1079 = vshrl.u32 %v1078, 7
        %v1080 = vsub.s32 0, %v1079
        %v1081 = vrot.slane %v735, %v1080
        %vm1083 = vcmask 523264
        %v1085 = vsel %vm1083, %v1075, 0
        %v1088 = vsel %vm1083, %v1076, 0
        %1090 = vmatprep.subr.bf16.mxu0 0
        %1091 = vmatpush1.bf16.xpose.msra.mxu0 %v1088
        %1092 = vmatprep.subr.bf16.mxu0 0
        %1093 = vmatpush1.bf16.xpose.msra.mxu0 0
        %1094 = vmatprep.subr.bf16.mxu0 0
        %1095 = vmatpush1.bf16.xpose.msra.mxu0 0
        %1096 = vmatprep.subr.bf16.mxu0 0
        %1097 = vmatpush1.bf16.xpose.msra.mxu0 0
        %1098 = vmatprep.subr.bf16.mxu0 0
        %1099 = vmatpush1.bf16.xpose.msra.mxu0 0
        %1100 = vmatprep.subr.bf16.mxu0 0
        %1101 = vmatpush1.bf16.xpose.msra.mxu0 0
        %1102 = vmatprep.subr.bf16.mxu0 0
        %1103 = vmatpush1.bf16.xpose.msra.mxu0 0
        %1104 = vmatprep.subr.bf16.mxu0 0
        %1105 = vmatpush1.bf16.xpose.msra.mxu0 0
        %1106 = vmatprep.subr.bf16.mxu0 0
        %1107 = vmatpush1.bf16.xpose.msra.mxu0 0
        %1108 = vmatprep.subr.bf16.mxu0 0
        %1109 = vmatpush1.bf16.xpose.msra.mxu0 0
        %1110 = vmatprep.subr.bf16.mxu0 0
        %1111 = vmatpush1.bf16.xpose.msra.mxu0 0
        %1112 = vmatprep.subr.bf16.mxu0 0
        %1113 = vmatpush1.bf16.xpose.msra.mxu0 0
        %1114 = vmatprep.subr.bf16.mxu0 0
        %1115 = vmatpush1.bf16.xpose.msra.mxu0 0
        %1116 = vmatprep.subr.bf16.mxu0 0
        %1117 = vmatpush1.bf16.xpose.msra.mxu0 0
        %1118 = vmatprep.subr.bf16.mxu0 0
        %1119 = vmatpush1.bf16.xpose.msra.mxu0 0
        %1120 = vmatprep.subr.bf16.mxu0 0
        %1121 = vmatpush1.bf16.xpose.msra.mxu0 0
        %1122 = vmatprep.mubr.bf16.mxu0 0
        %1123 = vmatmul.mubr.bf16.gmra.mrb[0].mxu0 %v1085
        %v1124 = vpop.f32.mrb[0].mxu0
        %v1125 = vadd.f32 %v1081, %v1124
        %v1126 = vpop.f32.mrb[0].mxu0
        %v1127 = vpop.f32.mrb[0].mxu0
        %v1128 = vadd.f32 %v1081, %v1127
        %v1129 = vpop.f32.mrb[0].mxu0
        %1130 = vdwg.mxu0
        %vm1131 = vcmask 130048
        %v1132 = vsel %vm1131, %v1125, -inf
        %1133 = vmax.xlane.f32.xlu0 %v1132
        %v1134 = vpop.xlane.xlu0 %1133
        %v1135 = vsel %vm1131, %v1128, -inf
        %1136 = vmax.xlane.f32.xlu0 %v1135
        %v1137 = vpop.xlane.xlu0 %1136
        %v1138 = vsub.f32 %v1125, %v1134
        %v1139 = vsub.f32 %v1128, %v1137
        %v1140 = vmul.f32 %v1138, 1.442695
        %v1141 = vpow.pop %v1140
        %v1142 = vmul.f32 %v1139, 1.442695
        %v1143 = vpow.pop %v1142
        %v1144 = vsel %vm1131, %v1141, 0.0
        %1145 = vadd.xlane.f32.xlu0 %v1144
        %v1146 = vpop.xlane.xlu0 %1145
        %v1147 = vsel %vm1131, %v1143, 0.0
        %1148 = vadd.xlane.f32.xlu0 %v1147
        %v1149 = vpop.xlane.xlu0 %1148
        %v1150 = vrcp.pop %v1146
        %v1151 = vrcp.pop %v1149
        %v1152 = vmul.f32 %v1141, %v1150
        %v1153 = vmul.f32 %v1143, %v1151
        %v1154 = vpack.c.bf16 %v1153, %v1152
        %v1155 = vpack.c.bf16 %v1072, %v1069
        %v1157 = vsel %vm1131, %v1154, 0
        %1159 = vmatprep.subr.bf16.mxu0 0
        %1160 = vmatpush1.bf16.msra.mxu0 %v1155
        %1161 = vmatprep.subr.bf16.mxu0 0
        %1162 = vmatpush1.bf16.msra.mxu0 0
        %1163 = vmatprep.subr.bf16.mxu0 0
        %1164 = vmatpush1.bf16.msra.mxu0 0
        %1165 = vmatprep.subr.bf16.mxu0 0
        %1166 = vmatpush1.bf16.msra.mxu0 0
        %1167 = vmatprep.subr.bf16.mxu0 0
        %1168 = vmatpush1.bf16.msra.mxu0 0
        %1169 = vmatprep.subr.bf16.mxu0 0
        %1170 = vmatpush1.bf16.msra.mxu0 0
        %1171 = vmatprep.subr.bf16.mxu0 0
        %1172 = vmatpush1.bf16.msra.mxu0 0
        %1173 = vmatprep.subr.bf16.mxu0 0
        %1174 = vmatpush1.bf16.msra.mxu0 0
        %1175 = vmatprep.subr.bf16.mxu0 0
        %1176 = vmatpush1.bf16.msra.mxu0 0
        %1177 = vmatprep.subr.bf16.mxu0 0
        %1178 = vmatpush1.bf16.msra.mxu0 0
        %1179 = vmatprep.subr.bf16.mxu0 0
        %1180 = vmatpush1.bf16.msra.mxu0 0
        %1181 = vmatprep.subr.bf16.mxu0 0
        %1182 = vmatpush1.bf16.msra.mxu0 0
        %1183 = vmatprep.subr.bf16.mxu0 0
        %1184 = vmatpush1.bf16.msra.mxu0 0
        %1185 = vmatprep.subr.bf16.mxu0 0
        %1186 = vmatpush1.bf16.msra.mxu0 0
        %1187 = vmatprep.subr.bf16.mxu0 0
        %1188 = vmatpush1.bf16.msra.mxu0 0
        %1189 = vmatprep.subr.bf16.mxu0 0
        %1190 = vmatpush1.bf16.msra.mxu0 0
        %1191 = vmatprep.mubr.bf16.mxu0 0
        %1192 = vmatmul.mubr.bf16.gmra.mrb[0].mxu0 %v1157
        %v1193 = vpop.f32.mrb[0].mxu0
        %v1194 = vadd.f32 0.0, %v1193
        %v1195 = vpop.f32.mrb[0].mxu0
        %v1196 = vpop.f32.mrb[0].mxu0
        %v1197 = vadd.f32 0.0, %v1196
        %v1198 = vpop.f32.mrb[0].mxu0
        %1199 = vdwg.mxu0
        %v1200 = vpack.c.bf16 %v1197, %v1194
        %v1201 = vld [vmem:[#allocation7] sm:$0xf]
        %v1202 = vld [vmem:[#allocation7 + $0x4] sm:$0xf]
        %v1203 = vld [vmem:[#allocation7 + $0x8] sm:$0xf]
        %v1204 = vld [vmem:[#allocation7 + $0xc] sm:$0xf]
        %v1205 = vld [vmem:[#allocation7 + $0x10] sm:$0xf]
        %v1206 = vld [vmem:[#allocation7 + $0x14] sm:$0xf]
        %v1207 = vld [vmem:[#allocation7 + $0x18] sm:$0xf]
        %v1208 = vld [vmem:[#allocation7 + $0x1c] sm:$0xf]
        %s1209 = scalar_lea.vmem %s2, 64
        %v1210 = vld [vmem:[%s1209] sm:$0xf]
        %v1211 = vld [vmem:[%s1209 + $0x4] sm:$0xf]
        %v1212 = vld [vmem:[%s1209 + $0x8] sm:$0xf]
        %v1213 = vld [vmem:[%s1209 + $0xc] sm:$0xf]
        %v1214 = vld [vmem:[%s1209 + $0x10] sm:$0xf]
        %v1215 = vld [vmem:[%s1209 + $0x14] sm:$0xf]
        %v1216 = vld [vmem:[%s1209 + $0x18] sm:$0xf]
        %v1217 = vld [vmem:[%s1209 + $0x1c] sm:$0xf]
        %v1218 = vld [vmem:[%s1209 + $0x20] sm:$0xf]
        %v1219 = vld [vmem:[%s1209 + $0x24] sm:$0xf]
        %v1220 = vld [vmem:[%s1209 + $0x28] sm:$0xf]
        %v1221 = vld [vmem:[%s1209 + $0x2c] sm:$0xf]
        %v1222 = vld [vmem:[%s1209 + $0x30] sm:$0xf]
        %v1223 = vld [vmem:[%s1209 + $0x34] sm:$0xf]
        %v1224 = vld [vmem:[%s1209 + $0x38] sm:$0xf]
        %v1225 = vld [vmem:[%s1209 + $0x3c] sm:$0xf]
        %s1226 = scalar_lea.vmem [#allocation5], 1
        %v1227 = vld [vmem:[%s1226] sm:$0x1]
        %v1229 = vlaneseq
        %v1230 = vshrl.u32 %v1229, 7
        %v1231 = vsub.s32 0, %v1230
        %v1232 = vrot.slane %v1227, %v1231
        %v1250 = vunpack.c.l.b16 %v1210
        %v1251 = vunpack.c.l.b16 %v1211
        %v1252 = vunpack.c.l.b16 %v1212
        %v1253 = vunpack.c.l.b16 %v1213
        %v1254 = vunpack.c.l.b16 %v1214
        %v1255 = vunpack.c.l.b16 %v1215
        %v1256 = vunpack.c.l.b16 %v1216
        %v1257 = vunpack.c.l.b16 %v1217
        %v1258 = vunpack.c.l.b16 %v1218
        %v1259 = vunpack.c.l.b16 %v1219
        %v1260 = vunpack.c.l.b16 %v1220
        %v1261 = vunpack.c.l.b16 %v1221
        %v1262 = vunpack.c.l.b16 %v1222
        %v1263 = vunpack.c.l.b16 %v1223
        %v1264 = vunpack.c.l.b16 %v1224
        %v1265 = vunpack.c.l.b16 %v1225
        %v1266 = vpack.c.b16 %v1251, %v1250
        %v1267 = vpack.c.b16 %v1253, %v1252
        %v1268 = vpack.c.b16 %v1255, %v1254
        %v1269 = vpack.c.b16 %v1257, %v1256
        %v1270 = vpack.c.b16 %v1259, %v1258
        %v1271 = vpack.c.b16 %v1261, %v1260
        %v1272 = vpack.c.b16 %v1263, %v1262
        %v1273 = vpack.c.b16 %v1265, %v1264
        %1282 = vmatprep.subr.bf16.mxu0 0
        %1283 = vmatpush1.bf16.msra.mxu0 %v1266
        %1284 = vmatprep.subr.bf16.mxu0 0
        %1285 = vmatpush1.bf16.msra.mxu0 %v1267
        %1286 = vmatprep.subr.bf16.mxu0 0
        %1287 = vmatpush1.bf16.msra.mxu0 %v1268
        %1288 = vmatprep.subr.bf16.mxu0 0
        %1289 = vmatpush1.bf16.msra.mxu0 %v1269
        %1290 = vmatprep.subr.bf16.mxu0 0
        %1291 = vmatpush1.bf16.msra.mxu0 %v1270
        %1292 = vmatprep.subr.bf16.mxu0 0
        %1293 = vmatpush1.bf16.msra.mxu0 %v1271
        %1294 = vmatprep.subr.bf16.mxu0 0
        %1295 = vmatpush1.bf16.msra.mxu0 %v1272
        %1296 = vmatprep.subr.bf16.mxu0 0
        %1297 = vmatpush1.bf16.msra.mxu0 %v1273
        %1298 = vmatprep.subr.bf16.mxu0 0
        %1299 = vmatpush1.bf16.msra.mxu0 0
        %1300 = vmatprep.subr.bf16.mxu0 0
        %1301 = vmatpush1.bf16.msra.mxu0 0
        %1302 = vmatprep.subr.bf16.mxu0 0
        %1303 = vmatpush1.bf16.msra.mxu0 0
        %1304 = vmatprep.subr.bf16.mxu0 0
        %1305 = vmatpush1.bf16.msra.mxu0 0
        %1306 = vmatprep.subr.bf16.mxu0 0
        %1307 = vmatpush1.bf16.msra.mxu0 0
        %1308 = vmatprep.subr.bf16.mxu0 0
        %1309 = vmatpush1.bf16.msra.mxu0 0
        %1310 = vmatprep.subr.bf16.mxu0 0
        %1311 = vmatpush1.bf16.msra.mxu0 0
        %1312 = vmatprep.subr.bf16.mxu0 0
        %1313 = vmatpush1.bf16.msra.mxu0 0
        %1314 = vmatprep.mubr.bf16.mxu0 0
        %1315 = vmatmul.mubr.bf16.gmra.mrb[0].mxu0 %v736
        %v1316 = vpop.f32.mrb[0].mxu0
        %v1317 = vadd.f32 %v1232, %v1316
        %v1318 = vpop.f32.mrb[0].mxu0
        %v1319 = vpop.f32.mrb[0].mxu0
        %v1320 = vadd.f32 %v1232, %v1319
        %v1321 = vpop.f32.mrb[0].mxu0
        %1322 = vdwg.mxu0
        %v1323 = vmul.f32 %v1317, 0.125
        %v1324 = vmul.f32 %v1320, 0.125
        %s1325 = scalar_lea.vmem %s4, 64
        %v1326 = vld [vmem:[%s1325] sm:$0xf]
        %v1327 = vld [vmem:[%s1325 + $0x4] sm:$0xf]
        %v1328 = vld [vmem:[%s1325 + $0x8] sm:$0xf]
        %v1329 = vld [vmem:[%s1325 + $0xc] sm:$0xf]
        %v1330 = vld [vmem:[%s1325 + $0x10] sm:$0xf]
        %v1331 = vld [vmem:[%s1325 + $0x14] sm:$0xf]
        %v1332 = vld [vmem:[%s1325 + $0x18] sm:$0xf]
        %v1333 = vld [vmem:[%s1325 + $0x1c] sm:$0xf]
        %v1334 = vld [vmem:[%s1325 + $0x20] sm:$0xf]
        %v1335 = vld [vmem:[%s1325 + $0x24] sm:$0xf]
        %v1336 = vld [vmem:[%s1325 + $0x28] sm:$0xf]
        %v1337 = vld [vmem:[%s1325 + $0x2c] sm:$0xf]
        %v1338 = vld [vmem:[%s1325 + $0x30] sm:$0xf]
        %v1339 = vld [vmem:[%s1325 + $0x34] sm:$0xf]
        %v1340 = vld [vmem:[%s1325 + $0x38] sm:$0xf]
        %v1341 = vld [vmem:[%s1325 + $0x3c] sm:$0xf]
        %s1342 = scalar_lea.vmem %s5, 1
        %v1343 = vld [vmem:[%s1342] sm:$0x1]
        %v1345 = vlaneseq
        %v1346 = vshrl.u32 %v1345, 7
        %v1347 = vsub.s32 0, %v1346
        %v1348 = vrot.slane %v1343, %v1347
        %v1366 = vunpack.c.l.b16 %v1326
        %v1367 = vunpack.c.l.b16 %v1327
        %v1368 = vunpack.c.l.b16 %v1328
        %v1369 = vunpack.c.l.b16 %v1329
        %v1370 = vunpack.c.l.b16 %v1330
        %v1371 = vunpack.c.l.b16 %v1331
        %v1372 = vunpack.c.l.b16 %v1332
        %v1373 = vunpack.c.l.b16 %v1333
        %v1374 = vunpack.c.l.b16 %v1334
        %v1375 = vunpack.c.l.b16 %v1335
        %v1376 = vunpack.c.l.b16 %v1336
        %v1377 = vunpack.c.l.b16 %v1337
        %v1378 = vunpack.c.l.b16 %v1338
        %v1379 = vunpack.c.l.b16 %v1339
        %v1380 = vunpack.c.l.b16 %v1340
        %v1381 = vunpack.c.l.b16 %v1341
        %v1382 = vpack.c.b16 %v1367, %v1366
        %v1383 = vpack.c.b16 %v1369, %v1368
        %v1384 = vpack.c.b16 %v1371, %v1370
        %v1385 = vpack.c.b16 %v1373, %v1372
        %v1386 = vpack.c.b16 %v1375, %v1374
        %v1387 = vpack.c.b16 %v1377, %v1376
        %v1388 = vpack.c.b16 %v1379, %v1378
        %v1389 = vpack.c.b16 %v1381, %v1380
        %1398 = vmatprep.subr.bf16.mxu0 0
        %1399 = vmatpush1.bf16.msra.mxu0 %v1382
        %1400 = vmatprep.subr.bf16.mxu0 0
        %1401 = vmatpush1.bf16.msra.mxu0 %v1383
        %1402 = vmatprep.subr.bf16.mxu0 0
        %1403 = vmatpush1.bf16.msra.mxu0 %v1384
        %1404 = vmatprep.subr.bf16.mxu0 0
        %1405 = vmatpush1.bf16.msra.mxu0 %v1385
        %1406 = vmatprep.subr.bf16.mxu0 0
        %1407 = vmatpush1.bf16.msra.mxu0 %v1386
        %1408 = vmatprep.subr.bf16.mxu0 0
        %1409 = vmatpush1.bf16.msra.mxu0 %v1387
        %1410 = vmatprep.subr.bf16.mxu0 0
        %1411 = vmatpush1.bf16.msra.mxu0 %v1388
        %1412 = vmatprep.subr.bf16.mxu0 0
        %1413 = vmatpush1.bf16.msra.mxu0 %v1389
        %1414 = vmatprep.subr.bf16.mxu0 0
        %1415 = vmatpush1.bf16.msra.mxu0 0
        %1416 = vmatprep.subr.bf16.mxu0 0
        %1417 = vmatpush1.bf16.msra.mxu0 0
        %1418 = vmatprep.subr.bf16.mxu0 0
        %1419 = vmatpush1.bf16.msra.mxu0 0
        %1420 = vmatprep.subr.bf16.mxu0 0
        %1421 = vmatpush1.bf16.msra.mxu0 0
        %1422 = vmatprep.subr.bf16.mxu0 0
        %1423 = vmatpush1.bf16.msra.mxu0 0
        %1424 = vmatprep.subr.bf16.mxu0 0
        %1425 = vmatpush1.bf16.msra.mxu0 0
        %1426 = vmatprep.subr.bf16.mxu0 0
        %1427 = vmatpush1.bf16.msra.mxu0 0
        %1428 = vmatprep.subr.bf16.mxu0 0
        %1429 = vmatpush1.bf16.msra.mxu0 0
        %1430 = vmatprep.mubr.bf16.mxu0 0
        %1431 = vmatmul.mubr.bf16.gmra.mrb[0].mxu0 %v736
        %v1432 = vpop.f32.mrb[0].mxu0
        %v1433 = vadd.f32 %v1348, %v1432
        %v1434 = vpop.f32.mrb[0].mxu0
        %v1435 = vpop.f32.mrb[0].mxu0
        %v1436 = vadd.f32 %v1348, %v1435
        %v1437 = vpop.f32.mrb[0].mxu0
        %1438 = vdwg.mxu0
        %s1439 = scalar_lea.vmem %s6, 64
        %v1440 = vld [vmem:[%s1439] sm:$0xf]
        %v1441 = vld [vmem:[%s1439 + $0x4] sm:$0xf]
        %v1442 = vld [vmem:[%s1439 + $0x8] sm:$0xf]
        %v1443 = vld [vmem:[%s1439 + $0xc] sm:$0xf]
        %v1444 = vld [vmem:[%s1439 + $0x10] sm:$0xf]
        %v1445 = vld [vmem:[%s1439 + $0x14] sm:$0xf]
        %v1446 = vld [vmem:[%s1439 + $0x18] sm:$0xf]
        %v1447 = vld [vmem:[%s1439 + $0x1c] sm:$0xf]
        %v1448 = vld [vmem:[%s1439 + $0x20] sm:$0xf]
        %v1449 = vld [vmem:[%s1439 + $0x24] sm:$0xf]
        %v1450 = vld [vmem:[%s1439 + $0x28] sm:$0xf]
        %v1451 = vld [vmem:[%s1439 + $0x2c] sm:$0xf]
        %v1452 = vld [vmem:[%s1439 + $0x30] sm:$0xf]
        %v1453 = vld [vmem:[%s1439 + $0x34] sm:$0xf]
        %v1454 = vld [vmem:[%s1439 + $0x38] sm:$0xf]
        %v1455 = vld [vmem:[%s1439 + $0x3c] sm:$0xf]
        %s1456 = scalar_lea.vmem %s7, 1
        %v1457 = vld [vmem:[%s1456] sm:$0x1]
        %v1459 = vlaneseq
        %v1460 = vshrl.u32 %v1459, 7
        %v1461 = vsub.s32 0, %v1460
        %v1462 = vrot.slane %v1457, %v1461
        %v1480 = vunpack.c.l.b16 %v1440
        %v1481 = vunpack.c.l.b16 %v1441
        %v1482 = vunpack.c.l.b16 %v1442
        %v1483 = vunpack.c.l.b16 %v1443
        %v1484 = vunpack.c.l.b16 %v1444
        %v1485 = vunpack.c.l.b16 %v1445
        %v1486 = vunpack.c.l.b16 %v1446
        %v1487 = vunpack.c.l.b16 %v1447
        %v1488 = vunpack.c.l.b16 %v1448
        %v1489 = vunpack.c.l.b16 %v1449
        %v1490 = vunpack.c.l.b16 %v1450
        %v1491 = vunpack.c.l.b16 %v1451
        %v1492 = vunpack.c.l.b16 %v1452
        %v1493 = vunpack.c.l.b16 %v1453
        %v1494 = vunpack.c.l.b16 %v1454
        %v1495 = vunpack.c.l.b16 %v1455
        %v1496 = vpack.c.b16 %v1481, %v1480
        %v1497 = vpack.c.b16 %v1483, %v1482
        %v1498 = vpack.c.b16 %v1485, %v1484
        %v1499 = vpack.c.b16 %v1487, %v1486
        %v1500 = vpack.c.b16 %v1489, %v1488
        %v1501 = vpack.c.b16 %v1491, %v1490
        %v1502 = vpack.c.b16 %v1493, %v1492
        %v1503 = vpack.c.b16 %v1495, %v1494
        %1512 = vmatprep.subr.bf16.mxu0 0
        %1513 = vmatpush1.bf16.msra.mxu0 %v1496
        %1514 = vmatprep.subr.bf16.mxu0 0
        %1515 = vmatpush1.bf16.msra.mxu0 %v1497
        %1516 = vmatprep.subr.bf16.mxu0 0
        %1517 = vmatpush1.bf16.msra.mxu0 %v1498
        %1518 = vmatprep.subr.bf16.mxu0 0
        %1519 = vmatpush1.bf16.msra.mxu0 %v1499
        %1520 = vmatprep.subr.bf16.mxu0 0
        %1521 = vmatpush1.bf16.msra.mxu0 %v1500
        %1522 = vmatprep.subr.bf16.mxu0 0
        %1523 = vmatpush1.bf16.msra.mxu0 %v1501
        %1524 = vmatprep.subr.bf16.mxu0 0
        %1525 = vmatpush1.bf16.msra.mxu0 %v1502
        %1526 = vmatprep.subr.bf16.mxu0 0
        %1527 = vmatpush1.bf16.msra.mxu0 %v1503
        %1528 = vmatprep.subr.bf16.mxu0 0
        %1529 = vmatpush1.bf16.msra.mxu0 0
        %1530 = vmatprep.subr.bf16.mxu0 0
        %1531 = vmatpush1.bf16.msra.mxu0 0
        %1532 = vmatprep.subr.bf16.mxu0 0
        %1533 = vmatpush1.bf16.msra.mxu0 0
        %1534 = vmatprep.subr.bf16.mxu0 0
        %1535 = vmatpush1.bf16.msra.mxu0 0
        %1536 = vmatprep.subr.bf16.mxu0 0
        %1537 = vmatpush1.bf16.msra.mxu0 0
        %1538 = vmatprep.subr.bf16.mxu0 0
        %1539 = vmatpush1.bf16.msra.mxu0 0
        %1540 = vmatprep.subr.bf16.mxu0 0
        %1541 = vmatpush1.bf16.msra.mxu0 0
        %1542 = vmatprep.subr.bf16.mxu0 0
        %1543 = vmatpush1.bf16.msra.mxu0 0
        %1544 = vmatprep.mubr.bf16.mxu0 0
        %1545 = vmatmul.mubr.bf16.gmra.mrb[0].mxu0 %v736
        %v1546 = vpop.f32.mrb[0].mxu0
        %v1547 = vadd.f32 %v1462, %v1546
        %v1548 = vpop.f32.mrb[0].mxu0
        %v1549 = vpop.f32.mrb[0].mxu0
        %v1550 = vadd.f32 %v1462, %v1549
        %v1551 = vpop.f32.mrb[0].mxu0
        %1552 = vdwg.mxu0
        %v1553 = vpack.c.bf16 %v1324, %v1323
        %v1554 = vpack.c.bf16 %v1436, %v1433
        %v1556 = vsel %vm1083, %v1553, 0
        %v1559 = vsel %vm1083, %v1554, 0
        %1561 = vmatprep.subr.bf16.mxu0 0
        %1562 = vmatpush1.bf16.xpose.msra.mxu0 %v1559
        %1563 = vmatprep.subr.bf16.mxu0 0
        %1564 = vmatpush1.bf16.xpose.msra.mxu0 0
        %1565 = vmatprep.subr.bf16.mxu0 0
        %1566 = vmatpush1.bf16.xpose.msra.mxu0 0
        %1567 = vmatprep.subr.bf16.mxu0 0
        %1568 = vmatpush1.bf16.xpose.msra.mxu0 0
        %1569 = vmatprep.subr.bf16.mxu0 0
        %1570 = vmatpush1.bf16.xpose.msra.mxu0 0
        %1571 = vmatprep.subr.bf16.mxu0 0
        %1572 = vmatpush1.bf16.xpose.msra.mxu0 0
        %1573 = vmatprep.subr.bf16.mxu0 0
        %1574 = vmatpush1.bf16.xpose.msra.mxu0 0
        %1575 = vmatprep.subr.bf16.mxu0 0
        %1576 = vmatpush1.bf16.xpose.msra.mxu0 0
        %1577 = vmatprep.subr.bf16.mxu0 0
        %1578 = vmatpush1.bf16.xpose.msra.mxu0 0
        %1579 = vmatprep.subr.bf16.mxu0 0
        %1580 = vmatpush1.bf16.xpose.msra.mxu0 0
        %1581 = vmatprep.subr.bf16.mxu0 0
        %1582 = vmatpush1.bf16.xpose.msra.mxu0 0
        %1583 = vmatprep.subr.bf16.mxu0 0
        %1584 = vmatpush1.bf16.xpose.msra.mxu0 0
        %1585 = vmatprep.subr.bf16.mxu0 0
        %1586 = vmatpush1.bf16.xpose.msra.mxu0 0
        %1587 = vmatprep.subr.bf16.mxu0 0
        %1588 = vmatpush1.bf16.xpose.msra.mxu0 0
        %1589 = vmatprep.subr.bf16.mxu0 0
        %1590 = vmatpush1.bf16.xpose.msra.mxu0 0
        %1591 = vmatprep.subr.bf16.mxu0 0
        %1592 = vmatpush1.bf16.xpose.msra.mxu0 0
        %1593 = vmatprep.mubr.bf16.mxu0 0
        %1594 = vmatmul.mubr.bf16.gmra.mrb[0].mxu0 %v1556
        %v1595 = vpop.f32.mrb[0].mxu0
        %v1596 = vadd.f32 %v1081, %v1595
        %v1597 = vpop.f32.mrb[0].mxu0
        %v1598 = vpop.f32.mrb[0].mxu0
        %v1599 = vadd.f32 %v1081, %v1598
        %v1600 = vpop.f32.mrb[0].mxu0
        %1601 = vdwg.mxu0
        %v1602 = vsel %vm1131, %v1596, -inf
        %1603 = vmax.xlane.f32.xlu0 %v1602
        %v1604 = vpop.xlane.xlu0 %1603
        %v1605 = vsel %vm1131, %v1599, -inf
        %1606 = vmax.xlane.f32.xlu0 %v1605
        %v1607 = vpop.xlane.xlu0 %1606
        %v1608 = vsub.f32 %v1596, %v1604
        %v1609 = vsub.f32 %v1599, %v1607
        %v1610 = vmul.f32 %v1608, 1.442695
        %v1611 = vpow.pop %v1610
        %v1612 = vmul.f32 %v1609, 1.442695
        %v1613 = vpow.pop %v1612
        %v1614 = vsel %vm1131, %v1611, 0.0
        %1615 = vadd.xlane.f32.xlu0 %v1614
        %v1616 = vpop.xlane.xlu0 %1615
        %v1617 = vsel %vm1131, %v1613, 0.0
        %1618 = vadd.xlane.f32.xlu0 %v1617
        %v1619 = vpop.xlane.xlu0 %1618
        %v1620 = vrcp.pop %v1616
        %v1621 = vrcp.pop %v1619
        %v1622 = vmul.f32 %v1611, %v1620
        %v1623 = vmul.f32 %v1613, %v1621
        %v1624 = vpack.c.bf16 %v1623, %v1622
        %v1625 = vpack.c.bf16 %v1550, %v1547
        %v1627 = vsel %vm1131, %v1624, 0
        %1629 = vmatprep.subr.bf16.mxu0 0
        %1630 = vmatpush1.bf16.msra.mxu0 %v1625
        %1631 = vmatprep.subr.bf16.mxu0 0
        %1632 = vmatpush1.bf16.msra.mxu0 0
        %1633 = vmatprep.subr.bf16.mxu0 0
        %1634 = vmatpush1.bf16.msra.mxu0 0
        %1635 = vmatprep.subr.bf16.mxu0 0
        %1636 = vmatpush1.bf16.msra.mxu0 0
        %1637 = vmatprep.subr.bf16.mxu0 0
        %1638 = vmatpush1.bf16.msra.mxu0 0
        %1639 = vmatprep.subr.bf16.mxu0 0
        %1640 = vmatpush1.bf16.msra.mxu0 0
        %1641 = vmatprep.subr.bf16.mxu0 0
        %1642 = vmatpush1.bf16.msra.mxu0 0
        %1643 = vmatprep.subr.bf16.mxu0 0
        %1644 = vmatpush1.bf16.msra.mxu0 0
        %1645 = vmatprep.subr.bf16.mxu0 0
        %1646 = vmatpush1.bf16.msra.mxu0 0
        %1647 = vmatprep.subr.bf16.mxu0 0
        %1648 = vmatpush1.bf16.msra.mxu0 0
        %1649 = vmatprep.subr.bf16.mxu0 0
        %1650 = vmatpush1.bf16.msra.mxu0 0
        %1651 = vmatprep.subr.bf16.mxu0 0
        %1652 = vmatpush1.bf16.msra.mxu0 0
        %1653 = vmatprep.subr.bf16.mxu0 0
        %1654 = vmatpush1.bf16.msra.mxu0 0
        %1655 = vmatprep.subr.bf16.mxu0 0
        %1656 = vmatpush1.bf16.msra.mxu0 0
        %1657 = vmatprep.subr.bf16.mxu0 0
        %1658 = vmatpush1.bf16.msra.mxu0 0
        %1659 = vmatprep.subr.bf16.mxu0 0
        %1660 = vmatpush1.bf16.msra.mxu0 0
        %1661 = vmatprep.mubr.bf16.mxu0 0
        %1662 = vmatmul.mubr.bf16.gmra.mrb[0].mxu0 %v1627
        %v1663 = vpop.f32.mrb[0].mxu0
        %v1664 = vadd.f32 0.0, %v1663
        %v1665 = vpop.f32.mrb[0].mxu0
        %v1666 = vpop.f32.mrb[0].mxu0
        %v1667 = vadd.f32 0.0, %v1666
        %v1668 = vpop.f32.mrb[0].mxu0
        %1669 = vdwg.mxu0
        %v1670 = vpack.c.bf16 %v1667, %v1664
        %s1671 = scalar_lea.vmem [#allocation7], 32
        %v1672 = vld [vmem:[%s1671] sm:$0xf]
        %v1673 = vld [vmem:[%s1671 + $0x4] sm:$0xf]
        %v1674 = vld [vmem:[%s1671 + $0x8] sm:$0xf]
        %v1675 = vld [vmem:[%s1671 + $0xc] sm:$0xf]
        %v1676 = vld [vmem:[%s1671 + $0x10] sm:$0xf]
        %v1677 = vld [vmem:[%s1671 + $0x14] sm:$0xf]
        %v1678 = vld [vmem:[%s1671 + $0x18] sm:$0xf]
        %v1679 = vld [vmem:[%s1671 + $0x1c] sm:$0xf]
        %v1688 = vunpack.c.l.b16 %v1672
        %v1689 = vunpack.c.l.b16 %v1673
        %v1690 = vunpack.c.l.b16 %v1674
        %v1691 = vunpack.c.l.b16 %v1675
        %v1692 = vunpack.c.l.b16 %v1676
        %v1693 = vunpack.c.l.b16 %v1677
        %v1694 = vunpack.c.l.b16 %v1678
        %v1695 = vunpack.c.l.b16 %v1679
        %v1696 = vpack.c.b16 %v1689, %v1688
        %v1697 = vpack.c.b16 %v1691, %v1690
        %v1698 = vpack.c.b16 %v1693, %v1692
        %v1699 = vpack.c.b16 %v1695, %v1694
        %v1705 = vsel %vm1083, %v1670, 0
        %1707 = vmatprep.subr.bf16.mxu0 0
        %1708 = vmatpush1.bf16.msra.mxu0 %v1696
        %1709 = vmatprep.subr.bf16.mxu0 0
        %1710 = vmatpush1.bf16.msra.mxu0 %v1697
        %1711 = vmatprep.subr.bf16.mxu0 0
        %1712 = vmatpush1.bf16.msra.mxu0 %v1698
        %1713 = vmatprep.subr.bf16.mxu0 0
        %1714 = vmatpush1.bf16.msra.mxu0 %v1699
        %1715 = vmatprep.subr.bf16.mxu0 0
        %1716 = vmatpush1.bf16.msra.mxu0 0
        %1717 = vmatprep.subr.bf16.mxu0 0
        %1718 = vmatpush1.bf16.msra.mxu0 0
        %1719 = vmatprep.subr.bf16.mxu0 0
        %1720 = vmatpush1.bf16.msra.mxu0 0
        %1721 = vmatprep.subr.bf16.mxu0 0
        %1722 = vmatpush1.bf16.msra.mxu0 0
        %1723 = vmatprep.subr.bf16.mxu0 0
        %1724 = vmatpush1.bf16.msra.mxu0 0
        %1725 = vmatprep.subr.bf16.mxu0 0
        %1726 = vmatpush1.bf16.msra.mxu0 0
        %1727 = vmatprep.subr.bf16.mxu0 0
        %1728 = vmatpush1.bf16.msra.mxu0 0
        %1729 = vmatprep.subr.bf16.mxu0 0
        %1730 = vmatpush1.bf16.msra.mxu0 0
        %1731 = vmatprep.subr.bf16.mxu0 0
        %1732 = vmatpush1.bf16.msra.mxu0 0
        %1733 = vmatprep.subr.bf16.mxu0 0
        %1734 = vmatpush1.bf16.msra.mxu0 0
        %1735 = vmatprep.subr.bf16.mxu0 0
        %1736 = vmatpush1.bf16.msra.mxu0 0
        %1737 = vmatprep.subr.bf16.mxu0 0
        %1738 = vmatpush1.bf16.msra.mxu0 0
        %1739 = vmatprep.mubr.bf16.mxu0 0
        %1740 = vmatmul.mubr.bf16.gmra.mrb[0].mxu0 %v1705
        %v1741 = vpop.f32.mrb[0].mxu0
        %v1742 = vadd.f32 0.0, %v1741
        %v1743 = vpop.f32.mrb[0].mxu0
        %v1744 = vpop.f32.mrb[0].mxu0
        %v1745 = vadd.f32 0.0, %v1744
        %v1746 = vpop.f32.mrb[0].mxu0
        %1747 = vdwg.mxu0
        %v1756 = vunpack.c.l.b16 %v1201
        %v1757 = vunpack.c.l.b16 %v1202
        %v1758 = vunpack.c.l.b16 %v1203
        %v1759 = vunpack.c.l.b16 %v1204
        %v1760 = vunpack.c.l.b16 %v1205
        %v1761 = vunpack.c.l.b16 %v1206
        %v1762 = vunpack.c.l.b16 %v1207
        %v1763 = vunpack.c.l.b16 %v1208
        %v1764 = vpack.c.b16 %v1757, %v1756
        %v1765 = vpack.c.b16 %v1759, %v1758
        %v1766 = vpack.c.b16 %v1761, %v1760
        %v1767 = vpack.c.b16 %v1763, %v1762
        %v1773 = vsel %vm1083, %v1200, 0
        %1775 = vmatprep.subr.bf16.mxu0 0
        %1776 = vmatpush1.bf16.msra.mxu0 %v1764
        %1777 = vmatprep.subr.bf16.mxu0 0
        %1778 = vmatpush1.bf16.msra.mxu0 %v1765
        %1779 = vmatprep.subr.bf16.mxu0 0
        %1780 = vmatpush1.bf16.msra.mxu0 %v1766
        %1781 = vmatprep.subr.bf16.mxu0 0
        %1782 = vmatpush1.bf16.msra.mxu0 %v1767
        %1783 = vmatprep.subr.bf16.mxu0 0
        %1784 = vmatpush1.bf16.msra.mxu0 0
        %1785 = vmatprep.subr.bf16.mxu0 0
        %1786 = vmatpush1.bf16.msra.mxu0 0
        %1787 = vmatprep.subr.bf16.mxu0 0
        %1788 = vmatpush1.bf16.msra.mxu0 0
        %1789 = vmatprep.subr.bf16.mxu0 0
        %1790 = vmatpush1.bf16.msra.mxu0 0
        %1791 = vmatprep.subr.bf16.mxu0 0
        %1792 = vmatpush1.bf16.msra.mxu0 0
        %1793 = vmatprep.subr.bf16.mxu0 0
        %1794 = vmatpush1.bf16.msra.mxu0 0
        %1795 = vmatprep.subr.bf16.mxu0 0
        %1796 = vmatpush1.bf16.msra.mxu0 0
        %1797 = vmatprep.subr.bf16.mxu0 0
        %1798 = vmatpush1.bf16.msra.mxu0 0
        %1799 = vmatprep.subr.bf16.mxu0 0
        %1800 = vmatpush1.bf16.msra.mxu0 0
        %1801 = vmatprep.subr.bf16.mxu0 0
        %1802 = vmatpush1.bf16.msra.mxu0 0
        %1803 = vmatprep.subr.bf16.mxu0 0
        %1804 = vmatpush1.bf16.msra.mxu0 0
        %1805 = vmatprep.subr.bf16.mxu0 0
        %1806 = vmatpush1.bf16.msra.mxu0 0
        %1807 = vmatprep.mubr.bf16.mxu0 0
        %1808 = vmatmul.mubr.bf16.gmra.mrb[0].mxu0 %v1773
        %v1809 = vpop.f32.mrb[0].mxu0
        %v1810 = vadd.f32 %v1742, %v1809
        %v1811 = vpop.f32.mrb[0].mxu0
        %v1812 = vpop.f32.mrb[0].mxu0
        %v1813 = vadd.f32 %v1745, %v1812
        %v1814 = vpop.f32.mrb[0].mxu0
        %1815 = vdwg.mxu0
        %v1816 = vld [vmem:[%s9] sm:$0x1]
        %v1818 = vlaneseq
        %v1819 = vshrl.u32 %v1818, 7
        %v1820 = vsub.s32 0, %v1819
        %v1821 = vrot.slane %v1816, %v1820
        %v1823 = vadd.f32 %v1810, %v1821
        %v1824 = vadd.f32 %v1813, %v1821
        %v1825 = vadd.f32 %v733, %v1823
        %v1826 = vadd.f32 %v734, %v1824
        %v1827 = vld [vmem:[%s10] sm:$0x1]
        %v1828 = vld [vmem:[%s11] sm:$0x1]
        %1829 = vadd.xlane.f32.xlu0 %v1825
        %v1830 = vpop.xlane.xlu0 %1829
        %1831 = vadd.xlane.f32.xlu0 %v1826
        %v1832 = vpop.xlane.xlu0 %1831
        %v1833 = vmul.f32 %v1830, %v700
        %v1834 = vmul.f32 %v1832, %v700
        %v1835 = vsub.f32 %v1825, %v1833
        %v1836 = vsub.f32 %v1826, %v1834
        %v1837 = vmul.f32 %v1835, %v1835
        %v1838 = vmul.f32 %v1836, %v1836
        %1839 = vadd.xlane.f32.xlu0 %v1837
        %v1840 = vpop.xlane.xlu0 %1839
        %1841 = vadd.xlane.f32.xlu0 %v1838
        %v1842 = vpop.xlane.xlu0 %1841
        %v1843 = vmul.f32 %v1840, %v700
        %v1844 = vmul.f32 %v1842, %v700
        %v1845 = vadd.f32 %v1843, 1e-12
        %v1846 = vadd.f32 %v1844, 1e-12
        %v1847 = vrsqrt.pop %v1845
        %v1848 = vrsqrt.pop %v1846
        %v1849 = vmul.f32 %v1835, %v1847
        %v1850 = vmul.f32 %v1836, %v1848
        %v1852 = vlaneseq
        %v1853 = vshrl.u32 %v1852, 7
        %v1854 = vsub.s32 0, %v1853
        %v1855 = vrot.slane %v1827, %v1854
        %v1857 = vmul.f32 %v1849, %v1855
        %v1858 = vmul.f32 %v1850, %v1855
        %v1860 = vlaneseq
        %v1861 = vshrl.u32 %v1860, 7
        %v1862 = vsub.s32 0, %v1861
        %v1863 = vrot.slane %v1828, %v1862
        %v1865 = vadd.f32 %v1857, %v1863
        %v1866 = vadd.f32 %v1858, %v1863
        %v1867 = vpack.c.bf16 %v1866, %v1865
        %v1868 = vld [vmem:[%s12] sm:$0xff]
        %v1869 = vld [vmem:[%s12 + $0x8] sm:$0xff]
        %v1870 = vld [vmem:[%s12 + $0x10] sm:$0xff]
        %v1871 = vld [vmem:[%s12 + $0x18] sm:$0xff]
        %v1872 = vld [vmem:[%s12 + $0x20] sm:$0xff]
        %v1873 = vld [vmem:[%s12 + $0x28] sm:$0xff]
        %v1874 = vld [vmem:[%s12 + $0x30] sm:$0xff]
        %v1875 = vld [vmem:[%s12 + $0x38] sm:$0xff]
        %v1876 = vld [vmem:[%s12 + $0x40] sm:$0xff]
        %v1877 = vld [vmem:[%s12 + $0x48] sm:$0xff]
        %v1878 = vld [vmem:[%s12 + $0x50] sm:$0xff]
        %v1879 = vld [vmem:[%s12 + $0x58] sm:$0xff]
        %v1880 = vld [vmem:[%s12 + $0x60] sm:$0xff]
        %v1881 = vld [vmem:[%s12 + $0x68] sm:$0xff]
        %v1882 = vld [vmem:[%s12 + $0x70] sm:$0xff]
        %v1883 = vld [vmem:[%s12 + $0x78] sm:$0xff]
        %v1884 = vld [vmem:[%s12 + $0x80] sm:$0xff]
        %v1885 = vld [vmem:[%s12 + $0x88] sm:$0xff]
        %v1886 = vld [vmem:[%s12 + $0x90] sm:$0xff]
        %v1887 = vld [vmem:[%s12 + $0x98] sm:$0xff]
        %v1888 = vld [vmem:[%s12 + $0xa0] sm:$0xff]
        %v1889 = vld [vmem:[%s12 + $0xa8] sm:$0xff]
        %v1890 = vld [vmem:[%s12 + $0xb0] sm:$0xff]
        %v1891 = vld [vmem:[%s12 + $0xb8] sm:$0xff]
        %v1892 = vld [vmem:[%s12 + $0xc0] sm:$0xff]
        %v1893 = vld [vmem:[%s12 + $0xc8] sm:$0xff]
        %v1894 = vld [vmem:[%s12 + $0xd0] sm:$0xff]
        %v1895 = vld [vmem:[%s12 + $0xd8] sm:$0xff]
        %v1896 = vld [vmem:[%s12 + $0xe0] sm:$0xff]
        %v1897 = vld [vmem:[%s12 + $0xe8] sm:$0xff]
        %v1898 = vld [vmem:[%s12 + $0xf0] sm:$0xff]
        %v1899 = vld [vmem:[%s12 + $0xf8] sm:$0xff]
        %v1900 = vld [vmem:[%s13] sm:$0xf]
        %v1902 = vlaneseq
        %v1903 = vshrl.u32 %v1902, 7
        %v1904 = vsub.s32 0, %v1903
        %v1905 = vrot.slane %v1900, %v1904
        %v1906 = vlaneseq
        %v1907 = vshrl.u32 %v1906, 7
        %v1908 = vsub.s32 1, %v1907
        %v1909 = vrot.slane %v1900, %v1908
        %v1910 = vlaneseq
        %v1911 = vshrl.u32 %v1910, 7
        %v1912 = vsub.s32 2, %v1911
        %v1913 = vrot.slane %v1900, %v1912
        %v1914 = vlaneseq
        %v1915 = vshrl.u32 %v1914, 7
        %v1916 = vsub.s32 3, %v1915
        %v1917 = vrot.slane %v1900, %v1916
        %v1954 = vunpack.c.l.b16 %v1868
        %v1955 = vunpack.c.h.b16 %v1868
        %v1956 = vunpack.c.l.b16 %v1869
        %v1957 = vunpack.c.h.b16 %v1869
        %v1958 = vunpack.c.l.b16 %v1870
        %v1959 = vunpack.c.h.b16 %v1870
        %v1960 = vunpack.c.l.b16 %v1871
        %v1961 = vunpack.c.h.b16 %v1871
        %v1962 = vunpack.c.l.b16 %v1872
        %v1963 = vunpack.c.h.b16 %v1872
        %v1964 = vunpack.c.l.b16 %v1873
        %v1965 = vunpack.c.h.b16 %v1873
        %v1966 = vunpack.c.l.b16 %v1874
        %v1967 = vunpack.c.h.b16 %v1874
        %v1968 = vunpack.c.l.b16 %v1875
        %v1969 = vunpack.c.h.b16 %v1875
        %v1970 = vunpack.c.l.b16 %v1876
        %v1971 = vunpack.c.h.b16 %v1876
        %v1972 = vunpack.c.l.b16 %v1877
        %v1973 = vunpack.c.h.b16 %v1877
        %v1974 = vunpack.c.l.b16 %v1878
        %v1975 = vunpack.c.h.b16 %v1878
        %v1976 = vunpack.c.l.b16 %v1879
        %v1977 = vunpack.c.h.b16 %v1879
        %v1978 = vunpack.c.l.b16 %v1880
        %v1979 = vunpack.c.h.b16 %v1880
        %v1980 = vunpack.c.l.b16 %v1881
        %v1981 = vunpack.c.h.b16 %v1881
        %v1982 = vunpack.c.l.b16 %v1882
        %v1983 = vunpack.c.h.b16 %v1882
        %v1984 = vunpack.c.l.b16 %v1883
        %v1985 = vunpack.c.h.b16 %v1883
        %v1986 = vunpack.c.l.b16 %v1884
        %v1987 = vunpack.c.h.b16 %v1884
        %v1988 = vunpack.c.l.b16 %v1885
        %v1989 = vunpack.c.h.b16 %v1885
        %v1990 = vunpack.c.l.b16 %v1886
        %v1991 = vunpack.c.h.b16 %v1886
        %v1992 = vunpack.c.l.b16 %v1887
        %v1993 = vunpack.c.h.b16 %v1887
        %v1994 = vunpack.c.l.b16 %v1888
        %v1995 = vunpack.c.h.b16 %v1888
        %v1996 = vunpack.c.l.b16 %v1889
        %v1997 = vunpack.c.h.b16 %v1889
        %v1998 = vunpack.c.l.b16 %v1890
        %v1999 = vunpack.c.h.b16 %v1890
        %v2000 = vunpack.c.l.b16 %v1891
        %v2001 = vunpack.c.h.b16 %v1891
        %v2002 = vunpack.c.l.b16 %v1892
        %v2003 = vunpack.c.h.b16 %v1892
        %v2004 = vunpack.c.l.b16 %v1893
        %v2005 = vunpack.c.h.b16 %v1893
        %v2006 = vunpack.c.l.b16 %v1894
        %v2007 = vunpack.c.h.b16 %v1894
        %v2008 = vunpack.c.l.b16 %v1895
        %v2009 = vunpack.c.h.b16 %v1895
        %v2010 = vunpack.c.l.b16 %v1896
        %v2011 = vunpack.c.h.b16 %v1896
        %v2012 = vunpack.c.l.b16 %v1897
        %v2013 = vunpack.c.h.b16 %v1897
        %v2014 = vunpack.c.l.b16 %v1898
        %v2015 = vunpack.c.h.b16 %v1898
        %v2016 = vunpack.c.l.b16 %v1899
        %v2017 = vunpack.c.h.b16 %v1899
        %v2018 = vpack.c.b16 %v1958, %v1954
        %v2019 = vpack.c.b16 %v1959, %v1955
        %v2020 = vpack.c.b16 %v1960, %v1956
        %v2021 = vpack.c.b16 %v1961, %v1957
        %v2022 = vpack.c.b16 %v1966, %v1962
        %v2023 = vpack.c.b16 %v1967, %v1963
        %v2024 = vpack.c.b16 %v1968, %v1964
        %v2025 = vpack.c.b16 %v1969, %v1965
        %v2026 = vpack.c.b16 %v1974, %v1970
        %v2027 = vpack.c.b16 %v1975, %v1971
        %v2028 = vpack.c.b16 %v1976, %v1972
        %v2029 = vpack.c.b16 %v1977, %v1973
        %v2030 = vpack.c.b16 %v1982, %v1978
        %v2031 = vpack.c.b16 %v1983, %v1979
        %v2032 = vpack.c.b16 %v1984, %v1980
        %v2033 = vpack.c.b16 %v1985, %v1981
        %v2034 = vpack.c.b16 %v1990, %v1986
        %v2035 = vpack.c.b16 %v1991, %v1987
        %v2036 = vpack.c.b16 %v1992, %v1988
        %v2037 = vpack.c.b16 %v1993, %v1989
        %v2038 = vpack.c.b16 %v1998, %v1994
        %v2039 = vpack.c.b16 %v1999, %v1995
        %v2040 = vpack.c.b16 %v2000, %v1996
        %v2041 = vpack.c.b16 %v2001, %v1997
        %v2042 = vpack.c.b16 %v2006, %v2002
        %v2043 = vpack.c.b16 %v2007, %v2003
        %v2044 = vpack.c.b16 %v2008, %v2004
        %v2045 = vpack.c.b16 %v2009, %v2005
        %v2046 = vpack.c.b16 %v2014, %v2010
        %v2047 = vpack.c.b16 %v2015, %v2011
        %v2048 = vpack.c.b16 %v2016, %v2012
        %v2049 = vpack.c.b16 %v2017, %v2013
        %2082 = vmatprep.subr.bf16.mxu0 %v2019
        %2083 = vmatpush1.bf16.msra.mxu0 %v2018
        %2084 = vmatprep.subr.bf16.mxu0 %v2023
        %2085 = vmatpush1.bf16.msra.mxu0 %v2022
        %2086 = vmatprep.subr.bf16.mxu0 %v2027
        %2087 = vmatpush1.bf16.msra.mxu0 %v2026
        %2088 = vmatprep.subr.bf16.mxu0 %v2031
        %2089 = vmatpush1.bf16.msra.mxu0 %v2030
        %2090 = vmatprep.subr.bf16.mxu0 %v2035
        %2091 = vmatpush1.bf16.msra.mxu0 %v2034
        %2092 = vmatprep.subr.bf16.mxu0 %v2039
        %2093 = vmatpush1.bf16.msra.mxu0 %v2038
        %2094 = vmatprep.subr.bf16.mxu0 %v2043
        %2095 = vmatpush1.bf16.msra.mxu0 %v2042
        %2096 = vmatprep.subr.bf16.mxu0 %v2047
        %2097 = vmatpush1.bf16.msra.mxu0 %v2046
        %2098 = vmatprep.subr.bf16.mxu0 0
        %2099 = vmatpush1.bf16.msra.mxu0 0
        %2100 = vmatprep.subr.bf16.mxu0 0
        %2101 = vmatpush1.bf16.msra.mxu0 0
        %2102 = vmatprep.subr.bf16.mxu0 0
        %2103 = vmatpush1.bf16.msra.mxu0 0
        %2104 = vmatprep.subr.bf16.mxu0 0
        %2105 = vmatpush1.bf16.msra.mxu0 0
        %2106 = vmatprep.subr.bf16.mxu0 0
        %2107 = vmatpush1.bf16.msra.mxu0 0
        %2108 = vmatprep.subr.bf16.mxu0 0
        %2109 = vmatpush1.bf16.msra.mxu0 0
        %2110 = vmatprep.subr.bf16.mxu0 0
        %2111 = vmatpush1.bf16.msra.mxu0 0
        %2112 = vmatprep.subr.bf16.mxu0 0
        %2113 = vmatpush1.bf16.msra.mxu0 0
        %2114 = vmatprep.mubr.bf16.mxu0 0
        %2115 = vmatmul.mubr.bf16.gmra.mrb[0].mxu0 %v1867
        %v2116 = vpop.f32.mrb[0].mxu0
        %v2117 = vadd.f32 %v1905, %v2116
        %v2118 = vpop.f32.mrb[0].mxu0
        %v2119 = vadd.f32 %v1909, %v2118
        %v2120 = vpop.f32.mrb[0].mxu0
        %v2121 = vadd.f32 %v1905, %v2120
        %v2122 = vpop.f32.mrb[0].mxu0
        %v2123 = vadd.f32 %v1909, %v2122
        %2124 = vdwg.mxu0
        %2125 = vmatprep.subr.bf16.mxu0 %v2021
        %2126 = vmatpush1.bf16.msra.mxu0 %v2020
        %2127 = vmatprep.subr.bf16.mxu0 %v2025
        %2128 = vmatpush1.bf16.msra.mxu0 %v2024
        %2129 = vmatprep.subr.bf16.mxu0 %v2029
        %2130 = vmatpush1.bf16.msra.mxu0 %v2028
        %2131 = vmatprep.subr.bf16.mxu0 %v2033
        %2132 = vmatpush1.bf16.msra.mxu0 %v2032
        %2133 = vmatprep.subr.bf16.mxu0 %v2037
        %2134 = vmatpush1.bf16.msra.mxu0 %v2036
        %2135 = vmatprep.subr.bf16.mxu0 %v2041
        %2136 = vmatpush1.bf16.msra.mxu0 %v2040
        %2137 = vmatprep.subr.bf16.mxu0 %v2045
        %2138 = vmatpush1.bf16.msra.mxu0 %v2044
        %2139 = vmatprep.subr.bf16.mxu0 %v2049
        %2140 = vmatpush1.bf16.msra.mxu0 %v2048
        %2141 = vmatprep.subr.bf16.mxu0 0
        %2142 = vmatpush1.bf16.msra.mxu0 0
        %2143 = vmatprep.subr.bf16.mxu0 0
        %2144 = vmatpush1.bf16.msra.mxu0 0
        %2145 = vmatprep.subr.bf16.mxu0 0
        %2146 = vmatpush1.bf16.msra.mxu0 0
        %2147 = vmatprep.subr.bf16.mxu0 0
        %2148 = vmatpush1.bf16.msra.mxu0 0
        %2149 = vmatprep.subr.bf16.mxu0 0
        %2150 = vmatpush1.bf16.msra.mxu0 0
        %2151 = vmatprep.subr.bf16.mxu0 0
        %2152 = vmatpush1.bf16.msra.mxu0 0
        %2153 = vmatprep.subr.bf16.mxu0 0
        %2154 = vmatpush1.bf16.msra.mxu0 0
        %2155 = vmatprep.subr.bf16.mxu0 0
        %2156 = vmatpush1.bf16.msra.mxu0 0
        %2157 = vmatprep.mubr.bf16.mxu0 0
        %2158 = vmatmul.mubr.bf16.gmra.mrb[0].mxu0 %v1867
        %v2159 = vpop.f32.mrb[0].mxu0
        %v2160 = vadd.f32 %v1913, %v2159
        %v2161 = vpop.f32.mrb[0].mxu0
        %v2162 = vadd.f32 %v1917, %v2161
        %v2163 = vpop.f32.mrb[0].mxu0
        %v2164 = vadd.f32 %v1913, %v2163
        %v2165 = vpop.f32.mrb[0].mxu0
        %v2166 = vadd.f32 %v1917, %v2165
        %2167 = vdwg.mxu0
        %v2168 = vmul.f32 %v2117, 0.5
        %v2169 = vmul.f32 %v2119, 0.5
        %v2170 = vmul.f32 %v2160, 0.5
        %v2171 = vmul.f32 %v2162, 0.5
        %v2172 = vmul.f32 %v2121, 0.5
        %v2173 = vmul.f32 %v2123, 0.5
        %v2174 = vmul.f32 %v2164, 0.5
        %v2175 = vmul.f32 %v2166, 0.5
        %v2176 = vmul.f32 %v2117, 0.044715
        %v2177 = vmul.f32 %v2119, 0.044715
        %v2178 = vmul.f32 %v2160, 0.044715
        %v2179 = vmul.f32 %v2162, 0.044715
        %v2180 = vmul.f32 %v2121, 0.044715
        %v2181 = vmul.f32 %v2123, 0.044715
        %v2182 = vmul.f32 %v2164, 0.044715
        %v2183 = vmul.f32 %v2166, 0.044715
        %v2184 = vmul.f32 %v2176, %v2117
        %v2185 = vmul.f32 %v2177, %v2119
        %v2186 = vmul.f32 %v2178, %v2160
        %v2187 = vmul.f32 %v2179, %v2162
        %v2188 = vmul.f32 %v2180, %v2121
        %v2189 = vmul.f32 %v2181, %v2123
        %v2190 = vmul.f32 %v2182, %v2164
        %v2191 = vmul.f32 %v2183, %v2166
        %v2192 = vmul.f32 %v2184, %v2117
        %v2193 = vmul.f32 %v2185, %v2119
        %v2194 = vmul.f32 %v2186, %v2160
        %v2195 = vmul.f32 %v2187, %v2162
        %v2196 = vmul.f32 %v2188, %v2121
        %v2197 = vmul.f32 %v2189, %v2123
        %v2198 = vmul.f32 %v2190, %v2164
        %v2199 = vmul.f32 %v2191, %v2166
        %v2200 = vadd.f32 %v2117, %v2192
        %v2201 = vadd.f32 %v2119, %v2193
        %v2202 = vadd.f32 %v2160, %v2194
        %v2203 = vadd.f32 %v2162, %v2195
        %v2204 = vadd.f32 %v2121, %v2196
        %v2205 = vadd.f32 %v2123, %v2197
        %v2206 = vadd.f32 %v2164, %v2198
        %v2207 = vadd.f32 %v2166, %v2199
        %v2208 = vmul.f32 %v2200, 0.7978846
        %v2209 = vmul.f32 %v2201, 0.7978846
        %v2210 = vmul.f32 %v2202, 0.7978846
        %v2211 = vmul.f32 %v2203, 0.7978846
        %v2212 = vmul.f32 %v2204, 0.7978846
        %v2213 = vmul.f32 %v2205, 0.7978846
        %v2214 = vmul.f32 %v2206, 0.7978846
        %v2215 = vmul.f32 %v2207, 0.7978846
        %v2216 = vtanh.pop %v2208
        %v2217 = vtanh.pop %v2209
        %v2218 = vtanh.pop %v2210
        %v2219 = vtanh.pop %v2211
        %v2220 = vtanh.pop %v2212
        %v2221 = vtanh.pop %v2213
        %v2222 = vtanh.pop %v2214
        %v2223 = vtanh.pop %v2215
        %v2224 = vadd.f32 %v2216, 1.0
        %v2225 = vadd.f32 %v2217, 1.0
        %v2226 = vadd.f32 %v2218, 1.0
        %v2227 = vadd.f32 %v2219, 1.0
        %v2228 = vadd.f32 %v2220, 1.0
        %v2229 = vadd.f32 %v2221, 1.0
        %v2230 = vadd.f32 %v2222, 1.0
        %v2231 = vadd.f32 %v2223, 1.0
        %v2232 = vmul.f32 %v2168, %v2224
        %v2233 = vmul.f32 %v2169, %v2225
        %v2234 = vmul.f32 %v2170, %v2226
        %v2235 = vmul.f32 %v2171, %v2227
        %v2236 = vmul.f32 %v2172, %v2228
        %v2237 = vmul.f32 %v2173, %v2229
        %v2238 = vmul.f32 %v2174, %v2230
        %v2239 = vmul.f32 %v2175, %v2231
        %v2240 = vpack.c.bf16 %v2236, %v2232
        %v2241 = vpack.c.bf16 %v2237, %v2233
        %v2242 = vpack.c.bf16 %v2238, %v2234
        %v2243 = vpack.c.bf16 %v2239, %v2235
        %v2244 = vld [vmem:[%s14] sm:$0xf]
        %v2245 = vld [vmem:[%s14 + $0x4] sm:$0xf]
        %v2246 = vld [vmem:[%s14 + $0x8] sm:$0xf]
        %v2247 = vld [vmem:[%s14 + $0xc] sm:$0xf]
        %v2248 = vld [vmem:[%s14 + $0x10] sm:$0xf]
        %v2249 = vld [vmem:[%s14 + $0x14] sm:$0xf]
        %v2250 = vld [vmem:[%s14 + $0x18] sm:$0xf]
        %v2251 = vld [vmem:[%s14 + $0x1c] sm:$0xf]
        %v2252 = vld [vmem:[%s14 + $0x20] sm:$0xf]
        %v2253 = vld [vmem:[%s14 + $0x24] sm:$0xf]
        %v2254 = vld [vmem:[%s14 + $0x28] sm:$0xf]
        %v2255 = vld [vmem:[%s14 + $0x2c] sm:$0xf]
        %v2256 = vld [vmem:[%s14 + $0x30] sm:$0xf]
        %v2257 = vld [vmem:[%s14 + $0x34] sm:$0xf]
        %v2258 = vld [vmem:[%s14 + $0x38] sm:$0xf]
        %v2259 = vld [vmem:[%s14 + $0x3c] sm:$0xf]
        %v2260 = vld [vmem:[%s14 + $0x40] sm:$0xf]
        %v2261 = vld [vmem:[%s14 + $0x44] sm:$0xf]
        %v2262 = vld [vmem:[%s14 + $0x48] sm:$0xf]
        %v2263 = vld [vmem:[%s14 + $0x4c] sm:$0xf]
        %v2264 = vld [vmem:[%s14 + $0x50] sm:$0xf]
        %v2265 = vld [vmem:[%s14 + $0x54] sm:$0xf]
        %v2266 = vld [vmem:[%s14 + $0x58] sm:$0xf]
        %v2267 = vld [vmem:[%s14 + $0x5c] sm:$0xf]
        %v2268 = vld [vmem:[%s14 + $0x60] sm:$0xf]
        %v2269 = vld [vmem:[%s14 + $0x64] sm:$0xf]
        %v2270 = vld [vmem:[%s14 + $0x68] sm:$0xf]
        %v2271 = vld [vmem:[%s14 + $0x6c] sm:$0xf]
        %v2272 = vld [vmem:[%s14 + $0x70] sm:$0xf]
        %v2273 = vld [vmem:[%s14 + $0x74] sm:$0xf]
        %v2274 = vld [vmem:[%s14 + $0x78] sm:$0xf]
        %v2275 = vld [vmem:[%s14 + $0x7c] sm:$0xf]
        %v2276 = vld [vmem:[%s14 + $0x80] sm:$0xf]
        %v2277 = vld [vmem:[%s14 + $0x84] sm:$0xf]
        %v2278 = vld [vmem:[%s14 + $0x88] sm:$0xf]
        %v2279 = vld [vmem:[%s14 + $0x8c] sm:$0xf]
        %v2280 = vld [vmem:[%s14 + $0x90] sm:$0xf]
        %v2281 = vld [vmem:[%s14 + $0x94] sm:$0xf]
        %v2282 = vld [vmem:[%s14 + $0x98] sm:$0xf]
        %v2283 = vld [vmem:[%s14 + $0x9c] sm:$0xf]
        %v2284 = vld [vmem:[%s14 + $0xa0] sm:$0xf]
        %v2285 = vld [vmem:[%s14 + $0xa4] sm:$0xf]
        %v2286 = vld [vmem:[%s14 + $0xa8] sm:$0xf]
        %v2287 = vld [vmem:[%s14 + $0xac] sm:$0xf]
        %v2288 = vld [vmem:[%s14 + $0xb0] sm:$0xf]
        %v2289 = vld [vmem:[%s14 + $0xb4] sm:$0xf]
        %v2290 = vld [vmem:[%s14 + $0xb8] sm:$0xf]
        %v2291 = vld [vmem:[%s14 + $0xbc] sm:$0xf]
        %v2292 = vld [vmem:[%s14 + $0xc0] sm:$0xf]
        %v2293 = vld [vmem:[%s14 + $0xc4] sm:$0xf]
        %v2294 = vld [vmem:[%s14 + $0xc8] sm:$0xf]
        %v2295 = vld [vmem:[%s14 + $0xcc] sm:$0xf]
        %v2296 = vld [vmem:[%s14 + $0xd0] sm:$0xf]
        %v2297 = vld [vmem:[%s14 + $0xd4] sm:$0xf]
        %v2298 = vld [vmem:[%s14 + $0xd8] sm:$0xf]
        %v2299 = vld [vmem:[%s14 + $0xdc] sm:$0xf]
        %v2300 = vld [vmem:[%s14 + $0xe0] sm:$0xf]
        %v2301 = vld [vmem:[%s14 + $0xe4] sm:$0xf]
        %v2302 = vld [vmem:[%s14 + $0xe8] sm:$0xf]
        %v2303 = vld [vmem:[%s14 + $0xec] sm:$0xf]
        %v2304 = vld [vmem:[%s14 + $0xf0] sm:$0xf]
        %v2305 = vld [vmem:[%s14 + $0xf4] sm:$0xf]
        %v2306 = vld [vmem:[%s14 + $0xf8] sm:$0xf]
        %v2307 = vld [vmem:[%s14 + $0xfc] sm:$0xf]
        %v2308 = vld [vmem:[%s15] sm:$0x1]
        %v2310 = vlaneseq
        %v2311 = vshrl.u32 %v2310, 7
        %v2312 = vsub.s32 0, %v2311
        %v2313 = vrot.slane %v2308, %v2312
        %v2379 = vunpack.c.l.b16 %v2244
        %v2380 = vunpack.c.l.b16 %v2245
        %v2381 = vunpack.c.l.b16 %v2246
        %v2382 = vunpack.c.l.b16 %v2247
        %v2383 = vunpack.c.l.b16 %v2248
        %v2384 = vunpack.c.l.b16 %v2249
        %v2385 = vunpack.c.l.b16 %v2250
        %v2386 = vunpack.c.l.b16 %v2251
        %v2387 = vunpack.c.l.b16 %v2252
        %v2388 = vunpack.c.l.b16 %v2253
        %v2389 = vunpack.c.l.b16 %v2254
        %v2390 = vunpack.c.l.b16 %v2255
        %v2391 = vunpack.c.l.b16 %v2256
        %v2392 = vunpack.c.l.b16 %v2257
        %v2393 = vunpack.c.l.b16 %v2258
        %v2394 = vunpack.c.l.b16 %v2259
        %v2395 = vunpack.c.l.b16 %v2260
        %v2396 = vunpack.c.l.b16 %v2261
        %v2397 = vunpack.c.l.b16 %v2262
        %v2398 = vunpack.c.l.b16 %v2263
        %v2399 = vunpack.c.l.b16 %v2264
        %v2400 = vunpack.c.l.b16 %v2265
        %v2401 = vunpack.c.l.b16 %v2266
        %v2402 = vunpack.c.l.b16 %v2267
        %v2403 = vunpack.c.l.b16 %v2268
        %v2404 = vunpack.c.l.b16 %v2269
        %v2405 = vunpack.c.l.b16 %v2270
        %v2406 = vunpack.c.l.b16 %v2271
        %v2407 = vunpack.c.l.b16 %v2272
        %v2408 = vunpack.c.l.b16 %v2273
        %v2409 = vunpack.c.l.b16 %v2274
        %v2410 = vunpack.c.l.b16 %v2275
        %v2411 = vunpack.c.l.b16 %v2276
        %v2412 = vunpack.c.l.b16 %v2277
        %v2413 = vunpack.c.l.b16 %v2278
        %v2414 = vunpack.c.l.b16 %v2279
        %v2415 = vunpack.c.l.b16 %v2280
        %v2416 = vunpack.c.l.b16 %v2281
        %v2417 = vunpack.c.l.b16 %v2282
        %v2418 = vunpack.c.l.b16 %v2283
        %v2419 = vunpack.c.l.b16 %v2284
        %v2420 = vunpack.c.l.b16 %v2285
        %v2421 = vunpack.c.l.b16 %v2286
        %v2422 = vunpack.c.l.b16 %v2287
        %v2423 = vunpack.c.l.b16 %v2288
        %v2424 = vunpack.c.l.b16 %v2289
        %v2425 = vunpack.c.l.b16 %v2290
        %v2426 = vunpack.c.l.b16 %v2291
        %v2427 = vunpack.c.l.b16 %v2292
        %v2428 = vunpack.c.l.b16 %v2293
        %v2429 = vunpack.c.l.b16 %v2294
        %v2430 = vunpack.c.l.b16 %v2295
        %v2431 = vunpack.c.l.b16 %v2296
        %v2432 = vunpack.c.l.b16 %v2297
        %v2433 = vunpack.c.l.b16 %v2298
        %v2434 = vunpack.c.l.b16 %v2299
        %v2435 = vunpack.c.l.b16 %v2300
        %v2436 = vunpack.c.l.b16 %v2301
        %v2437 = vunpack.c.l.b16 %v2302
        %v2438 = vunpack.c.l.b16 %v2303
        %v2439 = vunpack.c.l.b16 %v2304
        %v2440 = vunpack.c.l.b16 %v2305
        %v2441 = vunpack.c.l.b16 %v2306
        %v2442 = vunpack.c.l.b16 %v2307
        %v2443 = vpack.c.b16 %v2380, %v2379
        %v2444 = vpack.c.b16 %v2382, %v2381
        %v2445 = vpack.c.b16 %v2384, %v2383
        %v2446 = vpack.c.b16 %v2386, %v2385
        %v2447 = vpack.c.b16 %v2388, %v2387
        %v2448 = vpack.c.b16 %v2390, %v2389
        %v2449 = vpack.c.b16 %v2392, %v2391
        %v2450 = vpack.c.b16 %v2394, %v2393
        %v2451 = vpack.c.b16 %v2396, %v2395
        %v2452 = vpack.c.b16 %v2398, %v2397
        %v2453 = vpack.c.b16 %v2400, %v2399
        %v2454 = vpack.c.b16 %v2402, %v2401
        %v2455 = vpack.c.b16 %v2404, %v2403
        %v2456 = vpack.c.b16 %v2406, %v2405
        %v2457 = vpack.c.b16 %v2408, %v2407
        %v2458 = vpack.c.b16 %v2410, %v2409
        %v2459 = vpack.c.b16 %v2412, %v2411
        %v2460 = vpack.c.b16 %v2414, %v2413
        %v2461 = vpack.c.b16 %v2416, %v2415
        %v2462 = vpack.c.b16 %v2418, %v2417
        %v2463 = vpack.c.b16 %v2420, %v2419
        %v2464 = vpack.c.b16 %v2422, %v2421
        %v2465 = vpack.c.b16 %v2424, %v2423
        %v2466 = vpack.c.b16 %v2426, %v2425
        %v2467 = vpack.c.b16 %v2428, %v2427
        %v2468 = vpack.c.b16 %v2430, %v2429
        %v2469 = vpack.c.b16 %v2432, %v2431
        %v2470 = vpack.c.b16 %v2434, %v2433
        %v2471 = vpack.c.b16 %v2436, %v2435
        %v2472 = vpack.c.b16 %v2438, %v2437
        %v2473 = vpack.c.b16 %v2440, %v2439
        %v2474 = vpack.c.b16 %v2442, %v2441
        %2507 = vmatprep.subr.bf16.mxu0 0
        %2508 = vmatpush1.bf16.msra.mxu0 %v2443
        %2509 = vmatprep.subr.bf16.mxu0 0
        %2510 = vmatpush1.bf16.msra.mxu0 %v2444
        %2511 = vmatprep.subr.bf16.mxu0 0
        %2512 = vmatpush1.bf16.msra.mxu0 %v2445
        %2513 = vmatprep.subr.bf16.mxu0 0
        %2514 = vmatpush1.bf16.msra.mxu0 %v2446
        %2515 = vmatprep.subr.bf16.mxu0 0
        %2516 = vmatpush1.bf16.msra.mxu0 %v2447
        %2517 = vmatprep.subr.bf16.mxu0 0
        %2518 = vmatpush1.bf16.msra.mxu0 %v2448
        %2519 = vmatprep.subr.bf16.mxu0 0
        %2520 = vmatpush1.bf16.msra.mxu0 %v2449
        %2521 = vmatprep.subr.bf16.mxu0 0
        %2522 = vmatpush1.bf16.msra.mxu0 %v2450
        %2523 = vmatprep.subr.bf16.mxu0 0
        %2524 = vmatpush1.bf16.msra.mxu0 %v2451
        %2525 = vmatprep.subr.bf16.mxu0 0
        %2526 = vmatpush1.bf16.msra.mxu0 %v2452
        %2527 = vmatprep.subr.bf16.mxu0 0
        %2528 = vmatpush1.bf16.msra.mxu0 %v2453
        %2529 = vmatprep.subr.bf16.mxu0 0
        %2530 = vmatpush1.bf16.msra.mxu0 %v2454
        %2531 = vmatprep.subr.bf16.mxu0 0
        %2532 = vmatpush1.bf16.msra.mxu0 %v2455
        %2533 = vmatprep.subr.bf16.mxu0 0
        %2534 = vmatpush1.bf16.msra.mxu0 %v2456
        %2535 = vmatprep.subr.bf16.mxu0 0
        %2536 = vmatpush1.bf16.msra.mxu0 %v2457
        %2537 = vmatprep.subr.bf16.mxu0 0
        %2538 = vmatpush1.bf16.msra.mxu0 %v2458
        %2539 = vmatprep.mubr.bf16.mxu0 %v2241
        %2540 = vmatmul.mubr.bf16.gmra.mrb[0].mxu0 %v2240
        %v2541 = vpop.f32.mrb[0].mxu0
        %v2542 = vadd.f32 %v2313, %v2541
        %v2543 = vpop.f32.mrb[0].mxu0
        %v2544 = vpop.f32.mrb[0].mxu0
        %v2545 = vadd.f32 %v2313, %v2544
        %v2546 = vpop.f32.mrb[0].mxu0
        %2547 = vdwg.mxu0
        %2548 = vmatprep.subr.bf16.mxu0 0
        %2549 = vmatpush1.bf16.msra.mxu0 %v2459
        %2550 = vmatprep.subr.bf16.mxu0 0
        %2551 = vmatpush1.bf16.msra.mxu0 %v2460
        %2552 = vmatprep.subr.bf16.mxu0 0
        %2553 = vmatpush1.bf16.msra.mxu0 %v2461
        %2554 = vmatprep.subr.bf16.mxu0 0
        %2555 = vmatpush1.bf16.msra.mxu0 %v2462
        %2556 = vmatprep.subr.bf16.mxu0 0
        %2557 = vmatpush1.bf16.msra.mxu0 %v2463
        %2558 = vmatprep.subr.bf16.mxu0 0
        %2559 = vmatpush1.bf16.msra.mxu0 %v2464
        %2560 = vmatprep.subr.bf16.mxu0 0
        %2561 = vmatpush1.bf16.msra.mxu0 %v2465
        %2562 = vmatprep.subr.bf16.mxu0 0
        %2563 = vmatpush1.bf16.msra.mxu0 %v2466
        %2564 = vmatprep.subr.bf16.mxu0 0
        %2565 = vmatpush1.bf16.msra.mxu0 %v2467
        %2566 = vmatprep.subr.bf16.mxu0 0
        %2567 = vmatpush1.bf16.msra.mxu0 %v2468
        %2568 = vmatprep.subr.bf16.mxu0 0
        %2569 = vmatpush1.bf16.msra.mxu0 %v2469
        %2570 = vmatprep.subr.bf16.mxu0 0
        %2571 = vmatpush1.bf16.msra.mxu0 %v2470
        %2572 = vmatprep.subr.bf16.mxu0 0
        %2573 = vmatpush1.bf16.msra.mxu0 %v2471
        %2574 = vmatprep.subr.bf16.mxu0 0
        %2575 = vmatpush1.bf16.msra.mxu0 %v2472
        %2576 = vmatprep.subr.bf16.mxu0 0
        %2577 = vmatpush1.bf16.msra.mxu0 %v2473
        %2578 = vmatprep.subr.bf16.mxu0 0
        %2579 = vmatpush1.bf16.msra.mxu0 %v2474
        %2580 = vmatprep.mubr.bf16.mxu0 %v2243
        %2581 = vmatmul.mubr.bf16.gmra.mrb[0].mxu0 %v2242
        %v2582 = vpop.f32.mrb[0].mxu0
        %v2583 = vadd.f32 %v2542, %v2582
        %v2584 = vpop.f32.mrb[0].mxu0
        %v2585 = vpop.f32.mrb[0].mxu0
        %v2586 = vadd.f32 %v2545, %v2585
        %v2587 = vpop.f32.mrb[0].mxu0
        %2588 = vdwg.mxu0
        %v2589 = vadd.f32 %v1865, %v2583
        %v2590 = vadd.f32 %v1866, %v2586
        %v2591 = vld [vmem:[%s16] sm:$0x1]
        %v2592 = vld [vmem:[%s17] sm:$0x1]
        %2593 = vadd.xlane.f32.xlu0 %v2589
        %v2594 = vpop.xlane.xlu0 %2593
        %2595 = vadd.xlane.f32.xlu0 %v2590
        %v2596 = vpop.xlane.xlu0 %2595
        %v2597 = vmul.f32 %v2594, %v700
        %v2598 = vmul.f32 %v2596, %v700
        %v2599 = vsub.f32 %v2589, %v2597
        %v2600 = vsub.f32 %v2590, %v2598
        %v2601 = vmul.f32 %v2599, %v2599
        %v2602 = vmul.f32 %v2600, %v2600
        %2603 = vadd.xlane.f32.xlu0 %v2601
        %v2604 = vpop.xlane.xlu0 %2603
        %2605 = vadd.xlane.f32.xlu0 %v2602
        %v2606 = vpop.xlane.xlu0 %2605
        %v2607 = vmul.f32 %v2604, %v700
        %v2608 = vmul.f32 %v2606, %v700
        %v2609 = vadd.f32 %v2607, 1e-12
        %v2610 = vadd.f32 %v2608, 1e-12
        %v2611 = vrsqrt.pop %v2609
        %v2612 = vrsqrt.pop %v2610
        %v2613 = vmul.f32 %v2599, %v2611
        %v2614 = vmul.f32 %v2600, %v2612
        %v2616 = vlaneseq
        %v2617 = vshrl.u32 %v2616, 7
        %v2618 = vsub.s32 0, %v2617
        %v2619 = vrot.slane %v2591, %v2618
        %v2621 = vmul.f32 %v2613, %v2619
        %v2622 = vmul.f32 %v2614, %v2619
        %v2624 = vlaneseq
        %v2625 = vshrl.u32 %v2624, 7
        %v2626 = vsub.s32 0, %v2625
        %v2627 = vrot.slane %v2592, %v2626
        %v2629 = vadd.f32 %v2621, %v2627
        %v2630 = vadd.f32 %v2622, %v2627
        %2631 = vst [vmem:[%s687] sm:$0xff] %v2629
        %2632 = vst [vmem:[%s687 + $0x8] sm:$0xff] %v2630
        %s2633 = sand.u32 %s476, 1
        %s2634 = scalar_lea.sflag [#allocation4], %s2633
        %s2635 = sand.u32 %s476, 1
        %s2636 = smul.addr %s2635, 16
        %s2637 = scalar_lea.vmem [#allocation8], %s2636
        // Predicated region
        $region113: #{tpu_custom_call.1} parent=99 // pred_check
          %p2638 = pneg %p486
        $region114: #{tpu_custom_call.1} parent=99 // pred_check_branch
          %2640 = sbr.rel (%p2638) target = $region116
        $region115: #{tpu_custom_call.1} parent=99 // pred_region
          %s2642 = ssub.s32 256, 256
          %2643 = vsyncadd %s2634, %s2642
          %s2644 = smul.addr %s38, 2
          %s2645 = smul.addr %s2644, 128
          %s2646 = scalar_lea.hbm %s20, %s2645
          %s2647 = sshll.u32 %s2637, 4
          %s2648 = int_to_ptr.vmem [resolvable:$true] %s2647
          %2653 = dma.vmem_to_hbm [thread:$0]  %s2648, 256, %s2646, %s2634, 128, 128, 8
        $region116: #{tpu_custom_call.1} parent=99 // pred_fallthru
          _
      $region100: #{tpu_custom_call.1} parent=5 // pred_fallthru
        _
      %p2654 = scmp.le.s32.totalorder 2, %s33
      // Predicated region
      $region117: #{tpu_custom_call.1} parent=5 // pred_check
        %p2655 = pneg %p2654
      $region118: #{tpu_custom_call.1} parent=5 // pred_check_branch
        %2657 = sbr.rel (%p2655) target = $region120
      $region119: #{tpu_custom_call.1} parent=5 // pred_region
        %s2658 = ssub.s32 %s33, 2
        // Predicated region
        $region121: #{tpu_custom_call.1} parent=119 // pred_check
          %p2659 = pneg %p492
        $region122: #{tpu_custom_call.1} parent=119 // pred_check_branch
          %2661 = sbr.rel (%p2659) target = $region124
        $region123: #{tpu_custom_call.1} parent=119 // pred_region
          %s2662 = sand.u32 %s477, 1
          %s2663 = scalar_lea.sflag [#allocation4], %s2662
          %s2664 = sand.u32 %s477, 1
          %s2665 = smul.addr %s2664, 16
          %s2666 = scalar_lea.vmem [#allocation8], %s2665
          %2667 = dma.done %s2663, 256
        $region124: #{tpu_custom_call.1} parent=119 // pred_fallthru
          _
      $region120: #{tpu_custom_call.1} parent=5 // pred_fallthru
        _
    $region6: #{tpu_custom_call.1} parent=1 // loop_footer
      %s37 = sadd.s32 1, %s33
    $region7: #{tpu_custom_call.1} parent=1 // loop_footer_branch
      %32 = sbr.rel target = $region3
    $region8: #{tpu_custom_call.1} parent=1 // loop_exit
      _
    %2668 = vsyncpa [#allocation3], 1
    %s2669 = scalar_lea.sflag [#allocation3], 1
    %2670 = vsyncpa %s2669, 1
    %2671 = vsyncpa [#allocation6], 1
    %2672 = vsyncpa [#allocation4], 1
    %s2673 = scalar_lea.sflag [#allocation4], 1
    %2674 = vsyncpa %s2673, 1

</llo_original>
